<compile_context>
chip_gen: v7x
topology: tpu7x:2x2x1
jax: 0.10.0
libtpu: 0.0.40
codegen_flags: <defaults>
</compile_context>

<pallas_src>
import functools

import jax
import jax.numpy as jnp
from jax.experimental import pallas as pl
from jax.experimental.pallas import tpu as pltpu


def _round_up(n, m):
    return ((n + m - 1) // m) * m


def _make_kernel(B, V, H, L, XW, HW, OUTW, aggregation):
    N_n = B * V        # node rows
    N_e = B * V * V    # edge rows
    f32 = jnp.float32
    bf16 = jnp.bfloat16

    def bn_relu(z, inv_n):
        # PyTorch BatchNorm in training mode (track_running_stats=False equivalent):
        # per-channel batch stats, biased variance, gamma=1, beta=0, eps=1e-5.
        # Single-pass stats: var = E[z^2] - E[z]^2 (f32 accumulation).
        mu = jnp.sum(z, axis=0, keepdims=True) * inv_n
        ms = jnp.sum(z * z, axis=0, keepdims=True) * inv_n
        var = jnp.maximum(ms - mu * mu, 0.0)
        return jax.nn.relu((z - mu) * jax.lax.rsqrt(var + 1e-5))

    def kernel(coord_ref, feats_ref, wc_ref, win_ref,
               wx_ref, bx_ref, ue_ref, bue_ref,
               w1_ref, b1_ref, w2_ref, b2_ref, out_ref):
        # ---------- input embeddings: two small MXU matmuls ----------
        x = jnp.dot(coord_ref[...], wc_ref[...], preferred_element_type=f32)     # (N_n, H)
        e = jnp.dot(feats_ref[...], win_ref[...], preferred_element_type=f32)    # (N_e, H)

        inv_nn = 1.0 / float(N_n)
        inv_ne = 1.0 / float(N_e)

        # ---------- residual gated GCN layers ----------
        for l in range(L):
            xb = x.astype(bf16)
            eb = e.astype(bf16)

            # Fused lane-dense x-side matmul: [Ve | Un | Vn | 0-pad] -> (N_n, XW).
            xcat = jnp.dot(xb, wx_ref[l], preferred_element_type=f32) + bx_ref[l]
            Vex = xcat[:, 0 * H:1 * H]
            Unx = xcat[:, 1 * H:2 * H]
            Vnx = xcat[:, 2 * H:3 * H]

            # Edge-side matmul (bf16 in, f32 accum).
            Uee = jnp.dot(eb, ue_ref[l], preferred_element_type=f32) + bue_ref[l]   # (N_e, H)

            Vex3 = Vex.reshape(B, V, H)
            Vnx3 = Vnx.reshape(B, V, H)
            # e_tmp[b,i,j,h] = Ue(e) + Ve(x)_i + Ve(x)_j
            e_tmp = (Uee.reshape(B, V, V, H)
                     + Vex3[:, :, None, :]
                     + Vex3[:, None, :, :])                                          # (B,V,V,H)

            # Fused gate + neighbor aggregation: accumulate over j so the full gate /
            # gate*Vnx (B,V,V,H) tensors are never materialized; sigmoid is computed
            # exactly once per edge element.
            g = jax.nn.sigmoid(e_tmp[:, :, 0, :])                                    # (B,V,H)
            agg = g * Vnx3[:, 0:1, :]
            den = g
            for j in range(1, V):
                g = jax.nn.sigmoid(e_tmp[:, :, j, :])
                agg = agg + g * Vnx3[:, j:j + 1, :]
                den = den + g
            if aggregation == "mean":
                agg = agg / (1e-20 + den)
            x_tmp = Unx + agg.reshape(N_n, H)                                        # (N_n, H)

            # BatchNorm -> ReLU -> residual
            e = e + bn_relu(e_tmp.reshape(N_e, H), inv_ne)
            x = x + bn_relu(x_tmp, inv_nn)

        # ---------- value head: MLP(H -> H -> 1), padded to HW lanes, mean over nodes ----------
        h1 = jax.nn.relu(jnp.dot(x.astype(bf16), w1_ref[...], preferred_element_type=f32)
                         + b1_ref[...])                                               # (N_n, HW)
        prod = h1 * w2_ref[...]                                                       # (N_n, HW)
        per_b = jnp.sum(prod.reshape(B, V, HW), axis=1)                               # (B, HW)
        val = jnp.sum(per_b, axis=1, keepdims=True) * (1.0 / float(V)) + b2_ref[...]  # (B, 1)
        out_ref[...] = jnp.broadcast_to(val, (B, OUTW))                               # lane-dense store

    return kernel


def init_params(key, H=32, node_dim=2, voc_edges_in=3, num_layers=2):
    """Deterministic synthetic parameters. Linear weights stored as (in, out): y = x @ W + b."""
    H2 = H // 2
    ks = jax.random.split(key, 16)

    def w(k, shape, scale=0.1):
        return (scale * jax.random.normal(k, shape)).astype(jnp.float32)

    Wc = w(ks[0], (node_dim, H))
    We = w(ks[1], (1, H2))
    We_pad = jnp.concatenate([We, jnp.zeros((1, H - H2), jnp.float32)], axis=1)   # first half = dist emb
    emb0 = w(ks[2], (voc_edges_in, H2))
    emb1 = w(ks[3], (voc_edges_in, H2))
    zpad = jnp.zeros((voc_edges_in, H - H2), jnp.float32)
    emb0_pad = jnp.concatenate([zpad, emb0], axis=1)                              # second half = tag emb
    emb1_pad = jnp.concatenate([zpad, emb1], axis=1)

    L = num_layers
    params = dict(
        Wc=Wc, We_pad=We_pad, emb0_pad=emb0_pad, emb1_pad=emb1_pad,
        Ue=w(ks[4], (L, H, H)), bUe=w(ks[5], (L, 1, H)),
        Ve=w(ks[6], (L, H, H)), bVe=w(ks[7], (L, 1, H)),
        Un=w(ks[8], (L, H, H)), bUn=w(ks[9], (L, 1, H)),
        Vn=w(ks[10], (L, H, H)), bVn=w(ks[11], (L, 1, H)),
        W1=w(ks[12], (H, H)), b1=w(ks[13], (1, H)),
        w2=w(ks[14], (1, H)), b2=w(ks[15], (1, 1)),
    )
    return params


@functools.partial(jax.jit, static_argnames=("aggregation",))
def tsp_rgcn_value_net(params, x_edges, x_edges_values, x_nodes_coord,
                       x_tour, x_best_tour, *, aggregation="mean"):
    """Forward pass. x_edges is accepted (signature parity) but unused, as in the PyTorch module."""
    del x_edges
    f32 = jnp.float32
    bf16 = jnp.bfloat16
    B, V, node_dim = x_nodes_coord.shape
    H = params["Wc"].shape[1]
    VOC = params["emb0_pad"].shape[0]
    L = params["Ue"].shape[0]
    N_n, N_e = B * V, B * V * V

    # ---- glue: flatten inputs; fold dist-Linear + 2 Embedding lookups into one small matmul ----
    CPAD = _round_up(max(node_dim, 1), 8)
    coord = jnp.pad(x_nodes_coord.reshape(N_n, node_dim).astype(f32),
                    ((0, 0), (0, CPAD - node_dim)))                                  # (N_n, CPAD)
    wc = jnp.pad(params["Wc"].astype(f32), ((0, CPAD - node_dim), (0, 0)))            # (CPAD, H)

    Fin = 1 + 2 * VOC
    FPAD = _round_up(Fin, 8)
    evals = x_edges_values.reshape(N_e, 1).astype(f32)
    oh0 = jax.nn.one_hot(x_tour.reshape(N_e), VOC, dtype=f32)
    oh1 = jax.nn.one_hot(x_best_tour.reshape(N_e), VOC, dtype=f32)
    feats = jnp.concatenate(
        [evals, oh0, oh1, jnp.zeros((N_e, FPAD - Fin), f32)], axis=1)                 # (N_e, FPAD)
    win = jnp.concatenate(
        [params["We_pad"], params["emb0_pad"], params["emb1_pad"],
         jnp.zeros((FPAD - Fin, H), f32)], axis=0)                                    # (FPAD, H)

    # ---- fused / padded / bf16 weights ----
    XW = _round_up(3 * H, 128)
    wx = jnp.concatenate([params["Ve"], params["Un"], params["Vn"],
                          jnp.zeros((L, H, XW - 3 * H), f32)], axis=2).astype(bf16)   # (L, H, XW)
    bx = jnp.concatenate([params["bVe"], params["bUn"], params["bVn"],
                          jnp.zeros((L, 1, XW - 3 * H), f32)], axis=2)                # (L, 1, XW)
    ue = params["Ue"].astype(bf16)                                                    # (L, H, H)
    bue = params["bUe"]                                                               # (L, 1, H)

    HW = _round_up(H, 128)
    w1 = jnp.pad(params["W1"], ((0, 0), (0, HW - H))).astype(bf16)                    # (H, HW)
    b1 = jnp.pad(params["b1"], ((0, 0), (0, HW - H)))                                 # (1, HW)
    w2 = jnp.pad(params["w2"], ((0, 0), (0, HW - H)))                                 # (1, HW)
    b2 = params["b2"]                                                                 # (1, 1)

    OUTW = 128
    kernel = _make_kernel(B, V, H, L, XW, HW, OUTW, aggregation)
    vmem = pl.BlockSpec(memory_space=pltpu.MemorySpace.VMEM)
    args = (coord, feats, wc, win, wx, bx, ue, bue, w1, b1, w2, b2)

    out = pl.pallas_call(
        kernel,
        out_shape=jax.ShapeDtypeStruct((B, OUTW), f32),
        in_specs=[vmem] * len(args),
        out_specs=vmem,
        compiler_params=pltpu.CompilerParams(vmem_limit_bytes=64 * 1024 * 1024),
    )(*args)
    return out[:, 0]   # (B,) value per batch element


if __name__ == "__main__":
    key = jax.random.PRNGKey(0)
    B, V, H = 2, 8, 32
    node_dim, voc_edges_in, num_layers = 2, 3, 2

    kp, kd = jax.random.split(key)
    params = init_params(kp, H=H, node_dim=node_dim, voc_edges_in=voc_edges_in,
                         num_layers=num_layers)

    kds = jax.random.split(kd, 5)
    x_edges = jax.random.randint(kds[0], (B, V, V), 0, voc_edges_in)          # unused by forward
    x_edges_values = jax.random.uniform(kds[1], (B, V, V), dtype=jnp.float32)
    x_nodes_coord = jax.random.uniform(kds[2], (B, V, node_dim), dtype=jnp.float32)
    x_tour = jax.random.randint(kds[3], (B, V, V), 0, 2)                      # binary tour adjacency
    x_best_tour = jax.random.randint(kds[4], (B, V, V), 0, 2)

    value = tsp_rgcn_value_net(params, x_edges, x_edges_values, x_nodes_coord,
                               x_tour, x_best_tour, aggregation="mean")
    jax.block_until_ready(value)
    assert value.shape == (B,)
    print("KERNEL_OK")
</pallas_src>

<mosaic_0001>
module attributes {stable_mosaic.version = 11 : i64} {
  func.func @kernel(%arg0: memref<16x8xf32, #tpu.memory_space<vmem>>, %arg1: memref<128x8xf32, #tpu.memory_space<vmem>>, %arg2: memref<8x32xf32, #tpu.memory_space<vmem>>, %arg3: memref<8x32xf32, #tpu.memory_space<vmem>>, %arg4: memref<2x32x128xbf16, #tpu.memory_space<vmem>>, %arg5: memref<2x1x128xf32, #tpu.memory_space<vmem>>, %arg6: memref<2x32x32xbf16, #tpu.memory_space<vmem>>, %arg7: memref<2x1x32xf32, #tpu.memory_space<vmem>>, %arg8: memref<32x128xbf16, #tpu.memory_space<vmem>>, %arg9: memref<1x128xf32, #tpu.memory_space<vmem>>, %arg10: memref<1x128xf32, #tpu.memory_space<vmem>>, %arg11: memref<1x1xf32, #tpu.memory_space<vmem>>, %arg12: memref<2x128xf32, #tpu.memory_space<vmem>>) attributes {dimension_semantics = [], scalar_prefetch = 0 : i64, scratch_operands = 0 : i64, tpu.core_type = #tpu.core_type<tc>} {
    %c0 = arith.constant 0 : index
    %c0_0 = arith.constant 0 : index
    %0 = vector.load %arg0[%c0, %c0_0] : memref<16x8xf32, #tpu.memory_space<vmem>>, vector<16x8xf32>
    %c0_1 = arith.constant 0 : index
    %c0_2 = arith.constant 0 : index
    %1 = vector.load %arg2[%c0_1, %c0_2] : memref<8x32xf32, #tpu.memory_space<vmem>>, vector<8x32xf32>
    %cst = arith.constant dense<0.000000e+00> : vector<16x32xf32>
    %2 = tpu.matmul %0, %1, %cst {dimension_numbers = #tpu.dot_dimension_numbers<[1], [0], [0], [1], [0, 0, 1, 1], [], []>} : vector<16x8xf32>, vector<8x32xf32>, vector<16x32xf32> -> vector<16x32xf32>
    %c0_3 = arith.constant 0 : index
    %c0_4 = arith.constant 0 : index
    %3 = vector.load %arg1[%c0_3, %c0_4] : memref<128x8xf32, #tpu.memory_space<vmem>>, vector<128x8xf32>
    %c0_5 = arith.constant 0 : index
    %c0_6 = arith.constant 0 : index
    %4 = vector.load %arg3[%c0_5, %c0_6] : memref<8x32xf32, #tpu.memory_space<vmem>>, vector<8x32xf32>
    %cst_7 = arith.constant dense<0.000000e+00> : vector<128x32xf32>
    %5 = tpu.matmul %3, %4, %cst_7 {dimension_numbers = #tpu.dot_dimension_numbers<[1], [0], [0], [1], [0, 0, 1, 1], [], []>} : vector<128x8xf32>, vector<8x32xf32>, vector<128x32xf32> -> vector<128x32xf32>
    %6 = arith.truncf %2 : vector<16x32xf32> to vector<16x32xbf16>
    %7 = arith.truncf %5 : vector<128x32xf32> to vector<128x32xbf16>
    %c0_8 = arith.constant 0 : index
    %c0_9 = arith.constant 0 : index
    %c0_10 = arith.constant 0 : index
    %8 = vector.load %arg4[%c0_8, %c0_9, %c0_10] : memref<2x32x128xbf16, #tpu.memory_space<vmem>>, vector<1x32x128xbf16>
    %9 = vector.shape_cast %8 : vector<1x32x128xbf16> to vector<32x128xbf16>
    %cst_11 = arith.constant dense<0.000000e+00> : vector<16x128xf32>
    %10 = tpu.matmul %6, %9, %cst_11 {dimension_numbers = #tpu.dot_dimension_numbers<[1], [0], [0], [1], [0, 0, 1, 1], [], []>} : vector<16x32xbf16>, vector<32x128xbf16>, vector<16x128xf32> -> vector<16x128xf32>
    %c0_12 = arith.constant 0 : index
    %c0_13 = arith.constant 0 : index
    %c0_14 = arith.constant 0 : index
    %11 = vector.load %arg5[%c0_12, %c0_13, %c0_14] : memref<2x1x128xf32, #tpu.memory_space<vmem>>, vector<1x1x128xf32>
    %12 = vector.shape_cast %11 : vector<1x1x128xf32> to vector<1x128xf32>
    %13 = vector.broadcast %12 : vector<1x128xf32> to vector<16x128xf32>
    %14 = arith.addf %10, %13 : vector<16x128xf32>
    %15 = vector.extract_strided_slice %14 {offsets = [0, 0], sizes = [16, 32], strides = [1, 1]} : vector<16x128xf32> to vector<16x32xf32>
    %16 = vector.extract_strided_slice %14 {offsets = [0, 32], sizes = [16, 32], strides = [1, 1]} : vector<16x128xf32> to vector<16x32xf32>
    %17 = vector.extract_strided_slice %14 {offsets = [0, 64], sizes = [16, 32], strides = [1, 1]} : vector<16x128xf32> to vector<16x32xf32>
    %c0_15 = arith.constant 0 : index
    %c0_16 = arith.constant 0 : index
    %c0_17 = arith.constant 0 : index
    %18 = vector.load %arg6[%c0_15, %c0_16, %c0_17] : memref<2x32x32xbf16, #tpu.memory_space<vmem>>, vector<1x32x32xbf16>
    %19 = vector.shape_cast %18 : vector<1x32x32xbf16> to vector<32x32xbf16>
    %cst_18 = arith.constant dense<0.000000e+00> : vector<128x32xf32>
    %20 = tpu.matmul %7, %19, %cst_18 {dimension_numbers = #tpu.dot_dimension_numbers<[1], [0], [0], [1], [0, 0, 1, 1], [], []>} : vector<128x32xbf16>, vector<32x32xbf16>, vector<128x32xf32> -> vector<128x32xf32>
    %c0_19 = arith.constant 0 : index
    %c0_20 = arith.constant 0 : index
    %c0_21 = arith.constant 0 : index
    %21 = vector.load %arg7[%c0_19, %c0_20, %c0_21] : memref<2x1x32xf32, #tpu.memory_space<vmem>>, vector<1x1x32xf32>
    %22 = vector.shape_cast %21 : vector<1x1x32xf32> to vector<1x32xf32>
    %23 = vector.broadcast %22 : vector<1x32xf32> to vector<128x32xf32>
    %24 = arith.addf %20, %23 : vector<128x32xf32>
    %25 = vector.shape_cast %15 : vector<16x32xf32> to vector<2x8x32xf32>
    %26 = vector.shape_cast %17 : vector<16x32xf32> to vector<2x8x32xf32>
    %27 = vector.shape_cast %24 : vector<128x32xf32> to vector<2x8x8x32xf32>
    %28 = vector.shape_cast %25 : vector<2x8x32xf32> to vector<2x8x1x32xf32>
    %29 = vector.broadcast %28 : vector<2x8x1x32xf32> to vector<2x8x8x32xf32>
    %30 = arith.addf %27, %29 : vector<2x8x8x32xf32>
    %31 = vector.shape_cast %25 : vector<2x8x32xf32> to vector<2x1x8x32xf32>
    %32 = vector.broadcast %31 : vector<2x1x8x32xf32> to vector<2x8x8x32xf32>
    %33 = arith.addf %30, %32 : vector<2x8x8x32xf32>
    %34 = vector.extract_strided_slice %33 {offsets = [0, 0, 0, 0], sizes = [2, 8, 1, 32], strides = [1, 1, 1, 1]} : vector<2x8x8x32xf32> to vector<2x8x1x32xf32>
    %35 = vector.shape_cast %34 : vector<2x8x1x32xf32> to vector<2x8x32xf32>
    %36 = arith.negf %35 : vector<2x8x32xf32>
    %37 = math.exp %36 : vector<2x8x32xf32>
    %cst_22 = arith.constant 1.000000e+00 : f32
    %38 = vector.broadcast %cst_22 : f32 to vector<2x8x32xf32>
    %39 = arith.addf %38, %37 : vector<2x8x32xf32>
    %40 = arith.divf %38, %39 : vector<2x8x32xf32>
    %41 = vector.extract_strided_slice %26 {offsets = [0, 0, 0], sizes = [2, 1, 32], strides = [1, 1, 1]} : vector<2x8x32xf32> to vector<2x1x32xf32>
    %42 = vector.broadcast %41 : vector<2x1x32xf32> to vector<2x8x32xf32>
    %43 = arith.mulf %40, %42 : vector<2x8x32xf32>
    %44 = vector.extract_strided_slice %33 {offsets = [0, 0, 1, 0], sizes = [2, 8, 1, 32], strides = [1, 1, 1, 1]} : vector<2x8x8x32xf32> to vector<2x8x1x32xf32>
    %45 = vector.shape_cast %44 : vector<2x8x1x32xf32> to vector<2x8x32xf32>
    %46 = arith.negf %45 : vector<2x8x32xf32>
    %47 = math.exp %46 : vector<2x8x32xf32>
    %cst_23 = arith.constant 1.000000e+00 : f32
    %48 = vector.broadcast %cst_23 : f32 to vector<2x8x32xf32>
    %49 = arith.addf %48, %47 : vector<2x8x32xf32>
    %50 = arith.divf %48, %49 : vector<2x8x32xf32>
    %51 = vector.extract_strided_slice %26 {offsets = [0, 1, 0], sizes = [2, 1, 32], strides = [1, 1, 1]} : vector<2x8x32xf32> to vector<2x1x32xf32>
    %52 = vector.broadcast %51 : vector<2x1x32xf32> to vector<2x8x32xf32>
    %53 = arith.mulf %50, %52 : vector<2x8x32xf32>
    %54 = arith.addf %43, %53 : vector<2x8x32xf32>
    %55 = arith.addf %40, %50 : vector<2x8x32xf32>
    %56 = vector.extract_strided_slice %33 {offsets = [0, 0, 2, 0], sizes = [2, 8, 1, 32], strides = [1, 1, 1, 1]} : vector<2x8x8x32xf32> to vector<2x8x1x32xf32>
    %57 = vector.shape_cast %56 : vector<2x8x1x32xf32> to vector<2x8x32xf32>
    %58 = arith.negf %57 : vector<2x8x32xf32>
    %59 = math.exp %58 : vector<2x8x32xf32>
    %cst_24 = arith.constant 1.000000e+00 : f32
    %60 = vector.broadcast %cst_24 : f32 to vector<2x8x32xf32>
    %61 = arith.addf %60, %59 : vector<2x8x32xf32>
    %62 = arith.divf %60, %61 : vector<2x8x32xf32>
    %63 = vector.extract_strided_slice %26 {offsets = [0, 2, 0], sizes = [2, 1, 32], strides = [1, 1, 1]} : vector<2x8x32xf32> to vector<2x1x32xf32>
    %64 = vector.broadcast %63 : vector<2x1x32xf32> to vector<2x8x32xf32>
    %65 = arith.mulf %62, %64 : vector<2x8x32xf32>
    %66 = arith.addf %54, %65 : vector<2x8x32xf32>
    %67 = arith.addf %55, %62 : vector<2x8x32xf32>
    %68 = vector.extract_strided_slice %33 {offsets = [0, 0, 3, 0], sizes = [2, 8, 1, 32], strides = [1, 1, 1, 1]} : vector<2x8x8x32xf32> to vector<2x8x1x32xf32>
    %69 = vector.shape_cast %68 : vector<2x8x1x32xf32> to vector<2x8x32xf32>
    %70 = arith.negf %69 : vector<2x8x32xf32>
    %71 = math.exp %70 : vector<2x8x32xf32>
    %cst_25 = arith.constant 1.000000e+00 : f32
    %72 = vector.broadcast %cst_25 : f32 to vector<2x8x32xf32>
    %73 = arith.addf %72, %71 : vector<2x8x32xf32>
    %74 = arith.divf %72, %73 : vector<2x8x32xf32>
    %75 = vector.extract_strided_slice %26 {offsets = [0, 3, 0], sizes = [2, 1, 32], strides = [1, 1, 1]} : vector<2x8x32xf32> to vector<2x1x32xf32>
    %76 = vector.broadcast %75 : vector<2x1x32xf32> to vector<2x8x32xf32>
    %77 = arith.mulf %74, %76 : vector<2x8x32xf32>
    %78 = arith.addf %66, %77 : vector<2x8x32xf32>
    %79 = arith.addf %67, %74 : vector<2x8x32xf32>
    %80 = vector.extract_strided_slice %33 {offsets = [0, 0, 4, 0], sizes = [2, 8, 1, 32], strides = [1, 1, 1, 1]} : vector<2x8x8x32xf32> to vector<2x8x1x32xf32>
    %81 = vector.shape_cast %80 : vector<2x8x1x32xf32> to vector<2x8x32xf32>
    %82 = arith.negf %81 : vector<2x8x32xf32>
    %83 = math.exp %82 : vector<2x8x32xf32>
    %cst_26 = arith.constant 1.000000e+00 : f32
    %84 = vector.broadcast %cst_26 : f32 to vector<2x8x32xf32>
    %85 = arith.addf %84, %83 : vector<2x8x32xf32>
    %86 = arith.divf %84, %85 : vector<2x8x32xf32>
    %87 = vector.extract_strided_slice %26 {offsets = [0, 4, 0], sizes = [2, 1, 32], strides = [1, 1, 1]} : vector<2x8x32xf32> to vector<2x1x32xf32>
    %88 = vector.broadcast %87 : vector<2x1x32xf32> to vector<2x8x32xf32>
    %89 = arith.mulf %86, %88 : vector<2x8x32xf32>
    %90 = arith.addf %78, %89 : vector<2x8x32xf32>
    %91 = arith.addf %79, %86 : vector<2x8x32xf32>
    %92 = vector.extract_strided_slice %33 {offsets = [0, 0, 5, 0], sizes = [2, 8, 1, 32], strides = [1, 1, 1, 1]} : vector<2x8x8x32xf32> to vector<2x8x1x32xf32>
    %93 = vector.shape_cast %92 : vector<2x8x1x32xf32> to vector<2x8x32xf32>
    %94 = arith.negf %93 : vector<2x8x32xf32>
    %95 = math.exp %94 : vector<2x8x32xf32>
    %cst_27 = arith.constant 1.000000e+00 : f32
    %96 = vector.broadcast %cst_27 : f32 to vector<2x8x32xf32>
    %97 = arith.addf %96, %95 : vector<2x8x32xf32>
    %98 = arith.divf %96, %97 : vector<2x8x32xf32>
    %99 = vector.extract_strided_slice %26 {offsets = [0, 5, 0], sizes = [2, 1, 32], strides = [1, 1, 1]} : vector<2x8x32xf32> to vector<2x1x32xf32>
    %100 = vector.broadcast %99 : vector<2x1x32xf32> to vector<2x8x32xf32>
    %101 = arith.mulf %98, %100 : vector<2x8x32xf32>
    %102 = arith.addf %90, %101 : vector<2x8x32xf32>
    %103 = arith.addf %91, %98 : vector<2x8x32xf32>
    %104 = vector.extract_strided_slice %33 {offsets = [0, 0, 6, 0], sizes = [2, 8, 1, 32], strides = [1, 1, 1, 1]} : vector<2x8x8x32xf32> to vector<2x8x1x32xf32>
    %105 = vector.shape_cast %104 : vector<2x8x1x32xf32> to vector<2x8x32xf32>
    %106 = arith.negf %105 : vector<2x8x32xf32>
    %107 = math.exp %106 : vector<2x8x32xf32>
    %cst_28 = arith.constant 1.000000e+00 : f32
    %108 = vector.broadcast %cst_28 : f32 to vector<2x8x32xf32>
    %109 = arith.addf %108, %107 : vector<2x8x32xf32>
    %110 = arith.divf %108, %109 : vector<2x8x32xf32>
    %111 = vector.extract_strided_slice %26 {offsets = [0, 6, 0], sizes = [2, 1, 32], strides = [1, 1, 1]} : vector<2x8x32xf32> to vector<2x1x32xf32>
    %112 = vector.broadcast %111 : vector<2x1x32xf32> to vector<2x8x32xf32>
    %113 = arith.mulf %110, %112 : vector<2x8x32xf32>
    %114 = arith.addf %102, %113 : vector<2x8x32xf32>
    %115 = arith.addf %103, %110 : vector<2x8x32xf32>
    %116 = vector.extract_strided_slice %33 {offsets = [0, 0, 7, 0], sizes = [2, 8, 1, 32], strides = [1, 1, 1, 1]} : vector<2x8x8x32xf32> to vector<2x8x1x32xf32>
    %117 = vector.shape_cast %116 : vector<2x8x1x32xf32> to vector<2x8x32xf32>
    %118 = arith.negf %117 : vector<2x8x32xf32>
    %119 = math.exp %118 : vector<2x8x32xf32>
    %cst_29 = arith.constant 1.000000e+00 : f32
    %120 = vector.broadcast %cst_29 : f32 to vector<2x8x32xf32>
    %121 = arith.addf %120, %119 : vector<2x8x32xf32>
    %122 = arith.divf %120, %121 : vector<2x8x32xf32>
    %123 = vector.extract_strided_slice %26 {offsets = [0, 7, 0], sizes = [2, 1, 32], strides = [1, 1, 1]} : vector<2x8x32xf32> to vector<2x1x32xf32>
    %124 = vector.broadcast %123 : vector<2x1x32xf32> to vector<2x8x32xf32>
    %125 = arith.mulf %122, %124 : vector<2x8x32xf32>
    %126 = arith.addf %114, %125 : vector<2x8x32xf32>
    %127 = arith.addf %115, %122 : vector<2x8x32xf32>
    %cst_30 = arith.constant 9.99999968E-21 : f32
    %128 = vector.broadcast %cst_30 : f32 to vector<2x8x32xf32>
    %129 = arith.addf %128, %127 : vector<2x8x32xf32>
    %130 = arith.divf %126, %129 : vector<2x8x32xf32>
    %131 = vector.shape_cast %130 : vector<2x8x32xf32> to vector<16x32xf32>
    %132 = arith.addf %16, %131 : vector<16x32xf32>
    %133 = vector.shape_cast %33 : vector<2x8x8x32xf32> to vector<128x32xf32>
    %cst_31 = arith.constant dense<0.000000e+00> : vector<32xf32>
    %134 = vector.multi_reduction <add>, %133, %cst_31 [0] : vector<128x32xf32> to vector<32xf32>
    %135 = vector.shape_cast %134 : vector<32xf32> to vector<1x32xf32>
    %cst_32 = arith.constant 7.812500e-03 : f32
    %136 = vector.broadcast %cst_32 : f32 to vector<1x32xf32>
    %137 = arith.mulf %135, %136 : vector<1x32xf32>
    %138 = arith.mulf %133, %133 : vector<128x32xf32>
    %cst_33 = arith.constant dense<0.000000e+00> : vector<32xf32>
    %139 = vector.multi_reduction <add>, %138, %cst_33 [0] : vector<128x32xf32> to vector<32xf32>
    %140 = vector.shape_cast %139 : vector<32xf32> to vector<1x32xf32>
    %cst_34 = arith.constant 7.812500e-03 : f32
    %141 = vector.broadcast %cst_34 : f32 to vector<1x32xf32>
    %142 = arith.mulf %140, %141 : vector<1x32xf32>
    %143 = arith.mulf %137, %137 : vector<1x32xf32>
    %144 = arith.subf %142, %143 : vector<1x32xf32>
    %cst_35 = arith.constant 0.000000e+00 : f32
    %145 = vector.broadcast %cst_35 : f32 to vector<1x32xf32>
    %146 = arith.maximumf %144, %145 : vector<1x32xf32>
    %147 = vector.broadcast %137 : vector<1x32xf32> to vector<128x32xf32>
    %148 = arith.subf %133, %147 : vector<128x32xf32>
    %cst_36 = arith.constant 9.99999974E-6 : f32
    %149 = vector.broadcast %cst_36 : f32 to vector<1x32xf32>
    %150 = arith.addf %146, %149 : vector<1x32xf32>
    %151 = math.rsqrt %150 : vector<1x32xf32>
    %152 = vector.broadcast %151 : vector<1x32xf32> to vector<128x32xf32>
    %153 = arith.mulf %148, %152 : vector<128x32xf32>
    %cst_37 = arith.constant 0.000000e+00 : f32
    %154 = vector.broadcast %cst_37 : f32 to vector<128x32xf32>
    %155 = arith.maximumf %153, %154 : vector<128x32xf32>
    %156 = arith.addf %5, %155 : vector<128x32xf32>
    %cst_38 = arith.constant dense<0.000000e+00> : vector<32xf32>
    %157 = vector.multi_reduction <add>, %132, %cst_38 [0] : vector<16x32xf32> to vector<32xf32>
    %158 = vector.shape_cast %157 : vector<32xf32> to vector<1x32xf32>
    %cst_39 = arith.constant 6.250000e-02 : f32
    %159 = vector.broadcast %cst_39 : f32 to vector<1x32xf32>
    %160 = arith.mulf %158, %159 : vector<1x32xf32>
    %161 = arith.mulf %132, %132 : vector<16x32xf32>
    %cst_40 = arith.constant dense<0.000000e+00> : vector<32xf32>
    %162 = vector.multi_reduction <add>, %161, %cst_40 [0] : vector<16x32xf32> to vector<32xf32>
    %163 = vector.shape_cast %162 : vector<32xf32> to vector<1x32xf32>
    %cst_41 = arith.constant 6.250000e-02 : f32
    %164 = vector.broadcast %cst_41 : f32 to vector<1x32xf32>
    %165 = arith.mulf %163, %164 : vector<1x32xf32>
    %166 = arith.mulf %160, %160 : vector<1x32xf32>
    %167 = arith.subf %165, %166 : vector<1x32xf32>
    %cst_42 = arith.constant 0.000000e+00 : f32
    %168 = vector.broadcast %cst_42 : f32 to vector<1x32xf32>
    %169 = arith.maximumf %167, %168 : vector<1x32xf32>
    %170 = vector.broadcast %160 : vector<1x32xf32> to vector<16x32xf32>
    %171 = arith.subf %132, %170 : vector<16x32xf32>
    %cst_43 = arith.constant 9.99999974E-6 : f32
    %172 = vector.broadcast %cst_43 : f32 to vector<1x32xf32>
    %173 = arith.addf %169, %172 : vector<1x32xf32>
    %174 = math.rsqrt %173 : vector<1x32xf32>
    %175 = vector.broadcast %174 : vector<1x32xf32> to vector<16x32xf32>
    %176 = arith.mulf %171, %175 : vector<16x32xf32>
    %cst_44 = arith.constant 0.000000e+00 : f32
    %177 = vector.broadcast %cst_44 : f32 to vector<16x32xf32>
    %178 = arith.maximumf %176, %177 : vector<16x32xf32>
    %179 = arith.addf %2, %178 : vector<16x32xf32>
    %180 = arith.truncf %179 : vector<16x32xf32> to vector<16x32xbf16>
    %181 = arith.truncf %156 : vector<128x32xf32> to vector<128x32xbf16>
    %c1 = arith.constant 1 : index
    %c0_45 = arith.constant 0 : index
    %c0_46 = arith.constant 0 : index
    %182 = vector.load %arg4[%c1, %c0_45, %c0_46] : memref<2x32x128xbf16, #tpu.memory_space<vmem>>, vector<1x32x128xbf16>
    %183 = vector.shape_cast %182 : vector<1x32x128xbf16> to vector<32x128xbf16>
    %cst_47 = arith.constant dense<0.000000e+00> : vector<16x128xf32>
    %184 = tpu.matmul %180, %183, %cst_47 {dimension_numbers = #tpu.dot_dimension_numbers<[1], [0], [0], [1], [0, 0, 1, 1], [], []>} : vector<16x32xbf16>, vector<32x128xbf16>, vector<16x128xf32> -> vector<16x128xf32>
    %c1_48 = arith.constant 1 : index
    %c0_49 = arith.constant 0 : index
    %c0_50 = arith.constant 0 : index
    %185 = vector.load %arg5[%c1_48, %c0_49, %c0_50] : memref<2x1x128xf32, #tpu.memory_space<vmem>>, vector<1x1x128xf32>
    %186 = vector.shape_cast %185 : vector<1x1x128xf32> to vector<1x128xf32>
    %187 = vector.broadcast %186 : vector<1x128xf32> to vector<16x128xf32>
    %188 = arith.addf %184, %187 : vector<16x128xf32>
    %189 = vector.extract_strided_slice %188 {offsets = [0, 0], sizes = [16, 32], strides = [1, 1]} : vector<16x128xf32> to vector<16x32xf32>
    %190 = vector.extract_strided_slice %188 {offsets = [0, 32], sizes = [16, 32], strides = [1, 1]} : vector<16x128xf32> to vector<16x32xf32>
    %191 = vector.extract_strided_slice %188 {offsets = [0, 64], sizes = [16, 32], strides = [1, 1]} : vector<16x128xf32> to vector<16x32xf32>
    %c1_51 = arith.constant 1 : index
    %c0_52 = arith.constant 0 : index
    %c0_53 = arith.constant 0 : index
    %192 = vector.load %arg6[%c1_51, %c0_52, %c0_53] : memref<2x32x32xbf16, #tpu.memory_space<vmem>>, vector<1x32x32xbf16>
    %193 = vector.shape_cast %192 : vector<1x32x32xbf16> to vector<32x32xbf16>
    %cst_54 = arith.constant dense<0.000000e+00> : vector<128x32xf32>
    %194 = tpu.matmul %181, %193, %cst_54 {dimension_numbers = #tpu.dot_dimension_numbers<[1], [0], [0], [1], [0, 0, 1, 1], [], []>} : vector<128x32xbf16>, vector<32x32xbf16>, vector<128x32xf32> -> vector<128x32xf32>
    %c1_55 = arith.constant 1 : index
    %c0_56 = arith.constant 0 : index
    %c0_57 = arith.constant 0 : index
    %195 = vector.load %arg7[%c1_55, %c0_56, %c0_57] : memref<2x1x32xf32, #tpu.memory_space<vmem>>, vector<1x1x32xf32>
    %196 = vector.shape_cast %195 : vector<1x1x32xf32> to vector<1x32xf32>
    %197 = vector.broadcast %196 : vector<1x32xf32> to vector<128x32xf32>
    %198 = arith.addf %194, %197 : vector<128x32xf32>
    %199 = vector.shape_cast %189 : vector<16x32xf32> to vector<2x8x32xf32>
    %200 = vector.shape_cast %191 : vector<16x32xf32> to vector<2x8x32xf32>
    %201 = vector.shape_cast %198 : vector<128x32xf32> to vector<2x8x8x32xf32>
    %202 = vector.shape_cast %199 : vector<2x8x32xf32> to vector<2x8x1x32xf32>
    %203 = vector.broadcast %202 : vector<2x8x1x32xf32> to vector<2x8x8x32xf32>
    %204 = arith.addf %201, %203 : vector<2x8x8x32xf32>
    %205 = vector.shape_cast %199 : vector<2x8x32xf32> to vector<2x1x8x32xf32>
    %206 = vector.broadcast %205 : vector<2x1x8x32xf32> to vector<2x8x8x32xf32>
    %207 = arith.addf %204, %206 : vector<2x8x8x32xf32>
    %208 = vector.extract_strided_slice %207 {offsets = [0, 0, 0, 0], sizes = [2, 8, 1, 32], strides = [1, 1, 1, 1]} : vector<2x8x8x32xf32> to vector<2x8x1x32xf32>
    %209 = vector.shape_cast %208 : vector<2x8x1x32xf32> to vector<2x8x32xf32>
    %210 = arith.negf %209 : vector<2x8x32xf32>
    %211 = math.exp %210 : vector<2x8x32xf32>
    %cst_58 = arith.constant 1.000000e+00 : f32
    %212 = vector.broadcast %cst_58 : f32 to vector<2x8x32xf32>
    %213 = arith.addf %212, %211 : vector<2x8x32xf32>
    %214 = arith.divf %212, %213 : vector<2x8x32xf32>
    %215 = vector.extract_strided_slice %200 {offsets = [0, 0, 0], sizes = [2, 1, 32], strides = [1, 1, 1]} : vector<2x8x32xf32> to vector<2x1x32xf32>
    %216 = vector.broadcast %215 : vector<2x1x32xf32> to vector<2x8x32xf32>
    %217 = arith.mulf %214, %216 : vector<2x8x32xf32>
    %218 = vector.extract_strided_slice %207 {offsets = [0, 0, 1, 0], sizes = [2, 8, 1, 32], strides = [1, 1, 1, 1]} : vector<2x8x8x32xf32> to vector<2x8x1x32xf32>
    %219 = vector.shape_cast %218 : vector<2x8x1x32xf32> to vector<2x8x32xf32>
    %220 = arith.negf %219 : vector<2x8x32xf32>
    %221 = math.exp %220 : vector<2x8x32xf32>
    %cst_59 = arith.constant 1.000000e+00 : f32
    %222 = vector.broadcast %cst_59 : f32 to vector<2x8x32xf32>
    %223 = arith.addf %222, %221 : vector<2x8x32xf32>
    %224 = arith.divf %222, %223 : vector<2x8x32xf32>
    %225 = vector.extract_strided_slice %200 {offsets = [0, 1, 0], sizes = [2, 1, 32], strides = [1, 1, 1]} : vector<2x8x32xf32> to vector<2x1x32xf32>
    %226 = vector.broadcast %225 : vector<2x1x32xf32> to vector<2x8x32xf32>
    %227 = arith.mulf %224, %226 : vector<2x8x32xf32>
    %228 = arith.addf %217, %227 : vector<2x8x32xf32>
    %229 = arith.addf %214, %224 : vector<2x8x32xf32>
    %230 = vector.extract_strided_slice %207 {offsets = [0, 0, 2, 0], sizes = [2, 8, 1, 32], strides = [1, 1, 1, 1]} : vector<2x8x8x32xf32> to vector<2x8x1x32xf32>
    %231 = vector.shape_cast %230 : vector<2x8x1x32xf32> to vector<2x8x32xf32>
    %232 = arith.negf %231 : vector<2x8x32xf32>
    %233 = math.exp %232 : vector<2x8x32xf32>
    %cst_60 = arith.constant 1.000000e+00 : f32
    %234 = vector.broadcast %cst_60 : f32 to vector<2x8x32xf32>
    %235 = arith.addf %234, %233 : vector<2x8x32xf32>
    %236 = arith.divf %234, %235 : vector<2x8x32xf32>
    %237 = vector.extract_strided_slice %200 {offsets = [0, 2, 0], sizes = [2, 1, 32], strides = [1, 1, 1]} : vector<2x8x32xf32> to vector<2x1x32xf32>
    %238 = vector.broadcast %237 : vector<2x1x32xf32> to vector<2x8x32xf32>
    %239 = arith.mulf %236, %238 : vector<2x8x32xf32>
    %240 = arith.addf %228, %239 : vector<2x8x32xf32>
    %241 = arith.addf %229, %236 : vector<2x8x32xf32>
    %242 = vector.extract_strided_slice %207 {offsets = [0, 0, 3, 0], sizes = [2, 8, 1, 32], strides = [1, 1, 1, 1]} : vector<2x8x8x32xf32> to vector<2x8x1x32xf32>
    %243 = vector.shape_cast %242 : vector<2x8x1x32xf32> to vector<2x8x32xf32>
    %244 = arith.negf %243 : vector<2x8x32xf32>
    %245 = math.exp %244 : vector<2x8x32xf32>
    %cst_61 = arith.constant 1.000000e+00 : f32
    %246 = vector.broadcast %cst_61 : f32 to vector<2x8x32xf32>
    %247 = arith.addf %246, %245 : vector<2x8x32xf32>
    %248 = arith.divf %246, %247 : vector<2x8x32xf32>
    %249 = vector.extract_strided_slice %200 {offsets = [0, 3, 0], sizes = [2, 1, 32], strides = [1, 1, 1]} : vector<2x8x32xf32> to vector<2x1x32xf32>
    %250 = vector.broadcast %249 : vector<2x1x32xf32> to vector<2x8x32xf32>
    %251 = arith.mulf %248, %250 : vector<2x8x32xf32>
    %252 = arith.addf %240, %251 : vector<2x8x32xf32>
    %253 = arith.addf %241, %248 : vector<2x8x32xf32>
    %254 = vector.extract_strided_slice %207 {offsets = [0, 0, 4, 0], sizes = [2, 8, 1, 32], strides = [1, 1, 1, 1]} : vector<2x8x8x32xf32> to vector<2x8x1x32xf32>
    %255 = vector.shape_cast %254 : vector<2x8x1x32xf32> to vector<2x8x32xf32>
    %256 = arith.negf %255 : vector<2x8x32xf32>
    %257 = math.exp %256 : vector<2x8x32xf32>
    %cst_62 = arith.constant 1.000000e+00 : f32
    %258 = vector.broadcast %cst_62 : f32 to vector<2x8x32xf32>
    %259 = arith.addf %258, %257 : vector<2x8x32xf32>
    %260 = arith.divf %258, %259 : vector<2x8x32xf32>
    %261 = vector.extract_strided_slice %200 {offsets = [0, 4, 0], sizes = [2, 1, 32], strides = [1, 1, 1]} : vector<2x8x32xf32> to vector<2x1x32xf32>
    %262 = vector.broadcast %261 : vector<2x1x32xf32> to vector<2x8x32xf32>
    %263 = arith.mulf %260, %262 : vector<2x8x32xf32>
    %264 = arith.addf %252, %263 : vector<2x8x32xf32>
    %265 = arith.addf %253, %260 : vector<2x8x32xf32>
    %266 = vector.extract_strided_slice %207 {offsets = [0, 0, 5, 0], sizes = [2, 8, 1, 32], strides = [1, 1, 1, 1]} : vector<2x8x8x32xf32> to vector<2x8x1x32xf32>
    %267 = vector.shape_cast %266 : vector<2x8x1x32xf32> to vector<2x8x32xf32>
    %268 = arith.negf %267 : vector<2x8x32xf32>
    %269 = math.exp %268 : vector<2x8x32xf32>
    %cst_63 = arith.constant 1.000000e+00 : f32
    %270 = vector.broadcast %cst_63 : f32 to vector<2x8x32xf32>
    %271 = arith.addf %270, %269 : vector<2x8x32xf32>
    %272 = arith.divf %270, %271 : vector<2x8x32xf32>
    %273 = vector.extract_strided_slice %200 {offsets = [0, 5, 0], sizes = [2, 1, 32], strides = [1, 1, 1]} : vector<2x8x32xf32> to vector<2x1x32xf32>
    %274 = vector.broadcast %273 : vector<2x1x32xf32> to vector<2x8x32xf32>
    %275 = arith.mulf %272, %274 : vector<2x8x32xf32>
    %276 = arith.addf %264, %275 : vector<2x8x32xf32>
    %277 = arith.addf %265, %272 : vector<2x8x32xf32>
    %278 = vector.extract_strided_slice %207 {offsets = [0, 0, 6, 0], sizes = [2, 8, 1, 32], strides = [1, 1, 1, 1]} : vector<2x8x8x32xf32> to vector<2x8x1x32xf32>
    %279 = vector.shape_cast %278 : vector<2x8x1x32xf32> to vector<2x8x32xf32>
    %280 = arith.negf %279 : vector<2x8x32xf32>
    %281 = math.exp %280 : vector<2x8x32xf32>
    %cst_64 = arith.constant 1.000000e+00 : f32
    %282 = vector.broadcast %cst_64 : f32 to vector<2x8x32xf32>
    %283 = arith.addf %282, %281 : vector<2x8x32xf32>
    %284 = arith.divf %282, %283 : vector<2x8x32xf32>
    %285 = vector.extract_strided_slice %200 {offsets = [0, 6, 0], sizes = [2, 1, 32], strides = [1, 1, 1]} : vector<2x8x32xf32> to vector<2x1x32xf32>
    %286 = vector.broadcast %285 : vector<2x1x32xf32> to vector<2x8x32xf32>
    %287 = arith.mulf %284, %286 : vector<2x8x32xf32>
    %288 = arith.addf %276, %287 : vector<2x8x32xf32>
    %289 = arith.addf %277, %284 : vector<2x8x32xf32>
    %290 = vector.extract_strided_slice %207 {offsets = [0, 0, 7, 0], sizes = [2, 8, 1, 32], strides = [1, 1, 1, 1]} : vector<2x8x8x32xf32> to vector<2x8x1x32xf32>
    %291 = vector.shape_cast %290 : vector<2x8x1x32xf32> to vector<2x8x32xf32>
    %292 = arith.negf %291 : vector<2x8x32xf32>
    %293 = math.exp %292 : vector<2x8x32xf32>
    %cst_65 = arith.constant 1.000000e+00 : f32
    %294 = vector.broadcast %cst_65 : f32 to vector<2x8x32xf32>
    %295 = arith.addf %294, %293 : vector<2x8x32xf32>
    %296 = arith.divf %294, %295 : vector<2x8x32xf32>
    %297 = vector.extract_strided_slice %200 {offsets = [0, 7, 0], sizes = [2, 1, 32], strides = [1, 1, 1]} : vector<2x8x32xf32> to vector<2x1x32xf32>
    %298 = vector.broadcast %297 : vector<2x1x32xf32> to vector<2x8x32xf32>
    %299 = arith.mulf %296, %298 : vector<2x8x32xf32>
    %300 = arith.addf %288, %299 : vector<2x8x32xf32>
    %301 = arith.addf %289, %296 : vector<2x8x32xf32>
    %cst_66 = arith.constant 9.99999968E-21 : f32
    %302 = vector.broadcast %cst_66 : f32 to vector<2x8x32xf32>
    %303 = arith.addf %302, %301 : vector<2x8x32xf32>
    %304 = arith.divf %300, %303 : vector<2x8x32xf32>
    %305 = vector.shape_cast %304 : vector<2x8x32xf32> to vector<16x32xf32>
    %306 = arith.addf %190, %305 : vector<16x32xf32>
    %cst_67 = arith.constant dense<0.000000e+00> : vector<32xf32>
    %307 = vector.multi_reduction <add>, %306, %cst_67 [0] : vector<16x32xf32> to vector<32xf32>
    %308 = vector.shape_cast %307 : vector<32xf32> to vector<1x32xf32>
    %cst_68 = arith.constant 6.250000e-02 : f32
    %309 = vector.broadcast %cst_68 : f32 to vector<1x32xf32>
    %310 = arith.mulf %308, %309 : vector<1x32xf32>
    %311 = arith.mulf %306, %306 : vector<16x32xf32>
    %cst_69 = arith.constant dense<0.000000e+00> : vector<32xf32>
    %312 = vector.multi_reduction <add>, %311, %cst_69 [0] : vector<16x32xf32> to vector<32xf32>
    %313 = vector.shape_cast %312 : vector<32xf32> to vector<1x32xf32>
    %cst_70 = arith.constant 6.250000e-02 : f32
    %314 = vector.broadcast %cst_70 : f32 to vector<1x32xf32>
    %315 = arith.mulf %313, %314 : vector<1x32xf32>
    %316 = arith.mulf %310, %310 : vector<1x32xf32>
    %317 = arith.subf %315, %316 : vector<1x32xf32>
    %cst_71 = arith.constant 0.000000e+00 : f32
    %318 = vector.broadcast %cst_71 : f32 to vector<1x32xf32>
    %319 = arith.maximumf %317, %318 : vector<1x32xf32>
    %320 = vector.broadcast %310 : vector<1x32xf32> to vector<16x32xf32>
    %321 = arith.subf %306, %320 : vector<16x32xf32>
    %cst_72 = arith.constant 9.99999974E-6 : f32
    %322 = vector.broadcast %cst_72 : f32 to vector<1x32xf32>
    %323 = arith.addf %319, %322 : vector<1x32xf32>
    %324 = math.rsqrt %323 : vector<1x32xf32>
    %325 = vector.broadcast %324 : vector<1x32xf32> to vector<16x32xf32>
    %326 = arith.mulf %321, %325 : vector<16x32xf32>
    %cst_73 = arith.constant 0.000000e+00 : f32
    %327 = vector.broadcast %cst_73 : f32 to vector<16x32xf32>
    %328 = arith.maximumf %326, %327 : vector<16x32xf32>
    %329 = arith.addf %179, %328 : vector<16x32xf32>
    %330 = arith.truncf %329 : vector<16x32xf32> to vector<16x32xbf16>
    %c0_74 = arith.constant 0 : index
    %c0_75 = arith.constant 0 : index
    %331 = vector.load %arg8[%c0_74, %c0_75] : memref<32x128xbf16, #tpu.memory_space<vmem>>, vector<32x128xbf16>
    %cst_76 = arith.constant dense<0.000000e+00> : vector<16x128xf32>
    %332 = tpu.matmul %330, %331, %cst_76 {dimension_numbers = #tpu.dot_dimension_numbers<[1], [0], [0], [1], [0, 0, 1, 1], [], []>} : vector<16x32xbf16>, vector<32x128xbf16>, vector<16x128xf32> -> vector<16x128xf32>
    %c0_77 = arith.constant 0 : index
    %c0_78 = arith.constant 0 : index
    %333 = vector.load %arg9[%c0_77, %c0_78] : memref<1x128xf32, #tpu.memory_space<vmem>>, vector<1x128xf32>
    %334 = vector.broadcast %333 : vector<1x128xf32> to vector<16x128xf32>
    %335 = arith.addf %332, %334 : vector<16x128xf32>
    %cst_79 = arith.constant 0.000000e+00 : f32
    %336 = vector.broadcast %cst_79 : f32 to vector<16x128xf32>
    %337 = arith.maximumf %335, %336 : vector<16x128xf32>
    %c0_80 = arith.constant 0 : index
    %c0_81 = arith.constant 0 : index
    %338 = vector.load %arg10[%c0_80, %c0_81] : memref<1x128xf32, #tpu.memory_space<vmem>>, vector<1x128xf32>
    %339 = vector.broadcast %338 : vector<1x128xf32> to vector<16x128xf32>
    %340 = arith.mulf %337, %339 : vector<16x128xf32>
    %341 = vector.shape_cast %340 : vector<16x128xf32> to vector<2x8x128xf32>
    %cst_82 = arith.constant dense<0.000000e+00> : vector<2x128xf32>
    %342 = vector.multi_reduction <add>, %341, %cst_82 [1] : vector<2x8x128xf32> to vector<2x128xf32>
    %cst_83 = arith.constant dense<0.000000e+00> : vector<2xf32>
    %343 = vector.multi_reduction <add>, %342, %cst_83 [1] : vector<2x128xf32> to vector<2xf32>
    %344 = vector.shape_cast %343 : vector<2xf32> to vector<2x1xf32>
    %cst_84 = arith.constant 1.250000e-01 : f32
    %345 = vector.broadcast %cst_84 : f32 to vector<2x1xf32>
    %346 = arith.mulf %344, %345 : vector<2x1xf32>
    %c0_85 = arith.constant 0 : index
    %c0_86 = arith.constant 0 : index
    %347 = vector.load %arg11[%c0_85, %c0_86] : memref<1x1xf32, #tpu.memory_space<vmem>>, vector<1x1xf32>
    %348 = vector.broadcast %347 : vector<1x1xf32> to vector<2x1xf32>
    %349 = arith.addf %346, %348 : vector<2x1xf32>
    %350 = vector.shape_cast %349 : vector<2x1xf32> to vector<2x1xf32>
    %351 = vector.broadcast %350 : vector<2x1xf32> to vector<2x128xf32>
    %c0_87 = arith.constant 0 : index
    %c0_88 = arith.constant 0 : index
    %352 = vector.load %arg12[%c0_87, %c0_88] : memref<2x128xf32, #tpu.memory_space<vmem>>, vector<2x128xf32>
    tpu.vector_store %arg12[%c0_87, %c0_88], %351 {strides = array<i32>} : memref<2x128xf32, #tpu.memory_space<vmem>>, vector<2x128xf32>,
    return
  }
}

</mosaic_0001>

<llo_original>
// kernel: eq.1
$region0: #{eq.1}
  %s0 = inlined_call_operand.vmem [shape: s32[2,8,8], index: 0, kind: input, shape index: {}]
  %s1 = inlined_call_operand.vmem [shape: s32[128], index: 1, kind: output, shape index: {}]
  $region1: #{eq.1} parent=0
    #allocation0 [shape = 'u8[4096]{0}', space=vmem, size = 0x1000, scoped, tag = 'scoped mem for output reshape']
    %v2 = vld [vmem:[%s0] sm:$0x1]
    %vm3 = vcmask 64512
    %4 = vst.msk [vmem:[#allocation0] sm:$0x1] %vm3, %v2
    %s5 = scalar_lea.vmem %s0, 15
    %v6 = vld [vmem:[%s5] sm:$0x1]
    %7 = vrot.lane.b32.xlu0 %v6, 120
    %v8 = vpop.permute.xlu0 %7
    %vm9 = vcmask 1048512
    %10 = vst.msk [vmem:[#allocation0] sm:$0x1] %vm9, %v8
    %s11 = scalar_lea.vmem %s0, 14
    %v12 = vld [vmem:[%s11] sm:$0x1]
    %13 = vrot.lane.b32.xlu0 %v12, 112
    %v14 = vpop.permute.xlu0 %13
    %vm15 = vcmask 982912
    %16 = vst.msk [vmem:[#allocation0] sm:$0x1] %vm15, %v14
    %s17 = scalar_lea.vmem %s0, 13
    %v18 = vld [vmem:[%s17] sm:$0x1]
    %19 = vrot.lane.b32.xlu0 %v18, 104
    %v20 = vpop.permute.xlu0 %19
    %vm21 = vcmask 917312
    %22 = vst.msk [vmem:[#allocation0] sm:$0x1] %vm21, %v20
    %s23 = scalar_lea.vmem %s0, 12
    %v24 = vld [vmem:[%s23] sm:$0x1]
    %25 = vrot.lane.b32.xlu0 %v24, 96
    %v26 = vpop.permute.xlu0 %25
    %vm27 = vcmask 851712
    %28 = vst.msk [vmem:[#allocation0] sm:$0x1] %vm27, %v26
    %s29 = scalar_lea.vmem %s0, 11
    %v30 = vld [vmem:[%s29] sm:$0x1]
    %31 = vrot.lane.b32.xlu0 %v30, 88
    %v32 = vpop.permute.xlu0 %31
    %vm33 = vcmask 786112
    %34 = vst.msk [vmem:[#allocation0] sm:$0x1] %vm33, %v32
    %s35 = scalar_lea.vmem %s0, 10
    %v36 = vld [vmem:[%s35] sm:$0x1]
    %37 = vrot.lane.b32.xlu0 %v36, 80
    %v38 = vpop.permute.xlu0 %37
    %vm39 = vcmask 720512
    %40 = vst.msk [vmem:[#allocation0] sm:$0x1] %vm39, %v38
    %s41 = scalar_lea.vmem %s0, 9
    %v42 = vld [vmem:[%s41] sm:$0x1]
    %43 = vrot.lane.b32.xlu0 %v42, 72
    %v44 = vpop.permute.xlu0 %43
    %vm45 = vcmask 654912
    %46 = vst.msk [vmem:[#allocation0] sm:$0x1] %vm45, %v44
    %s47 = scalar_lea.vmem %s0, 8
    %v48 = vld [vmem:[%s47] sm:$0x1]
    %49 = vrot.lane.b32.xlu0 %v48, 64
    %v50 = vpop.permute.xlu0 %49
    %vm51 = vcmask 589312
    %52 = vst.msk [vmem:[#allocation0] sm:$0x1] %vm51, %v50
    %s53 = scalar_lea.vmem %s0, 7
    %v54 = vld [vmem:[%s53] sm:$0x1]
    %55 = vrot.lane.b32.xlu0 %v54, 56
    %v56 = vpop.permute.xlu0 %55
    %vm57 = vcmask 523712
    %58 = vst.msk [vmem:[#allocation0] sm:$0x1] %vm57, %v56
    %s59 = scalar_lea.vmem %s0, 6
    %v60 = vld [vmem:[%s59] sm:$0x1]
    %61 = vrot.lane.b32.xlu0 %v60, 48
    %v62 = vpop.permute.xlu0 %61
    %vm63 = vcmask 458112
    %64 = vst.msk [vmem:[#allocation0] sm:$0x1] %vm63, %v62
    %s65 = scalar_lea.vmem %s0, 5
    %v66 = vld [vmem:[%s65] sm:$0x1]
    %67 = vrot.lane.b32.xlu0 %v66, 40
    %v68 = vpop.permute.xlu0 %67
    %vm69 = vcmask 392512
    %70 = vst.msk [vmem:[#allocation0] sm:$0x1] %vm69, %v68
    %s71 = scalar_lea.vmem %s0, 4
    %v72 = vld [vmem:[%s71] sm:$0x1]
    %73 = vrot.lane.b32.xlu0 %v72, 32
    %v74 = vpop.permute.xlu0 %73
    %vm75 = vcmask 326912
    %76 = vst.msk [vmem:[#allocation0] sm:$0x1] %vm75, %v74
    %s77 = scalar_lea.vmem %s0, 3
    %v78 = vld [vmem:[%s77] sm:$0x1]
    %79 = vrot.lane.b32.xlu0 %v78, 24
    %v80 = vpop.permute.xlu0 %79
    %vm81 = vcmask 261312
    %82 = vst.msk [vmem:[#allocation0] sm:$0x1] %vm81, %v80
    %s83 = scalar_lea.vmem %s0, 2
    %v84 = vld [vmem:[%s83] sm:$0x1]
    %85 = vrot.lane.b32.xlu0 %v84, 16
    %v86 = vpop.permute.xlu0 %85
    %vm87 = vcmask 195712
    %88 = vst.msk [vmem:[#allocation0] sm:$0x1] %vm87, %v86
    %s89 = scalar_lea.vmem %s0, 1
    %v90 = vld [vmem:[%s89] sm:$0x1]
    %91 = vrot.lane.b32.xlu0 %v90, 8
    %v92 = vpop.permute.xlu0 %91
    %vm93 = vcmask 130112
    %94 = vst.msk [vmem:[#allocation0] sm:$0x1] %vm93, %v92
    %s96 = sshllo.u32 0, 1
    %v98 = vld [vmem:[#allocation0] sm:%s96]
    %s99 = sshllo.u32 0, 1
    %100 = vst [vmem:[%s1] sm:%s99] %v98

// kernel: tsp_rgcn_value_net.1
$region0: #{tsp_rgcn_value_net.1}
  #allocation0 [shape = 'u32[]', space=smem, size = 0x4, offset = 0x4, fixed_abs, tag = 'smem constant byte address 0x4 - core index']
  #allocation1 [shape = 'u32[144,128]{1,0:T(1,128)}', space=vmem, size = 0x12000, scoped, tag = 'internal scratch']
  #allocation2 [shape = 'f32[1,1]{1,0:T(1,128)S(1)}', space=vmem, size = 0x200, scoped, tag = 'scoped memory for tsp_rgcn_value_net.1']
  %s0 = inlined_call_operand.hbm [shape: f32[16,8], index: 0, kind: input, shape index: {}]
  %s1 = inlined_call_operand.hbm [shape: f32[128,8], index: 1, kind: input, shape index: {}]
  %s2 = inlined_call_operand.hbm [shape: f32[8,32], index: 2, kind: input, shape index: {}]
  %s3 = inlined_call_operand.hbm [shape: f32[8,32], index: 3, kind: input, shape index: {}]
  %s4 = inlined_call_operand.hbm [shape: bf16[2,32,128], index: 4, kind: input, shape index: {}]
  %s5 = inlined_call_operand.hbm [shape: f32[2,1,128], index: 5, kind: input, shape index: {}]
  %s6 = inlined_call_operand.hbm [shape: bf16[2,32,32], index: 6, kind: input, shape index: {}]
  %s7 = inlined_call_operand.hbm [shape: f32[2,1,32], index: 7, kind: input, shape index: {}]
  %s8 = inlined_call_operand.hbm [shape: bf16[32,128], index: 8, kind: input, shape index: {}]
  %s9 = inlined_call_operand.hbm [shape: f32[1,128], index: 9, kind: input, shape index: {}]
  %s10 = inlined_call_operand.hbm [shape: f32[1,128], index: 10, kind: input, shape index: {}]
  %s11 = inlined_call_operand.<no memory space> [shape: f32[1,1], index: 11, kind: input, shape index: {}]
  %s12 = inlined_call_operand.hbm [shape: f32[2,128], index: 12, kind: output, shape index: {}]
  %s13 = sld [smem:[#allocation0]]
  $region102: #{tsp_rgcn_value_net.1} parent=0
    _
  %s15 = ssub.s32 1, %s13
  %s16 = scalar_select 0, %s15, %s13
  %v17 = vstv %s11
  %18 = vst [vmem:[#allocation2] sm:$0x1] %v17
  $region1: #{tsp_rgcn_value_net.1} parent=0
    #allocation3 [shape = 'u8[8192]{0}', space=vmem, size = 0x2000, scoped, tag = 'input window, operand 0, single buffered']
    #allocation4 [shape = 's32[1]{0}', space=sflag, size = 0x4, scoped, tag = 'scoped memory for tsp_rgcn_value_net.1']
    #allocation5 [shape = 's32[1]{0}', space=sflag, size = 0x4, scoped, tag = 'scoped memory for tsp_rgcn_value_net.1']
    #allocation6 [shape = 'u8[65536]{0}', space=vmem, size = 0x10000, scoped, tag = 'input window, operand 1, single buffered']
    #allocation7 [shape = 's32[1]{0}', space=sflag, size = 0x4, scoped, tag = 'scoped memory for tsp_rgcn_value_net.1']
    #allocation8 [shape = 'u8[4096]{0}', space=vmem, size = 0x1000, scoped, tag = 'input window, operand 2, single buffered']
    #allocation9 [shape = 'u8[4096]{0}', space=vmem, size = 0x1000, scoped, tag = 'input window, operand 3, single buffered']
    #allocation10 [shape = 's32[1]{0}', space=sflag, size = 0x4, scoped, tag = 'scoped memory for tsp_rgcn_value_net.1']
    #allocation11 [shape = 'u8[16384]{0}', space=vmem, size = 0x4000, scoped, tag = 'input window, operand 4, single buffered']
    #allocation12 [shape = 'u8[1024]{0}', space=vmem, size = 0x400, scoped, tag = 'input window, operand 5, single buffered']
    #allocation13 [shape = 's32[1]{0}', space=sflag, size = 0x4, scoped, tag = 'scoped memory for tsp_rgcn_value_net.1']
    #allocation14 [shape = 'u8[16384]{0}', space=vmem, size = 0x4000, scoped, tag = 'input window, operand 6, single buffered']
    #allocation15 [shape = 'u8[1024]{0}', space=vmem, size = 0x400, scoped, tag = 'input window, operand 7, single buffered']
    #allocation16 [shape = 's32[1]{0}', space=sflag, size = 0x4, scoped, tag = 'scoped memory for tsp_rgcn_value_net.1']
    #allocation17 [shape = 'u8[8192]{0}', space=vmem, size = 0x2000, scoped, tag = 'input window, operand 8, single buffered']
    #allocation18 [shape = 'u8[512]{0}', space=vmem, size = 0x400, scoped, tag = 'input window, operand 9, single buffered']
    #allocation19 [shape = 's32[1]{0}', space=sflag, size = 0x4, scoped, tag = 'scoped memory for tsp_rgcn_value_net.1']
    #allocation20 [shape = 'u8[512]{0}', space=vmem, size = 0x400, scoped, tag = 'input window, operand 10, single buffered']
    #allocation21 [shape = 'u8[1024]{0}', space=vmem, size = 0x400, scoped, tag = 'output window, operand 0, single buffered']
    %19 = vsyncpa [#allocation4], 0
    %20 = vsyncpa [#allocation7], 0
    %21 = vsyncpa [#allocation10], 0
    %22 = vsyncpa [#allocation13], 0
    %23 = vsyncpa [#allocation16], 0
    %24 = vsyncpa [#allocation19], 0
    %25 = vsyncpa [#allocation5], 0
    // Predicated region
    $region2: #{tsp_rgcn_value_net.1} parent=1 // pred_check
      _
    $region3: #{tsp_rgcn_value_net.1} parent=1 // pred_check_branch
      %27 = sbr.rel (0) target = $region5
    $region4: #{tsp_rgcn_value_net.1} parent=1 // pred_region
      %s29 = ssub.s32 256, 256
      %30 = vsyncadd [#allocation4], %s29
      %s31 = sshll.u32 [#allocation3], 4
      %s32 = int_to_ptr.vmem [resolvable:$true] %s31
      %37 = dma.hbm_to_vmem [thread:$0]  %s0, 256, %s32, [#allocation4], 128, 128, 8
    $region5: #{tsp_rgcn_value_net.1} parent=1 // pred_fallthru
      _
    // Predicated region
    $region6: #{tsp_rgcn_value_net.1} parent=1 // pred_check
      _
    $region7: #{tsp_rgcn_value_net.1} parent=1 // pred_check_branch
      %39 = sbr.rel (0) target = $region9
    $region8: #{tsp_rgcn_value_net.1} parent=1 // pred_region
      %s41 = ssub.s32 2048, 2048
      %42 = vsyncadd [#allocation7], %s41
      %s43 = sshll.u32 [#allocation6], 4
      %s44 = int_to_ptr.vmem [resolvable:$true] %s43
      %49 = dma.hbm_to_vmem [thread:$0]  %s1, 2048, %s44, [#allocation7], 128, 128, 8
    $region9: #{tsp_rgcn_value_net.1} parent=1 // pred_fallthru
      _
    // Predicated region
    $region10: #{tsp_rgcn_value_net.1} parent=1 // pred_check
      _
    $region11: #{tsp_rgcn_value_net.1} parent=1 // pred_check_branch
      %51 = sbr.rel (0) target = $region13
    $region12: #{tsp_rgcn_value_net.1} parent=1 // pred_region
      %s53 = ssub.s32 128, 128
      %54 = vsyncadd [#allocation7], %s53
      %s56 = sshll.u32 [#allocation8], 4
      %s57 = int_to_ptr.vmem [resolvable:$true] %s56
      %59 = dma.hbm_to_vmem [thread:$0]  %s2, 128, %s57, [#allocation7]
    $region13: #{tsp_rgcn_value_net.1} parent=1 // pred_fallthru
      _
    // Predicated region
    $region14: #{tsp_rgcn_value_net.1} parent=1 // pred_check
      _
    $region15: #{tsp_rgcn_value_net.1} parent=1 // pred_check_branch
      %61 = sbr.rel (0) target = $region17
    $region16: #{tsp_rgcn_value_net.1} parent=1 // pred_region
      %s63 = ssub.s32 128, 128
      %64 = vsyncadd [#allocation10], %s63
      %s66 = sshll.u32 [#allocation9], 4
      %s67 = int_to_ptr.vmem [resolvable:$true] %s66
      %69 = dma.hbm_to_vmem [thread:$0]  %s3, 128, %s67, [#allocation10]
    $region17: #{tsp_rgcn_value_net.1} parent=1 // pred_fallthru
      _
    // Predicated region
    $region18: #{tsp_rgcn_value_net.1} parent=1 // pred_check
      _
    $region19: #{tsp_rgcn_value_net.1} parent=1 // pred_check_branch
      %71 = sbr.rel (0) target = $region21
    $region20: #{tsp_rgcn_value_net.1} parent=1 // pred_region
      %s73 = ssub.s32 512, 512
      %74 = vsyncadd [#allocation10], %s73
      %s75 = sshll.u32 [#allocation11], 4
      %s76 = int_to_ptr.vmem [resolvable:$true] %s75
      %81 = dma.hbm_to_vmem [thread:$0]  %s4, 512, %s76, [#allocation10], 64, 64, 4
    $region21: #{tsp_rgcn_value_net.1} parent=1 // pred_fallthru
      _
    // Predicated region
    $region22: #{tsp_rgcn_value_net.1} parent=1 // pred_check
      _
    $region23: #{tsp_rgcn_value_net.1} parent=1 // pred_check_branch
      %83 = sbr.rel (0) target = $region25
    $region24: #{tsp_rgcn_value_net.1} parent=1 // pred_region
      %s85 = ssub.s32 32, 32
      %86 = vsyncadd [#allocation13], %s85
      %s87 = sshll.u32 [#allocation12], 4
      %s88 = int_to_ptr.vmem [resolvable:$true] %s87
      %93 = dma.hbm_to_vmem [thread:$0]  %s5, 32, %s88, [#allocation13], 16, 16, 1
    $region25: #{tsp_rgcn_value_net.1} parent=1 // pred_fallthru
      _
    // Predicated region
    $region26: #{tsp_rgcn_value_net.1} parent=1 // pred_check
      _
    $region27: #{tsp_rgcn_value_net.1} parent=1 // pred_check_branch
      %95 = sbr.rel (0) target = $region29
    $region28: #{tsp_rgcn_value_net.1} parent=1 // pred_region
      %s97 = ssub.s32 512, 512
      %98 = vsyncadd [#allocation13], %s97
      %s99 = sshll.u32 [#allocation14], 4
      %s100 = int_to_ptr.vmem [resolvable:$true] %s99
      %105 = dma.hbm_to_vmem [thread:$0]  %s6, 512, %s100, [#allocation13], 64, 64, 4
    $region29: #{tsp_rgcn_value_net.1} parent=1 // pred_fallthru
      _
    // Predicated region
    $region30: #{tsp_rgcn_value_net.1} parent=1 // pred_check
      _
    $region31: #{tsp_rgcn_value_net.1} parent=1 // pred_check_branch
      %107 = sbr.rel (0) target = $region33
    $region32: #{tsp_rgcn_value_net.1} parent=1 // pred_region
      %s109 = ssub.s32 32, 32
      %110 = vsyncadd [#allocation16], %s109
      %s111 = sshll.u32 [#allocation15], 4
      %s112 = int_to_ptr.vmem [resolvable:$true] %s111
      %117 = dma.hbm_to_vmem [thread:$0]  %s7, 32, %s112, [#allocation16], 16, 16, 1
    $region33: #{tsp_rgcn_value_net.1} parent=1 // pred_fallthru
      _
    // Predicated region
    $region34: #{tsp_rgcn_value_net.1} parent=1 // pred_check
      _
    $region35: #{tsp_rgcn_value_net.1} parent=1 // pred_check_branch
      %119 = sbr.rel (0) target = $region37
    $region36: #{tsp_rgcn_value_net.1} parent=1 // pred_region
      %s121 = ssub.s32 256, 256
      %122 = vsyncadd [#allocation16], %s121
      %s123 = sshll.u32 [#allocation17], 4
      %s124 = int_to_ptr.vmem [resolvable:$true] %s123
      %129 = dma.hbm_to_vmem [thread:$0]  %s8, 256, %s124, [#allocation16], 64, 64, 4
    $region37: #{tsp_rgcn_value_net.1} parent=1 // pred_fallthru
      _
    // Predicated region
    $region38: #{tsp_rgcn_value_net.1} parent=1 // pred_check
      _
    $region39: #{tsp_rgcn_value_net.1} parent=1 // pred_check_branch
      %131 = sbr.rel (0) target = $region41
    $region40: #{tsp_rgcn_value_net.1} parent=1 // pred_region
      %s133 = ssub.s32 16, 16
      %134 = vsyncadd [#allocation19], %s133
      %s136 = sshll.u32 [#allocation18], 4
      %s137 = int_to_ptr.vmem [resolvable:$true] %s136
      %139 = dma.hbm_to_vmem [thread:$0]  %s9, 16, %s137, [#allocation19]
    $region41: #{tsp_rgcn_value_net.1} parent=1 // pred_fallthru
      _
    // Predicated region
    $region42: #{tsp_rgcn_value_net.1} parent=1 // pred_check
      _
    $region43: #{tsp_rgcn_value_net.1} parent=1 // pred_check_branch
      %141 = sbr.rel (0) target = $region45
    $region44: #{tsp_rgcn_value_net.1} parent=1 // pred_region
      %s143 = ssub.s32 16, 16
      %144 = vsyncadd [#allocation19], %s143
      %s146 = sshll.u32 [#allocation20], 4
      %s147 = int_to_ptr.vmem [resolvable:$true] %s146
      %149 = dma.hbm_to_vmem [thread:$0]  %s10, 16, %s147, [#allocation19]
    $region45: #{tsp_rgcn_value_net.1} parent=1 // pred_fallthru
      _
    // Predicated region
    $region46: #{tsp_rgcn_value_net.1} parent=1 // pred_check
      _
    $region47: #{tsp_rgcn_value_net.1} parent=1 // pred_check_branch
      %151 = sbr.rel (0) target = $region49
    $region48: #{tsp_rgcn_value_net.1} parent=1 // pred_region
      _
    $region49: #{tsp_rgcn_value_net.1} parent=1 // pred_fallthru
      _
    // Predicated region
    $region50: #{tsp_rgcn_value_net.1} parent=1 // pred_check
      _
    $region51: #{tsp_rgcn_value_net.1} parent=1 // pred_check_branch
      %153 = sbr.rel (0) target = $region53
    $region52: #{tsp_rgcn_value_net.1} parent=1 // pred_region
      %154 = dma.done [#allocation4], 256
    $region53: #{tsp_rgcn_value_net.1} parent=1 // pred_fallthru
      _
    // Predicated region
    $region54: #{tsp_rgcn_value_net.1} parent=1 // pred_check
      _
    $region55: #{tsp_rgcn_value_net.1} parent=1 // pred_check_branch
      %156 = sbr.rel (0) target = $region57
    $region56: #{tsp_rgcn_value_net.1} parent=1 // pred_region
      %157 = dma.done [#allocation7], 2048
    $region57: #{tsp_rgcn_value_net.1} parent=1 // pred_fallthru
      _
    // Predicated region
    $region58: #{tsp_rgcn_value_net.1} parent=1 // pred_check
      _
    $region59: #{tsp_rgcn_value_net.1} parent=1 // pred_check_branch
      %159 = sbr.rel (0) target = $region61
    $region60: #{tsp_rgcn_value_net.1} parent=1 // pred_region
      %160 = dma.done [#allocation7], 128
    $region61: #{tsp_rgcn_value_net.1} parent=1 // pred_fallthru
      _
    // Predicated region
    $region62: #{tsp_rgcn_value_net.1} parent=1 // pred_check
      _
    $region63: #{tsp_rgcn_value_net.1} parent=1 // pred_check_branch
      %162 = sbr.rel (0) target = $region65
    $region64: #{tsp_rgcn_value_net.1} parent=1 // pred_region
      %163 = dma.done [#allocation10], 128
    $region65: #{tsp_rgcn_value_net.1} parent=1 // pred_fallthru
      _
    // Predicated region
    $region66: #{tsp_rgcn_value_net.1} parent=1 // pred_check
      _
    $region67: #{tsp_rgcn_value_net.1} parent=1 // pred_check_branch
      %165 = sbr.rel (0) target = $region69
    $region68: #{tsp_rgcn_value_net.1} parent=1 // pred_region
      %166 = dma.done [#allocation10], 512
    $region69: #{tsp_rgcn_value_net.1} parent=1 // pred_fallthru
      _
    // Predicated region
    $region70: #{tsp_rgcn_value_net.1} parent=1 // pred_check
      _
    $region71: #{tsp_rgcn_value_net.1} parent=1 // pred_check_branch
      %168 = sbr.rel (0) target = $region73
    $region72: #{tsp_rgcn_value_net.1} parent=1 // pred_region
      %169 = dma.done [#allocation13], 32
    $region73: #{tsp_rgcn_value_net.1} parent=1 // pred_fallthru
      _
    // Predicated region
    $region74: #{tsp_rgcn_value_net.1} parent=1 // pred_check
      _
    $region75: #{tsp_rgcn_value_net.1} parent=1 // pred_check_branch
      %171 = sbr.rel (0) target = $region77
    $region76: #{tsp_rgcn_value_net.1} parent=1 // pred_region
      %172 = dma.done [#allocation13], 512
    $region77: #{tsp_rgcn_value_net.1} parent=1 // pred_fallthru
      _
    // Predicated region
    $region78: #{tsp_rgcn_value_net.1} parent=1 // pred_check
      _
    $region79: #{tsp_rgcn_value_net.1} parent=1 // pred_check_branch
      %174 = sbr.rel (0) target = $region81
    $region80: #{tsp_rgcn_value_net.1} parent=1 // pred_region
      %175 = dma.done [#allocation16], 32
    $region81: #{tsp_rgcn_value_net.1} parent=1 // pred_fallthru
      _
    // Predicated region
    $region82: #{tsp_rgcn_value_net.1} parent=1 // pred_check
      _
    $region83: #{tsp_rgcn_value_net.1} parent=1 // pred_check_branch
      %177 = sbr.rel (0) target = $region85
    $region84: #{tsp_rgcn_value_net.1} parent=1 // pred_region
      %178 = dma.done [#allocation16], 256
    $region85: #{tsp_rgcn_value_net.1} parent=1 // pred_fallthru
      _
    // Predicated region
    $region86: #{tsp_rgcn_value_net.1} parent=1 // pred_check
      _
    $region87: #{tsp_rgcn_value_net.1} parent=1 // pred_check_branch
      %180 = sbr.rel (0) target = $region89
    $region88: #{tsp_rgcn_value_net.1} parent=1 // pred_region
      %181 = dma.done [#allocation19], 16
    $region89: #{tsp_rgcn_value_net.1} parent=1 // pred_fallthru
      _
    // Predicated region
    $region90: #{tsp_rgcn_value_net.1} parent=1 // pred_check
      _
    $region91: #{tsp_rgcn_value_net.1} parent=1 // pred_check_branch
      %183 = sbr.rel (0) target = $region93
    $region92: #{tsp_rgcn_value_net.1} parent=1 // pred_region
      %184 = dma.done [#allocation19], 16
    $region93: #{tsp_rgcn_value_net.1} parent=1 // pred_fallthru
      _
    %v186 = vld [vmem:[#allocation3] sm:$0xff]
    %v187 = vld [vmem:[#allocation3 + $0x8] sm:$0xff]
    %v188 = vld [vmem:[#allocation8] sm:$0xff]
    %vm189 = vcmask 64512
    %v191 = vsel %vm189, %v186, 0
    %v194 = vsel %vm189, %v187, 0
    %196 = vmatprep.subr.mxu0 0.0
    %197 = vmatpush1.msra.mxu0 %v188
    %198 = vmatprep.subr.mxu0 0.0
    %199 = vmatpush1.msra.mxu0 0.0
    %200 = vmatprep.subr.mxu0 0.0
    %201 = vmatpush1.msra.mxu0 0.0
    %202 = vmatprep.subr.mxu0 0.0
    %203 = vmatpush1.msra.mxu0 0.0
    %204 = vmatprep.subr.mxu0 0.0
    %205 = vmatpush1.msra.mxu0 0.0
    %206 = vmatprep.subr.mxu0 0.0
    %207 = vmatpush1.msra.mxu0 0.0
    %208 = vmatprep.subr.mxu0 0.0
    %209 = vmatpush1.msra.mxu0 0.0
    %210 = vmatprep.subr.mxu0 0.0
    %211 = vmatpush1.msra.mxu0 0.0
    %212 = vmatprep.subr.mxu0 0.0
    %213 = vmatpush1.msra.mxu0 0.0
    %214 = vmatprep.subr.mxu0 0.0
    %215 = vmatpush1.msra.mxu0 0.0
    %216 = vmatprep.subr.mxu0 0.0
    %217 = vmatpush1.msra.mxu0 0.0
    %218 = vmatprep.subr.mxu0 0.0
    %219 = vmatpush1.msra.mxu0 0.0
    %220 = vmatprep.subr.mxu0 0.0
    %221 = vmatpush1.msra.mxu0 0.0
    %222 = vmatprep.subr.mxu0 0.0
    %223 = vmatpush1.msra.mxu0 0.0
    %224 = vmatprep.subr.mxu0 0.0
    %225 = vmatpush1.msra.mxu0 0.0
    %226 = vmatprep.subr.mxu0 0.0
    %227 = vmatpush1.msra.mxu0 0.0
    %228 = vmatprep.subr.mxu0 0.0
    %229 = vmatpush1.msra.mxu0 0.0
    %230 = vmatprep.subr.mxu0 0.0
    %231 = vmatpush1.msra.mxu0 0.0
    %232 = vmatprep.subr.mxu0 0.0
    %233 = vmatpush1.msra.mxu0 0.0
    %234 = vmatprep.subr.mxu0 0.0
    %235 = vmatpush1.msra.mxu0 0.0
    %236 = vmatprep.subr.mxu0 0.0
    %237 = vmatpush1.msra.mxu0 0.0
    %238 = vmatprep.subr.mxu0 0.0
    %239 = vmatpush1.msra.mxu0 0.0
    %240 = vmatprep.subr.mxu0 0.0
    %241 = vmatpush1.msra.mxu0 0.0
    %242 = vmatprep.subr.mxu0 0.0
    %243 = vmatpush1.msra.mxu0 0.0
    %244 = vmatprep.subr.mxu0 0.0
    %245 = vmatpush1.msra.mxu0 0.0
    %246 = vmatprep.subr.mxu0 0.0
    %247 = vmatpush1.msra.mxu0 0.0
    %248 = vmatprep.subr.mxu0 0.0
    %249 = vmatpush1.msra.mxu0 0.0
    %250 = vmatprep.subr.mxu0 0.0
    %251 = vmatpush1.msra.mxu0 0.0
    %252 = vmatprep.subr.mxu0 0.0
    %253 = vmatpush1.msra.mxu0 0.0
    %254 = vmatprep.subr.mxu0 0.0
    %255 = vmatpush1.msra.mxu0 0.0
    %256 = vmatprep.subr.mxu0 0.0
    %257 = vmatpush1.msra.mxu0 0.0
    %258 = vmatprep.subr.mxu0 0.0
    %259 = vmatpush1.msra.mxu0 0.0
    %260 = vmatprep.mubr.f32.mxu0 0.0
    %261 = vmatmul.mubr.f32.gmra.mrb[0].mxu0 %v191
    %v262 = vpop.f32.mrb[0].mxu0
    %v263 = vadd.f32 0.0, %v262
    %v264 = vpop.f32.mrb[0].mxu0
    %265 = vmatprep.mubr.f32.mxu0 0.0
    %266 = vmatmul.mubr.f32.gmra.mrb[0].mxu0 %v194
    %v267 = vpop.f32.mrb[0].mxu0
    %v268 = vadd.f32 0.0, %v267
    %v269 = vpop.f32.mrb[0].mxu0
    %270 = vdwg.mxu0
    %v271 = vld [vmem:[#allocation6] sm:$0xff]
    %v272 = vld [vmem:[#allocation6 + $0x8] sm:$0xff]
    %v273 = vld [vmem:[#allocation6 + $0x10] sm:$0xff]
    %v274 = vld [vmem:[#allocation6 + $0x18] sm:$0xff]
    %v275 = vld [vmem:[#allocation6 + $0x20] sm:$0xff]
    %v276 = vld [vmem:[#allocation6 + $0x28] sm:$0xff]
    %v277 = vld [vmem:[#allocation6 + $0x30] sm:$0xff]
    %v278 = vld [vmem:[#allocation6 + $0x38] sm:$0xff]
    %v279 = vld [vmem:[#allocation6 + $0x40] sm:$0xff]
    %v280 = vld [vmem:[#allocation6 + $0x48] sm:$0xff]
    %v281 = vld [vmem:[#allocation6 + $0x50] sm:$0xff]
    %v282 = vld [vmem:[#allocation6 + $0x58] sm:$0xff]
    %v283 = vld [vmem:[#allocation6 + $0x60] sm:$0xff]
    %v284 = vld [vmem:[#allocation6 + $0x68] sm:$0xff]
    %v285 = vld [vmem:[#allocation6 + $0x70] sm:$0xff]
    %v286 = vld [vmem:[#allocation6 + $0x78] sm:$0xff]
    %v287 = vld [vmem:[#allocation9] sm:$0xff]
    %v289 = vsel %vm189, %v271, 0
    %v292 = vsel %vm189, %v272, 0
    %v295 = vsel %vm189, %v273, 0
    %v298 = vsel %vm189, %v274, 0
    %v301 = vsel %vm189, %v275, 0
    %v304 = vsel %vm189, %v276, 0
    %v307 = vsel %vm189, %v277, 0
    %v310 = vsel %vm189, %v278, 0
    %v313 = vsel %vm189, %v279, 0
    %v316 = vsel %vm189, %v280, 0
    %v319 = vsel %vm189, %v281, 0
    %v322 = vsel %vm189, %v282, 0
    %v325 = vsel %vm189, %v283, 0
    %v328 = vsel %vm189, %v284, 0
    %v331 = vsel %vm189, %v285, 0
    %v334 = vsel %vm189, %v286, 0
    %336 = vmatprep.subr.mxu0 0.0
    %337 = vmatpush1.msra.mxu0 %v287
    %338 = vmatprep.subr.mxu0 0.0
    %339 = vmatpush1.msra.mxu0 0.0
    %340 = vmatprep.subr.mxu0 0.0
    %341 = vmatpush1.msra.mxu0 0.0
    %342 = vmatprep.subr.mxu0 0.0
    %343 = vmatpush1.msra.mxu0 0.0
    %344 = vmatprep.subr.mxu0 0.0
    %345 = vmatpush1.msra.mxu0 0.0
    %346 = vmatprep.subr.mxu0 0.0
    %347 = vmatpush1.msra.mxu0 0.0
    %348 = vmatprep.subr.mxu0 0.0
    %349 = vmatpush1.msra.mxu0 0.0
    %350 = vmatprep.subr.mxu0 0.0
    %351 = vmatpush1.msra.mxu0 0.0
    %352 = vmatprep.subr.mxu0 0.0
    %353 = vmatpush1.msra.mxu0 0.0
    %354 = vmatprep.subr.mxu0 0.0
    %355 = vmatpush1.msra.mxu0 0.0
    %356 = vmatprep.subr.mxu0 0.0
    %357 = vmatpush1.msra.mxu0 0.0
    %358 = vmatprep.subr.mxu0 0.0
    %359 = vmatpush1.msra.mxu0 0.0
    %360 = vmatprep.subr.mxu0 0.0
    %361 = vmatpush1.msra.mxu0 0.0
    %362 = vmatprep.subr.mxu0 0.0
    %363 = vmatpush1.msra.mxu0 0.0
    %364 = vmatprep.subr.mxu0 0.0
    %365 = vmatpush1.msra.mxu0 0.0
    %366 = vmatprep.subr.mxu0 0.0
    %367 = vmatpush1.msra.mxu0 0.0
    %368 = vmatprep.subr.mxu0 0.0
    %369 = vmatpush1.msra.mxu0 0.0
    %370 = vmatprep.subr.mxu0 0.0
    %371 = vmatpush1.msra.mxu0 0.0
    %372 = vmatprep.subr.mxu0 0.0
    %373 = vmatpush1.msra.mxu0 0.0
    %374 = vmatprep.subr.mxu0 0.0
    %375 = vmatpush1.msra.mxu0 0.0
    %376 = vmatprep.subr.mxu0 0.0
    %377 = vmatpush1.msra.mxu0 0.0
    %378 = vmatprep.subr.mxu0 0.0
    %379 = vmatpush1.msra.mxu0 0.0
    %380 = vmatprep.subr.mxu0 0.0
    %381 = vmatpush1.msra.mxu0 0.0
    %382 = vmatprep.subr.mxu0 0.0
    %383 = vmatpush1.msra.mxu0 0.0
    %384 = vmatprep.subr.mxu0 0.0
    %385 = vmatpush1.msra.mxu0 0.0
    %386 = vmatprep.subr.mxu0 0.0
    %387 = vmatpush1.msra.mxu0 0.0
    %388 = vmatprep.subr.mxu0 0.0
    %389 = vmatpush1.msra.mxu0 0.0
    %390 = vmatprep.subr.mxu0 0.0
    %391 = vmatpush1.msra.mxu0 0.0
    %392 = vmatprep.subr.mxu0 0.0
    %393 = vmatpush1.msra.mxu0 0.0
    %394 = vmatprep.subr.mxu0 0.0
    %395 = vmatpush1.msra.mxu0 0.0
    %396 = vmatprep.subr.mxu0 0.0
    %397 = vmatpush1.msra.mxu0 0.0
    %398 = vmatprep.subr.mxu0 0.0
    %399 = vmatpush1.msra.mxu0 0.0
    %400 = vmatprep.mubr.f32.mxu0 0.0
    %401 = vmatmul.mubr.f32.gmra.mrb[0].mxu0 %v289
    %v402 = vpop.f32.mrb[0].mxu0
    %v403 = vadd.f32 0.0, %v402
    %v404 = vpop.f32.mrb[0].mxu0
    %405 = vmatprep.mubr.f32.mxu0 0.0
    %406 = vmatmul.mubr.f32.gmra.mrb[0].mxu0 %v292
    %v407 = vpop.f32.mrb[0].mxu0
    %v408 = vadd.f32 0.0, %v407
    %v409 = vpop.f32.mrb[0].mxu0
    %410 = vmatprep.mubr.f32.mxu0 0.0
    %411 = vmatmul.mubr.f32.gmra.mrb[0].mxu0 %v295
    %v412 = vpop.f32.mrb[0].mxu0
    %v413 = vadd.f32 0.0, %v412
    %v414 = vpop.f32.mrb[0].mxu0
    %415 = vmatprep.mubr.f32.mxu0 0.0
    %416 = vmatmul.mubr.f32.gmra.mrb[0].mxu0 %v298
    %v417 = vpop.f32.mrb[0].mxu0
    %v418 = vadd.f32 0.0, %v417
    %v419 = vpop.f32.mrb[0].mxu0
    %420 = vmatprep.mubr.f32.mxu0 0.0
    %421 = vmatmul.mubr.f32.gmra.mrb[0].mxu0 %v301
    %v422 = vpop.f32.mrb[0].mxu0
    %v423 = vadd.f32 0.0, %v422
    %v424 = vpop.f32.mrb[0].mxu0
    %425 = vmatprep.mubr.f32.mxu0 0.0
    %426 = vmatmul.mubr.f32.gmra.mrb[0].mxu0 %v304
    %v427 = vpop.f32.mrb[0].mxu0
    %v428 = vadd.f32 0.0, %v427
    %v429 = vpop.f32.mrb[0].mxu0
    %430 = vmatprep.mubr.f32.mxu0 0.0
    %431 = vmatmul.mubr.f32.gmra.mrb[0].mxu0 %v307
    %v432 = vpop.f32.mrb[0].mxu0
    %v433 = vadd.f32 0.0, %v432
    %v434 = vpop.f32.mrb[0].mxu0
    %435 = vmatprep.mubr.f32.mxu0 0.0
    %436 = vmatmul.mubr.f32.gmra.mrb[0].mxu0 %v310
    %v437 = vpop.f32.mrb[0].mxu0
    %v438 = vadd.f32 0.0, %v437
    %v439 = vpop.f32.mrb[0].mxu0
    %440 = vmatprep.mubr.f32.mxu0 0.0
    %441 = vmatmul.mubr.f32.gmra.mrb[0].mxu0 %v313
    %v442 = vpop.f32.mrb[0].mxu0
    %v443 = vadd.f32 0.0, %v442
    %v444 = vpop.f32.mrb[0].mxu0
    %445 = vmatprep.mubr.f32.mxu0 0.0
    %446 = vmatmul.mubr.f32.gmra.mrb[0].mxu0 %v316
    %v447 = vpop.f32.mrb[0].mxu0
    %v448 = vadd.f32 0.0, %v447
    %v449 = vpop.f32.mrb[0].mxu0
    %450 = vmatprep.mubr.f32.mxu0 0.0
    %451 = vmatmul.mubr.f32.gmra.mrb[0].mxu0 %v319
    %v452 = vpop.f32.mrb[0].mxu0
    %v453 = vadd.f32 0.0, %v452
    %v454 = vpop.f32.mrb[0].mxu0
    %455 = vmatprep.mubr.f32.mxu0 0.0
    %456 = vmatmul.mubr.f32.gmra.mrb[0].mxu0 %v322
    %v457 = vpop.f32.mrb[0].mxu0
    %v458 = vadd.f32 0.0, %v457
    %v459 = vpop.f32.mrb[0].mxu0
    %460 = vmatprep.mubr.f32.mxu0 0.0
    %461 = vmatmul.mubr.f32.gmra.mrb[0].mxu0 %v325
    %v462 = vpop.f32.mrb[0].mxu0
    %v463 = vadd.f32 0.0, %v462
    %v464 = vpop.f32.mrb[0].mxu0
    %465 = vmatprep.mubr.f32.mxu0 0.0
    %466 = vmatmul.mubr.f32.gmra.mrb[0].mxu0 %v328
    %v467 = vpop.f32.mrb[0].mxu0
    %v468 = vadd.f32 0.0, %v467
    %v469 = vpop.f32.mrb[0].mxu0
    %470 = vmatprep.mubr.f32.mxu0 0.0
    %471 = vmatmul.mubr.f32.gmra.mrb[0].mxu0 %v331
    %v472 = vpop.f32.mrb[0].mxu0
    %v473 = vadd.f32 0.0, %v472
    %v474 = vpop.f32.mrb[0].mxu0
    %475 = vmatprep.mubr.f32.mxu0 0.0
    %476 = vmatmul.mubr.f32.gmra.mrb[0].mxu0 %v334
    %v477 = vpop.f32.mrb[0].mxu0
    %v478 = vadd.f32 0.0, %v477
    %v479 = vpop.f32.mrb[0].mxu0
    %480 = vdwg.mxu0
    %v481 = vpack.c.bf16 %v268, %v263
    %v482 = vpack.c.bf16 %v408, %v403
    %v483 = vpack.c.bf16 %v418, %v413
    %v484 = vpack.c.bf16 %v428, %v423
    %v485 = vpack.c.bf16 %v438, %v433
    %v486 = vpack.c.bf16 %v448, %v443
    %v487 = vpack.c.bf16 %v458, %v453
    %v488 = vpack.c.bf16 %v468, %v463
    %v489 = vpack.c.bf16 %v478, %v473
    %v490 = vld [vmem:[#allocation11] sm:$0xf]
    %v491 = vld [vmem:[#allocation11 + $0x4] sm:$0xf]
    %v492 = vld [vmem:[#allocation11 + $0x8] sm:$0xf]
    %v493 = vld [vmem:[#allocation11 + $0xc] sm:$0xf]
    %v494 = vld [vmem:[#allocation12] sm:$0x1]
    %v496 = vlaneseq
    %v497 = vshrl.u32 %v496, 7
    %v498 = vsub.s32 0, %v497
    %v499 = vrot.slane %v494, %v498
    %v505 = vunpack.c.l.b16 %v490
    %v506 = vunpack.c.l.b16 %v491
    %v507 = vunpack.c.l.b16 %v492
    %v508 = vunpack.c.l.b16 %v493
    %v509 = vpack.c.b16 %v506, %v505
    %v510 = vpack.c.b16 %v508, %v507
    %vm513 = vcmask 261120
    %v515 = vsel %vm513, %v481, 0
    %517 = vmatprep.subr.bf16.mxu0 0
    %518 = vmatpush1.bf16.msra.mxu0 %v509
    %519 = vmatprep.subr.bf16.mxu0 0
    %520 = vmatpush1.bf16.msra.mxu0 %v510
    %521 = vmatprep.subr.bf16.mxu0 0
    %522 = vmatpush1.bf16.msra.mxu0 0
    %523 = vmatprep.subr.bf16.mxu0 0
    %524 = vmatpush1.bf16.msra.mxu0 0
    %525 = vmatprep.subr.bf16.mxu0 0
    %526 = vmatpush1.bf16.msra.mxu0 0
    %527 = vmatprep.subr.bf16.mxu0 0
    %528 = vmatpush1.bf16.msra.mxu0 0
    %529 = vmatprep.subr.bf16.mxu0 0
    %530 = vmatpush1.bf16.msra.mxu0 0
    %531 = vmatprep.subr.bf16.mxu0 0
    %532 = vmatpush1.bf16.msra.mxu0 0
    %533 = vmatprep.subr.bf16.mxu0 0
    %534 = vmatpush1.bf16.msra.mxu0 0
    %535 = vmatprep.subr.bf16.mxu0 0
    %536 = vmatpush1.bf16.msra.mxu0 0
    %537 = vmatprep.subr.bf16.mxu0 0
    %538 = vmatpush1.bf16.msra.mxu0 0
    %539 = vmatprep.subr.bf16.mxu0 0
    %540 = vmatpush1.bf16.msra.mxu0 0
    %541 = vmatprep.subr.bf16.mxu0 0
    %542 = vmatpush1.bf16.msra.mxu0 0
    %543 = vmatprep.subr.bf16.mxu0 0
    %544 = vmatpush1.bf16.msra.mxu0 0
    %545 = vmatprep.subr.bf16.mxu0 0
    %546 = vmatpush1.bf16.msra.mxu0 0
    %547 = vmatprep.subr.bf16.mxu0 0
    %548 = vmatpush1.bf16.msra.mxu0 0
    %549 = vmatprep.mubr.bf16.mxu0 0
    %550 = vmatmul.mubr.bf16.gmra.mrb[0].mxu0 %v515
    %v551 = vpop.f32.mrb[0].mxu0
    %v552 = vadd.f32 %v499, %v551
    %v553 = vpop.f32.mrb[0].mxu0
    %v554 = vpop.f32.mrb[0].mxu0
    %v555 = vadd.f32 %v499, %v554
    %v556 = vpop.f32.mrb[0].mxu0
    %557 = vdwg.mxu0
    %v558 = vld [vmem:[#allocation14] sm:$0xf]
    %v559 = vld [vmem:[#allocation14 + $0x4] sm:$0xf]
    %v560 = vld [vmem:[#allocation14 + $0x8] sm:$0xf]
    %v561 = vld [vmem:[#allocation14 + $0xc] sm:$0xf]
    %v562 = vld [vmem:[#allocation15] sm:$0x1]
    %v564 = vlaneseq
    %v565 = vshrl.u32 %v564, 7
    %v566 = vsub.s32 0, %v565
    %v567 = vrot.slane %v562, %v566
    %v573 = vunpack.c.l.b16 %v558
    %v574 = vunpack.c.l.b16 %v559
    %v575 = vunpack.c.l.b16 %v560
    %v576 = vunpack.c.l.b16 %v561
    %v577 = vpack.c.b16 %v574, %v573
    %v578 = vpack.c.b16 %v576, %v575
    %v582 = vsel %vm513, %v482, 0
    %v585 = vsel %vm513, %v483, 0
    %v588 = vsel %vm513, %v484, 0
    %v591 = vsel %vm513, %v485, 0
    %v594 = vsel %vm513, %v486, 0
    %v597 = vsel %vm513, %v487, 0
    %v600 = vsel %vm513, %v488, 0
    %v603 = vsel %vm513, %v489, 0
    %605 = vmatprep.subr.bf16.mxu0 0
    %606 = vmatpush1.bf16.msra.mxu0 %v577
    %607 = vmatprep.subr.bf16.mxu0 0
    %608 = vmatpush1.bf16.msra.mxu0 %v578
    %609 = vmatprep.subr.bf16.mxu0 0
    %610 = vmatpush1.bf16.msra.mxu0 0
    %611 = vmatprep.subr.bf16.mxu0 0
    %612 = vmatpush1.bf16.msra.mxu0 0
    %613 = vmatprep.subr.bf16.mxu0 0
    %614 = vmatpush1.bf16.msra.mxu0 0
    %615 = vmatprep.subr.bf16.mxu0 0
    %616 = vmatpush1.bf16.msra.mxu0 0
    %617 = vmatprep.subr.bf16.mxu0 0
    %618 = vmatpush1.bf16.msra.mxu0 0
    %619 = vmatprep.subr.bf16.mxu0 0
    %620 = vmatpush1.bf16.msra.mxu0 0
    %621 = vmatprep.subr.bf16.mxu0 0
    %622 = vmatpush1.bf16.msra.mxu0 0
    %623 = vmatprep.subr.bf16.mxu0 0
    %624 = vmatpush1.bf16.msra.mxu0 0
    %625 = vmatprep.subr.bf16.mxu0 0
    %626 = vmatpush1.bf16.msra.mxu0 0
    %627 = vmatprep.subr.bf16.mxu0 0
    %628 = vmatpush1.bf16.msra.mxu0 0
    %629 = vmatprep.subr.bf16.mxu0 0
    %630 = vmatpush1.bf16.msra.mxu0 0
    %631 = vmatprep.subr.bf16.mxu0 0
    %632 = vmatpush1.bf16.msra.mxu0 0
    %633 = vmatprep.subr.bf16.mxu0 0
    %634 = vmatpush1.bf16.msra.mxu0 0
    %635 = vmatprep.subr.bf16.mxu0 0
    %636 = vmatpush1.bf16.msra.mxu0 0
    %637 = vmatprep.mubr.bf16.mxu0 0
    %638 = vmatmul.mubr.bf16.gmra.mrb[0].mxu0 %v582
    %v639 = vpop.f32.mrb[0].mxu0
    %v640 = vadd.f32 %v567, %v639
    %v641 = vpop.f32.mrb[0].mxu0
    %v642 = vpop.f32.mrb[0].mxu0
    %v643 = vadd.f32 %v567, %v642
    %v644 = vpop.f32.mrb[0].mxu0
    %645 = vmatprep.mubr.bf16.mxu0 0
    %646 = vmatmul.mubr.bf16.gmra.mrb[0].mxu0 %v585
    %v647 = vpop.f32.mrb[0].mxu0
    %v648 = vadd.f32 %v567, %v647
    %v649 = vpop.f32.mrb[0].mxu0
    %v650 = vpop.f32.mrb[0].mxu0
    %v651 = vadd.f32 %v567, %v650
    %v652 = vpop.f32.mrb[0].mxu0
    %653 = vmatprep.mubr.bf16.mxu0 0
    %654 = vmatmul.mubr.bf16.gmra.mrb[0].mxu0 %v588
    %v655 = vpop.f32.mrb[0].mxu0
    %v656 = vadd.f32 %v567, %v655
    %v657 = vpop.f32.mrb[0].mxu0
    %v658 = vpop.f32.mrb[0].mxu0
    %v659 = vadd.f32 %v567, %v658
    %v660 = vpop.f32.mrb[0].mxu0
    %661 = vmatprep.mubr.bf16.mxu0 0
    %662 = vmatmul.mubr.bf16.gmra.mrb[0].mxu0 %v591
    %v663 = vpop.f32.mrb[0].mxu0
    %v664 = vadd.f32 %v567, %v663
    %v665 = vpop.f32.mrb[0].mxu0
    %v666 = vpop.f32.mrb[0].mxu0
    %v667 = vadd.f32 %v567, %v666
    %v668 = vpop.f32.mrb[0].mxu0
    %669 = vmatprep.mubr.bf16.mxu0 0
    %670 = vmatmul.mubr.bf16.gmra.mrb[0].mxu0 %v594
    %v671 = vpop.f32.mrb[0].mxu0
    %v672 = vadd.f32 %v567, %v671
    %v673 = vpop.f32.mrb[0].mxu0
    %v674 = vpop.f32.mrb[0].mxu0
    %v675 = vadd.f32 %v567, %v674
    %v676 = vpop.f32.mrb[0].mxu0
    %677 = vmatprep.mubr.bf16.mxu0 0
    %678 = vmatmul.mubr.bf16.gmra.mrb[0].mxu0 %v597
    %v679 = vpop.f32.mrb[0].mxu0
    %v680 = vadd.f32 %v567, %v679
    %v681 = vpop.f32.mrb[0].mxu0
    %v682 = vpop.f32.mrb[0].mxu0
    %v683 = vadd.f32 %v567, %v682
    %v684 = vpop.f32.mrb[0].mxu0
    %685 = vmatprep.mubr.bf16.mxu0 0
    %686 = vmatmul.mubr.bf16.gmra.mrb[0].mxu0 %v600
    %v687 = vpop.f32.mrb[0].mxu0
    %v688 = vadd.f32 %v567, %v687
    %v689 = vpop.f32.mrb[0].mxu0
    %v690 = vpop.f32.mrb[0].mxu0
    %v691 = vadd.f32 %v567, %v690
    %v692 = vpop.f32.mrb[0].mxu0
    %693 = vmatprep.mubr.bf16.mxu0 0
    %694 = vmatmul.mubr.bf16.gmra.mrb[0].mxu0 %v603
    %v695 = vpop.f32.mrb[0].mxu0
    %v696 = vadd.f32 %v567, %v695
    %v697 = vpop.f32.mrb[0].mxu0
    %v698 = vpop.f32.mrb[0].mxu0
    %v699 = vadd.f32 %v567, %v698
    %v700 = vpop.f32.mrb[0].mxu0
    %701 = vdwg.mxu0
    %v704 = vcombine.high %v552, %v552
    %v706 = vunpack.c.l.s4 1966171168
    %v707 = vunpack.c.0.s8 %v706
    %v708 = vlaneseq
    %v709 = vshrl.u32 %v708, 7
    %v710 = vsub.s32 %v707, %v709
    %v711 = vrot.slane %v552, %v710
    %v713 = vunpack.c.l.s4 1966171168
    %v714 = vunpack.c.0.s8 %v713
    %v715 = vlaneseq
    %v716 = vshrl.u32 %v715, 7
    %v717 = vsub.s32 %v714, %v716
    %v718 = vrot.slane %v704, %v717
    %v719 = vcombine.high %v711, %v711
    %v720 = vcombine.high %v718, %v718
    %v722 = vunpack.c.l.s4 1966171168
    %v723 = vunpack.c.0.s8 %v722
    %v724 = vlaneseq
    %v725 = vshrl.u32 %v724, 7
    %v726 = vsub.s32 %v723, %v725
    %v727 = vrot.slane %v711, %v726
    %v729 = vunpack.c.l.s4 1966171168
    %v730 = vunpack.c.0.s8 %v729
    %v731 = vlaneseq
    %v732 = vshrl.u32 %v731, 7
    %v733 = vsub.s32 %v730, %v732
    %v734 = vrot.slane %v718, %v733
    %v736 = vunpack.c.l.s4 1966171168
    %v737 = vunpack.c.0.s8 %v736
    %v738 = vlaneseq
    %v739 = vshrl.u32 %v738, 7
    %v740 = vsub.s32 %v737, %v739
    %v741 = vrot.slane %v719, %v740
    %v743 = vunpack.c.l.s4 1966171168
    %v744 = vunpack.c.0.s8 %v743
    %v745 = vlaneseq
    %v746 = vshrl.u32 %v745, 7
    %v747 = vsub.s32 %v744, %v746
    %v748 = vrot.slane %v720, %v747
    %v749 = vcombine.high %v727, %v727
    %v750 = vcombine.high %v734, %v734
    %v751 = vcombine.high %v741, %v741
    %v752 = vcombine.high %v748, %v748
    %v753 = vcombine.high %v555, %v555
    %v755 = vunpack.c.l.s4 1966171168
    %v756 = vunpack.c.0.s8 %v755
    %v757 = vlaneseq
    %v758 = vshrl.u32 %v757, 7
    %v759 = vsub.s32 %v756, %v758
    %v760 = vrot.slane %v555, %v759
    %v762 = vunpack.c.l.s4 1966171168
    %v763 = vunpack.c.0.s8 %v762
    %v764 = vlaneseq
    %v765 = vshrl.u32 %v764, 7
    %v766 = vsub.s32 %v763, %v765
    %v767 = vrot.slane %v753, %v766
    %v768 = vcombine.high %v760, %v760
    %v769 = vcombine.high %v767, %v767
    %v771 = vunpack.c.l.s4 1966171168
    %v772 = vunpack.c.0.s8 %v771
    %v773 = vlaneseq
    %v774 = vshrl.u32 %v773, 7
    %v775 = vsub.s32 %v772, %v774
    %v776 = vrot.slane %v760, %v775
    %v778 = vunpack.c.l.s4 1966171168
    %v779 = vunpack.c.0.s8 %v778
    %v780 = vlaneseq
    %v781 = vshrl.u32 %v780, 7
    %v782 = vsub.s32 %v779, %v781
    %v783 = vrot.slane %v767, %v782
    %v785 = vunpack.c.l.s4 1966171168
    %v786 = vunpack.c.0.s8 %v785
    %v787 = vlaneseq
    %v788 = vshrl.u32 %v787, 7
    %v789 = vsub.s32 %v786, %v788
    %v790 = vrot.slane %v768, %v789
    %v792 = vunpack.c.l.s4 1966171168
    %v793 = vunpack.c.0.s8 %v792
    %v794 = vlaneseq
    %v795 = vshrl.u32 %v794, 7
    %v796 = vsub.s32 %v793, %v795
    %v797 = vrot.slane %v769, %v796
    %v798 = vcombine.high %v776, %v776
    %v799 = vcombine.high %v783, %v783
    %v800 = vcombine.high %v790, %v790
    %v801 = vcombine.high %v797, %v797
    %v802 = vlaneseq
    %v803 = vshrl.u32 %v802, 7
    %v804 = vsub.s32 0, %v803
    %v805 = vrot.slane %v727, %v804
    %v806 = vlaneseq
    %v807 = vshrl.u32 %v806, 7
    %v808 = vsub.s32 0, %v807
    %v809 = vrot.slane %v741, %v808
    %v810 = vlaneseq
    %v811 = vshrl.u32 %v810, 7
    %v812 = vsub.s32 0, %v811
    %v813 = vrot.slane %v749, %v812
    %v814 = vlaneseq
    %v815 = vshrl.u32 %v814, 7
    %v816 = vsub.s32 0, %v815
    %v817 = vrot.slane %v751, %v816
    %v818 = vlaneseq
    %v819 = vshrl.u32 %v818, 7
    %v820 = vsub.s32 0, %v819
    %v821 = vrot.slane %v734, %v820
    %v822 = vlaneseq
    %v823 = vshrl.u32 %v822, 7
    %v824 = vsub.s32 0, %v823
    %v825 = vrot.slane %v748, %v824
    %v826 = vlaneseq
    %v827 = vshrl.u32 %v826, 7
    %v828 = vsub.s32 0, %v827
    %v829 = vrot.slane %v750, %v828
    %v830 = vlaneseq
    %v831 = vshrl.u32 %v830, 7
    %v832 = vsub.s32 0, %v831
    %v833 = vrot.slane %v752, %v832
    %v834 = vlaneseq
    %v835 = vshrl.u32 %v834, 7
    %v836 = vsub.s32 0, %v835
    %v837 = vrot.slane %v776, %v836
    %v838 = vlaneseq
    %v839 = vshrl.u32 %v838, 7
    %v840 = vsub.s32 0, %v839
    %v841 = vrot.slane %v790, %v840
    %v842 = vlaneseq
    %v843 = vshrl.u32 %v842, 7
    %v844 = vsub.s32 0, %v843
    %v845 = vrot.slane %v798, %v844
    %v846 = vlaneseq
    %v847 = vshrl.u32 %v846, 7
    %v848 = vsub.s32 0, %v847
    %v849 = vrot.slane %v800, %v848
    %v850 = vlaneseq
    %v851 = vshrl.u32 %v850, 7
    %v852 = vsub.s32 0, %v851
    %v853 = vrot.slane %v783, %v852
    %v854 = vlaneseq
    %v855 = vshrl.u32 %v854, 7
    %v856 = vsub.s32 0, %v855
    %v857 = vrot.slane %v797, %v856
    %v858 = vlaneseq
    %v859 = vshrl.u32 %v858, 7
    %v860 = vsub.s32 0, %v859
    %v861 = vrot.slane %v799, %v860
    %v862 = vlaneseq
    %v863 = vshrl.u32 %v862, 7
    %v864 = vsub.s32 0, %v863
    %v865 = vrot.slane %v801, %v864
    %v882 = vadd.f32 %v640, %v805
    %v883 = vadd.f32 %v643, %v809
    %v884 = vadd.f32 %v648, %v813
    %v885 = vadd.f32 %v651, %v817
    %v886 = vadd.f32 %v656, %v821
    %v887 = vadd.f32 %v659, %v825
    %v888 = vadd.f32 %v664, %v829
    %v889 = vadd.f32 %v667, %v833
    %v890 = vadd.f32 %v672, %v837
    %v891 = vadd.f32 %v675, %v841
    %v892 = vadd.f32 %v680, %v845
    %v893 = vadd.f32 %v683, %v849
    %v894 = vadd.f32 %v688, %v853
    %v895 = vadd.f32 %v691, %v857
    %v896 = vadd.f32 %v696, %v861
    %v897 = vadd.f32 %v699, %v865
    %v898 = vadd.f32 %v882, %v552
    %v899 = vadd.f32 %v883, %v552
    %v900 = vadd.f32 %v884, %v552
    %v901 = vadd.f32 %v885, %v552
    %v902 = vadd.f32 %v886, %v552
    %v903 = vadd.f32 %v887, %v552
    %v904 = vadd.f32 %v888, %v552
    %v905 = vadd.f32 %v889, %v552
    %v906 = vadd.f32 %v890, %v555
    %v907 = vadd.f32 %v891, %v555
    %v908 = vadd.f32 %v892, %v555
    %v909 = vadd.f32 %v893, %v555
    %v910 = vadd.f32 %v894, %v555
    %v911 = vadd.f32 %v895, %v555
    %v912 = vadd.f32 %v896, %v555
    %v913 = vadd.f32 %v897, %v555
    %v914 = vxor.u32 %v898, 2147483648
    %v915 = vxor.u32 %v899, 2147483648
    %v916 = vxor.u32 %v900, 2147483648
    %v917 = vxor.u32 %v901, 2147483648
    %v918 = vxor.u32 %v902, 2147483648
    %v919 = vxor.u32 %v903, 2147483648
    %v920 = vxor.u32 %v904, 2147483648
    %v921 = vxor.u32 %v905, 2147483648
    %v922 = vxor.u32 %v906, 2147483648
    %v923 = vxor.u32 %v907, 2147483648
    %v924 = vxor.u32 %v908, 2147483648
    %v925 = vxor.u32 %v909, 2147483648
    %v926 = vxor.u32 %v910, 2147483648
    %v927 = vxor.u32 %v911, 2147483648
    %v928 = vxor.u32 %v912, 2147483648
    %v929 = vxor.u32 %v913, 2147483648
    %v930 = vmul.f32 %v914, 1.442695
    %v931 = vpow.pop %v930
    %v932 = vmul.f32 %v915, 1.442695
    %v933 = vpow.pop %v932
    %v934 = vmul.f32 %v916, 1.442695
    %v935 = vpow.pop %v934
    %v936 = vmul.f32 %v917, 1.442695
    %v937 = vpow.pop %v936
    %v938 = vmul.f32 %v918, 1.442695
    %v939 = vpow.pop %v938
    %v940 = vmul.f32 %v919, 1.442695
    %v941 = vpow.pop %v940
    %v942 = vmul.f32 %v920, 1.442695
    %v943 = vpow.pop %v942
    %v944 = vmul.f32 %v921, 1.442695
    %v945 = vpow.pop %v944
    %v946 = vmul.f32 %v922, 1.442695
    %v947 = vpow.pop %v946
    %v948 = vmul.f32 %v923, 1.442695
    %v949 = vpow.pop %v948
    %v950 = vmul.f32 %v924, 1.442695
    %v951 = vpow.pop %v950
    %v952 = vmul.f32 %v925, 1.442695
    %v953 = vpow.pop %v952
    %v954 = vmul.f32 %v926, 1.442695
    %v955 = vpow.pop %v954
    %v956 = vmul.f32 %v927, 1.442695
    %v957 = vpow.pop %v956
    %v958 = vmul.f32 %v928, 1.442695
    %v959 = vpow.pop %v958
    %v960 = vmul.f32 %v929, 1.442695
    %v961 = vpow.pop %v960
    %v962 = vadd.f32 %v931, 1.0
    %v963 = vadd.f32 %v933, 1.0
    %v964 = vadd.f32 %v935, 1.0
    %v965 = vadd.f32 %v937, 1.0
    %v966 = vadd.f32 %v939, 1.0
    %v967 = vadd.f32 %v941, 1.0
    %v968 = vadd.f32 %v943, 1.0
    %v969 = vadd.f32 %v945, 1.0
    %v970 = vadd.f32 %v947, 1.0
    %v971 = vadd.f32 %v949, 1.0
    %v972 = vadd.f32 %v951, 1.0
    %v973 = vadd.f32 %v953, 1.0
    %v974 = vadd.f32 %v955, 1.0
    %v975 = vadd.f32 %v957, 1.0
    %v976 = vadd.f32 %v959, 1.0
    %v977 = vadd.f32 %v961, 1.0
    %v978 = vrcp.pop %v962
    %v979 = vmul.f32 1.0, %v978
    %v980 = vrcp.pop %v963
    %v981 = vmul.f32 1.0, %v980
    %v982 = vrcp.pop %v964
    %v983 = vmul.f32 1.0, %v982
    %v984 = vrcp.pop %v965
    %v985 = vmul.f32 1.0, %v984
    %v986 = vrcp.pop %v966
    %v987 = vmul.f32 1.0, %v986
    %v988 = vrcp.pop %v967
    %v989 = vmul.f32 1.0, %v988
    %v990 = vrcp.pop %v968
    %v991 = vmul.f32 1.0, %v990
    %v992 = vrcp.pop %v969
    %v993 = vmul.f32 1.0, %v992
    %v994 = vrcp.pop %v970
    %v995 = vmul.f32 1.0, %v994
    %v996 = vrcp.pop %v971
    %v997 = vmul.f32 1.0, %v996
    %v998 = vrcp.pop %v972
    %v999 = vmul.f32 1.0, %v998
    %v1000 = vrcp.pop %v973
    %v1001 = vmul.f32 1.0, %v1000
    %v1002 = vrcp.pop %v974
    %v1003 = vmul.f32 1.0, %v1002
    %v1004 = vrcp.pop %v975
    %v1005 = vmul.f32 1.0, %v1004
    %v1006 = vrcp.pop %v976
    %v1007 = vmul.f32 1.0, %v1006
    %v1008 = vrcp.pop %v977
    %v1009 = vmul.f32 1.0, %v1008
    %v1010 = vlaneseq
    %v1011 = vshrl.u32 %v1010, 7
    %v1012 = vsub.s32 0, %v1011
    %v1013 = vrot.slane %v552, %v1012
    %v1014 = vlaneseq
    %v1015 = vshrl.u32 %v1014, 7
    %v1016 = vsub.s32 0, %v1015
    %v1017 = vrot.slane %v555, %v1016
    %1020 = vrot.lane.b32.xlu0 %v1013, 64
    %v1021 = vpop.permute.xlu0 %1020
    %1022 = vrot.lane.b32.xlu0 %v1017, 64
    %v1023 = vpop.permute.xlu0 %1022
    %v1026 = vmul.f32 %v979, %v1021
    %v1027 = vmul.f32 %v981, %v1021
    %v1028 = vmul.f32 %v983, %v1021
    %v1029 = vmul.f32 %v985, %v1021
    %v1030 = vmul.f32 %v987, %v1021
    %v1031 = vmul.f32 %v989, %v1021
    %v1032 = vmul.f32 %v991, %v1021
    %v1033 = vmul.f32 %v993, %v1021
    %v1034 = vmul.f32 %v995, %v1023
    %v1035 = vmul.f32 %v997, %v1023
    %v1036 = vmul.f32 %v999, %v1023
    %v1037 = vmul.f32 %v1001, %v1023
    %v1038 = vmul.f32 %v1003, %v1023
    %v1039 = vmul.f32 %v1005, %v1023
    %v1040 = vmul.f32 %v1007, %v1023
    %v1041 = vmul.f32 %v1009, %v1023
    %v1042 = vlaneseq
    %v1043 = vshrl.u32 %v1042, 7
    %v1044 = vsub.s32 1, %v1043
    %v1045 = vrot.slane %v552, %v1044
    %v1046 = vlaneseq
    %v1047 = vshrl.u32 %v1046, 7
    %v1048 = vsub.s32 1, %v1047
    %v1049 = vrot.slane %v555, %v1048
    %1052 = vrot.lane.b32.xlu0 %v1045, 64
    %v1053 = vpop.permute.xlu0 %1052
    %1054 = vrot.lane.b32.xlu0 %v1049, 64
    %v1055 = vpop.permute.xlu0 %1054
    %v1058 = vmul.f32 %v979, %v1053
    %v1059 = vmul.f32 %v981, %v1053
    %v1060 = vmul.f32 %v983, %v1053
    %v1061 = vmul.f32 %v985, %v1053
    %v1062 = vmul.f32 %v987, %v1053
    %v1063 = vmul.f32 %v989, %v1053
    %v1064 = vmul.f32 %v991, %v1053
    %v1065 = vmul.f32 %v993, %v1053
    %v1066 = vmul.f32 %v995, %v1055
    %v1067 = vmul.f32 %v997, %v1055
    %v1068 = vmul.f32 %v999, %v1055
    %v1069 = vmul.f32 %v1001, %v1055
    %v1070 = vmul.f32 %v1003, %v1055
    %v1071 = vmul.f32 %v1005, %v1055
    %v1072 = vmul.f32 %v1007, %v1055
    %v1073 = vmul.f32 %v1009, %v1055
    %v1090 = vrot.slane %v1058, 1
    %v1091 = vrot.slane %v1059, 1
    %v1092 = vrot.slane %v1060, 1
    %v1093 = vrot.slane %v1061, 1
    %v1094 = vrot.slane %v1062, 1
    %v1095 = vrot.slane %v1063, 1
    %v1096 = vrot.slane %v1064, 1
    %v1097 = vrot.slane %v1065, 1
    %v1098 = vrot.slane %v1066, 1
    %v1099 = vrot.slane %v1067, 1
    %v1100 = vrot.slane %v1068, 1
    %v1101 = vrot.slane %v1069, 1
    %v1102 = vrot.slane %v1070, 1
    %v1103 = vrot.slane %v1071, 1
    %v1104 = vrot.slane %v1072, 1
    %v1105 = vrot.slane %v1073, 1
    %v1122 = vadd.f32 %v1026, %v1090
    %v1123 = vadd.f32 %v1027, %v1091
    %v1124 = vadd.f32 %v1028, %v1092
    %v1125 = vadd.f32 %v1029, %v1093
    %v1126 = vadd.f32 %v1030, %v1094
    %v1127 = vadd.f32 %v1031, %v1095
    %v1128 = vadd.f32 %v1032, %v1096
    %v1129 = vadd.f32 %v1033, %v1097
    %v1130 = vadd.f32 %v1034, %v1098
    %v1131 = vadd.f32 %v1035, %v1099
    %v1132 = vadd.f32 %v1036, %v1100
    %v1133 = vadd.f32 %v1037, %v1101
    %v1134 = vadd.f32 %v1038, %v1102
    %v1135 = vadd.f32 %v1039, %v1103
    %v1136 = vadd.f32 %v1040, %v1104
    %v1137 = vadd.f32 %v1041, %v1105
    %v1154 = vrot.slane %v979, 1
    %v1155 = vrot.slane %v981, 1
    %v1156 = vrot.slane %v983, 1
    %v1157 = vrot.slane %v985, 1
    %v1158 = vrot.slane %v987, 1
    %v1159 = vrot.slane %v989, 1
    %v1160 = vrot.slane %v991, 1
    %v1161 = vrot.slane %v993, 1
    %v1162 = vrot.slane %v995, 1
    %v1163 = vrot.slane %v997, 1
    %v1164 = vrot.slane %v999, 1
    %v1165 = vrot.slane %v1001, 1
    %v1166 = vrot.slane %v1003, 1
    %v1167 = vrot.slane %v1005, 1
    %v1168 = vrot.slane %v1007, 1
    %v1169 = vrot.slane %v1009, 1
    %v1186 = vadd.f32 %v979, %v1154
    %v1187 = vadd.f32 %v981, %v1155
    %v1188 = vadd.f32 %v983, %v1156
    %v1189 = vadd.f32 %v985, %v1157
    %v1190 = vadd.f32 %v987, %v1158
    %v1191 = vadd.f32 %v989, %v1159
    %v1192 = vadd.f32 %v991, %v1160
    %v1193 = vadd.f32 %v993, %v1161
    %v1194 = vadd.f32 %v995, %v1162
    %v1195 = vadd.f32 %v997, %v1163
    %v1196 = vadd.f32 %v999, %v1164
    %v1197 = vadd.f32 %v1001, %v1165
    %v1198 = vadd.f32 %v1003, %v1166
    %v1199 = vadd.f32 %v1005, %v1167
    %v1200 = vadd.f32 %v1007, %v1168
    %v1201 = vadd.f32 %v1009, %v1169
    %v1202 = vlaneseq
    %v1203 = vshrl.u32 %v1202, 7
    %v1204 = vsub.s32 2, %v1203
    %v1205 = vrot.slane %v552, %v1204
    %v1206 = vlaneseq
    %v1207 = vshrl.u32 %v1206, 7
    %v1208 = vsub.s32 2, %v1207
    %v1209 = vrot.slane %v555, %v1208
    %1212 = vrot.lane.b32.xlu0 %v1205, 64
    %v1213 = vpop.permute.xlu0 %1212
    %1214 = vrot.lane.b32.xlu0 %v1209, 64
    %v1215 = vpop.permute.xlu0 %1214
    %v1218 = vmul.f32 %v979, %v1213
    %v1219 = vmul.f32 %v981, %v1213
    %v1220 = vmul.f32 %v983, %v1213
    %v1221 = vmul.f32 %v985, %v1213
    %v1222 = vmul.f32 %v987, %v1213
    %v1223 = vmul.f32 %v989, %v1213
    %v1224 = vmul.f32 %v991, %v1213
    %v1225 = vmul.f32 %v993, %v1213
    %v1226 = vmul.f32 %v995, %v1215
    %v1227 = vmul.f32 %v997, %v1215
    %v1228 = vmul.f32 %v999, %v1215
    %v1229 = vmul.f32 %v1001, %v1215
    %v1230 = vmul.f32 %v1003, %v1215
    %v1231 = vmul.f32 %v1005, %v1215
    %v1232 = vmul.f32 %v1007, %v1215
    %v1233 = vmul.f32 %v1009, %v1215
    %v1250 = vrot.slane %v1218, 2
    %v1251 = vrot.slane %v1219, 2
    %v1252 = vrot.slane %v1220, 2
    %v1253 = vrot.slane %v1221, 2
    %v1254 = vrot.slane %v1222, 2
    %v1255 = vrot.slane %v1223, 2
    %v1256 = vrot.slane %v1224, 2
    %v1257 = vrot.slane %v1225, 2
    %v1258 = vrot.slane %v1226, 2
    %v1259 = vrot.slane %v1227, 2
    %v1260 = vrot.slane %v1228, 2
    %v1261 = vrot.slane %v1229, 2
    %v1262 = vrot.slane %v1230, 2
    %v1263 = vrot.slane %v1231, 2
    %v1264 = vrot.slane %v1232, 2
    %v1265 = vrot.slane %v1233, 2
    %v1282 = vadd.f32 %v1122, %v1250
    %v1283 = vadd.f32 %v1123, %v1251
    %v1284 = vadd.f32 %v1124, %v1252
    %v1285 = vadd.f32 %v1125, %v1253
    %v1286 = vadd.f32 %v1126, %v1254
    %v1287 = vadd.f32 %v1127, %v1255
    %v1288 = vadd.f32 %v1128, %v1256
    %v1289 = vadd.f32 %v1129, %v1257
    %v1290 = vadd.f32 %v1130, %v1258
    %v1291 = vadd.f32 %v1131, %v1259
    %v1292 = vadd.f32 %v1132, %v1260
    %v1293 = vadd.f32 %v1133, %v1261
    %v1294 = vadd.f32 %v1134, %v1262
    %v1295 = vadd.f32 %v1135, %v1263
    %v1296 = vadd.f32 %v1136, %v1264
    %v1297 = vadd.f32 %v1137, %v1265
    %v1298 = vrot.slane %v979, 2
    %v1299 = vrot.slane %v981, 2
    %v1300 = vrot.slane %v983, 2
    %v1301 = vrot.slane %v985, 2
    %v1302 = vrot.slane %v987, 2
    %v1303 = vrot.slane %v989, 2
    %v1304 = vrot.slane %v991, 2
    %v1305 = vrot.slane %v993, 2
    %v1306 = vrot.slane %v995, 2
    %v1307 = vrot.slane %v997, 2
    %v1308 = vrot.slane %v999, 2
    %v1309 = vrot.slane %v1001, 2
    %v1310 = vrot.slane %v1003, 2
    %v1311 = vrot.slane %v1005, 2
    %v1312 = vrot.slane %v1007, 2
    %v1313 = vrot.slane %v1009, 2
    %v1330 = vadd.f32 %v1186, %v1298
    %v1331 = vadd.f32 %v1187, %v1299
    %v1332 = vadd.f32 %v1188, %v1300
    %v1333 = vadd.f32 %v1189, %v1301
    %v1334 = vadd.f32 %v1190, %v1302
    %v1335 = vadd.f32 %v1191, %v1303
    %v1336 = vadd.f32 %v1192, %v1304
    %v1337 = vadd.f32 %v1193, %v1305
    %v1338 = vadd.f32 %v1194, %v1306
    %v1339 = vadd.f32 %v1195, %v1307
    %v1340 = vadd.f32 %v1196, %v1308
    %v1341 = vadd.f32 %v1197, %v1309
    %v1342 = vadd.f32 %v1198, %v1310
    %v1343 = vadd.f32 %v1199, %v1311
    %v1344 = vadd.f32 %v1200, %v1312
    %v1345 = vadd.f32 %v1201, %v1313
    %v1346 = vlaneseq
    %v1347 = vshrl.u32 %v1346, 7
    %v1348 = vsub.s32 3, %v1347
    %v1349 = vrot.slane %v552, %v1348
    %v1350 = vlaneseq
    %v1351 = vshrl.u32 %v1350, 7
    %v1352 = vsub.s32 3, %v1351
    %v1353 = vrot.slane %v555, %v1352
    %1356 = vrot.lane.b32.xlu0 %v1349, 64
    %v1357 = vpop.permute.xlu0 %1356
    %1358 = vrot.lane.b32.xlu0 %v1353, 64
    %v1359 = vpop.permute.xlu0 %1358
    %v1362 = vmul.f32 %v979, %v1357
    %v1363 = vmul.f32 %v981, %v1357
    %v1364 = vmul.f32 %v983, %v1357
    %v1365 = vmul.f32 %v985, %v1357
    %v1366 = vmul.f32 %v987, %v1357
    %v1367 = vmul.f32 %v989, %v1357
    %v1368 = vmul.f32 %v991, %v1357
    %v1369 = vmul.f32 %v993, %v1357
    %v1370 = vmul.f32 %v995, %v1359
    %v1371 = vmul.f32 %v997, %v1359
    %v1372 = vmul.f32 %v999, %v1359
    %v1373 = vmul.f32 %v1001, %v1359
    %v1374 = vmul.f32 %v1003, %v1359
    %v1375 = vmul.f32 %v1005, %v1359
    %v1376 = vmul.f32 %v1007, %v1359
    %v1377 = vmul.f32 %v1009, %v1359
    %v1394 = vrot.slane %v1362, 3
    %v1395 = vrot.slane %v1363, 3
    %v1396 = vrot.slane %v1364, 3
    %v1397 = vrot.slane %v1365, 3
    %v1398 = vrot.slane %v1366, 3
    %v1399 = vrot.slane %v1367, 3
    %v1400 = vrot.slane %v1368, 3
    %v1401 = vrot.slane %v1369, 3
    %v1402 = vrot.slane %v1370, 3
    %v1403 = vrot.slane %v1371, 3
    %v1404 = vrot.slane %v1372, 3
    %v1405 = vrot.slane %v1373, 3
    %v1406 = vrot.slane %v1374, 3
    %v1407 = vrot.slane %v1375, 3
    %v1408 = vrot.slane %v1376, 3
    %v1409 = vrot.slane %v1377, 3
    %v1426 = vadd.f32 %v1282, %v1394
    %v1427 = vadd.f32 %v1283, %v1395
    %v1428 = vadd.f32 %v1284, %v1396
    %v1429 = vadd.f32 %v1285, %v1397
    %v1430 = vadd.f32 %v1286, %v1398
    %v1431 = vadd.f32 %v1287, %v1399
    %v1432 = vadd.f32 %v1288, %v1400
    %v1433 = vadd.f32 %v1289, %v1401
    %v1434 = vadd.f32 %v1290, %v1402
    %v1435 = vadd.f32 %v1291, %v1403
    %v1436 = vadd.f32 %v1292, %v1404
    %v1437 = vadd.f32 %v1293, %v1405
    %v1438 = vadd.f32 %v1294, %v1406
    %v1439 = vadd.f32 %v1295, %v1407
    %v1440 = vadd.f32 %v1296, %v1408
    %v1441 = vadd.f32 %v1297, %v1409
    %v1442 = vrot.slane %v979, 3
    %v1443 = vrot.slane %v981, 3
    %v1444 = vrot.slane %v983, 3
    %v1445 = vrot.slane %v985, 3
    %v1446 = vrot.slane %v987, 3
    %v1447 = vrot.slane %v989, 3
    %v1448 = vrot.slane %v991, 3
    %v1449 = vrot.slane %v993, 3
    %v1450 = vrot.slane %v995, 3
    %v1451 = vrot.slane %v997, 3
    %v1452 = vrot.slane %v999, 3
    %v1453 = vrot.slane %v1001, 3
    %v1454 = vrot.slane %v1003, 3
    %v1455 = vrot.slane %v1005, 3
    %v1456 = vrot.slane %v1007, 3
    %v1457 = vrot.slane %v1009, 3
    %v1474 = vadd.f32 %v1330, %v1442
    %v1475 = vadd.f32 %v1331, %v1443
    %v1476 = vadd.f32 %v1332, %v1444
    %v1477 = vadd.f32 %v1333, %v1445
    %v1478 = vadd.f32 %v1334, %v1446
    %v1479 = vadd.f32 %v1335, %v1447
    %v1480 = vadd.f32 %v1336, %v1448
    %v1481 = vadd.f32 %v1337, %v1449
    %v1482 = vadd.f32 %v1338, %v1450
    %v1483 = vadd.f32 %v1339, %v1451
    %v1484 = vadd.f32 %v1340, %v1452
    %v1485 = vadd.f32 %v1341, %v1453
    %v1486 = vadd.f32 %v1342, %v1454
    %v1487 = vadd.f32 %v1343, %v1455
    %v1488 = vadd.f32 %v1344, %v1456
    %v1489 = vadd.f32 %v1345, %v1457
    %v1490 = vlaneseq
    %v1491 = vshrl.u32 %v1490, 7
    %v1492 = vsub.s32 4, %v1491
    %v1493 = vrot.slane %v552, %v1492
    %v1494 = vlaneseq
    %v1495 = vshrl.u32 %v1494, 7
    %v1496 = vsub.s32 4, %v1495
    %v1497 = vrot.slane %v555, %v1496
    %1500 = vrot.lane.b32.xlu0 %v1493, 64
    %v1501 = vpop.permute.xlu0 %1500
    %1502 = vrot.lane.b32.xlu0 %v1497, 64
    %v1503 = vpop.permute.xlu0 %1502
    %v1506 = vmul.f32 %v979, %v1501
    %v1507 = vmul.f32 %v981, %v1501
    %v1508 = vmul.f32 %v983, %v1501
    %v1509 = vmul.f32 %v985, %v1501
    %v1510 = vmul.f32 %v987, %v1501
    %v1511 = vmul.f32 %v989, %v1501
    %v1512 = vmul.f32 %v991, %v1501
    %v1513 = vmul.f32 %v993, %v1501
    %v1514 = vmul.f32 %v995, %v1503
    %v1515 = vmul.f32 %v997, %v1503
    %v1516 = vmul.f32 %v999, %v1503
    %v1517 = vmul.f32 %v1001, %v1503
    %v1518 = vmul.f32 %v1003, %v1503
    %v1519 = vmul.f32 %v1005, %v1503
    %v1520 = vmul.f32 %v1007, %v1503
    %v1521 = vmul.f32 %v1009, %v1503
    %v1538 = vrot.slane %v1506, 4
    %v1539 = vrot.slane %v1507, 4
    %v1540 = vrot.slane %v1508, 4
    %v1541 = vrot.slane %v1509, 4
    %v1542 = vrot.slane %v1510, 4
    %v1543 = vrot.slane %v1511, 4
    %v1544 = vrot.slane %v1512, 4
    %v1545 = vrot.slane %v1513, 4
    %v1546 = vrot.slane %v1514, 4
    %v1547 = vrot.slane %v1515, 4
    %v1548 = vrot.slane %v1516, 4
    %v1549 = vrot.slane %v1517, 4
    %v1550 = vrot.slane %v1518, 4
    %v1551 = vrot.slane %v1519, 4
    %v1552 = vrot.slane %v1520, 4
    %v1553 = vrot.slane %v1521, 4
    %v1570 = vadd.f32 %v1426, %v1538
    %v1571 = vadd.f32 %v1427, %v1539
    %v1572 = vadd.f32 %v1428, %v1540
    %v1573 = vadd.f32 %v1429, %v1541
    %v1574 = vadd.f32 %v1430, %v1542
    %v1575 = vadd.f32 %v1431, %v1543
    %v1576 = vadd.f32 %v1432, %v1544
    %v1577 = vadd.f32 %v1433, %v1545
    %v1578 = vadd.f32 %v1434, %v1546
    %v1579 = vadd.f32 %v1435, %v1547
    %v1580 = vadd.f32 %v1436, %v1548
    %v1581 = vadd.f32 %v1437, %v1549
    %v1582 = vadd.f32 %v1438, %v1550
    %v1583 = vadd.f32 %v1439, %v1551
    %v1584 = vadd.f32 %v1440, %v1552
    %v1585 = vadd.f32 %v1441, %v1553
    %v1586 = vrot.slane %v979, 4
    %v1587 = vrot.slane %v981, 4
    %v1588 = vrot.slane %v983, 4
    %v1589 = vrot.slane %v985, 4
    %v1590 = vrot.slane %v987, 4
    %v1591 = vrot.slane %v989, 4
    %v1592 = vrot.slane %v991, 4
    %v1593 = vrot.slane %v993, 4
    %v1594 = vrot.slane %v995, 4
    %v1595 = vrot.slane %v997, 4
    %v1596 = vrot.slane %v999, 4
    %v1597 = vrot.slane %v1001, 4
    %v1598 = vrot.slane %v1003, 4
    %v1599 = vrot.slane %v1005, 4
    %v1600 = vrot.slane %v1007, 4
    %v1601 = vrot.slane %v1009, 4
    %v1618 = vadd.f32 %v1474, %v1586
    %v1619 = vadd.f32 %v1475, %v1587
    %v1620 = vadd.f32 %v1476, %v1588
    %v1621 = vadd.f32 %v1477, %v1589
    %v1622 = vadd.f32 %v1478, %v1590
    %v1623 = vadd.f32 %v1479, %v1591
    %v1624 = vadd.f32 %v1480, %v1592
    %v1625 = vadd.f32 %v1481, %v1593
    %v1626 = vadd.f32 %v1482, %v1594
    %v1627 = vadd.f32 %v1483, %v1595
    %v1628 = vadd.f32 %v1484, %v1596
    %v1629 = vadd.f32 %v1485, %v1597
    %v1630 = vadd.f32 %v1486, %v1598
    %v1631 = vadd.f32 %v1487, %v1599
    %v1632 = vadd.f32 %v1488, %v1600
    %v1633 = vadd.f32 %v1489, %v1601
    %v1634 = vlaneseq
    %v1635 = vshrl.u32 %v1634, 7
    %v1636 = vsub.s32 5, %v1635
    %v1637 = vrot.slane %v552, %v1636
    %v1638 = vlaneseq
    %v1639 = vshrl.u32 %v1638, 7
    %v1640 = vsub.s32 5, %v1639
    %v1641 = vrot.slane %v555, %v1640
    %1644 = vrot.lane.b32.xlu0 %v1637, 64
    %v1645 = vpop.permute.xlu0 %1644
    %1646 = vrot.lane.b32.xlu0 %v1641, 64
    %v1647 = vpop.permute.xlu0 %1646
    %v1650 = vmul.f32 %v979, %v1645
    %v1651 = vmul.f32 %v981, %v1645
    %v1652 = vmul.f32 %v983, %v1645
    %v1653 = vmul.f32 %v985, %v1645
    %v1654 = vmul.f32 %v987, %v1645
    %v1655 = vmul.f32 %v989, %v1645
    %v1656 = vmul.f32 %v991, %v1645
    %v1657 = vmul.f32 %v993, %v1645
    %v1658 = vmul.f32 %v995, %v1647
    %v1659 = vmul.f32 %v997, %v1647
    %v1660 = vmul.f32 %v999, %v1647
    %v1661 = vmul.f32 %v1001, %v1647
    %v1662 = vmul.f32 %v1003, %v1647
    %v1663 = vmul.f32 %v1005, %v1647
    %v1664 = vmul.f32 %v1007, %v1647
    %v1665 = vmul.f32 %v1009, %v1647
    %v1682 = vrot.slane %v1650, 5
    %v1683 = vrot.slane %v1651, 5
    %v1684 = vrot.slane %v1652, 5
    %v1685 = vrot.slane %v1653, 5
    %v1686 = vrot.slane %v1654, 5
    %v1687 = vrot.slane %v1655, 5
    %v1688 = vrot.slane %v1656, 5
    %v1689 = vrot.slane %v1657, 5
    %v1690 = vrot.slane %v1658, 5
    %v1691 = vrot.slane %v1659, 5
    %v1692 = vrot.slane %v1660, 5
    %v1693 = vrot.slane %v1661, 5
    %v1694 = vrot.slane %v1662, 5
    %v1695 = vrot.slane %v1663, 5
    %v1696 = vrot.slane %v1664, 5
    %v1697 = vrot.slane %v1665, 5
    %v1714 = vadd.f32 %v1570, %v1682
    %v1715 = vadd.f32 %v1571, %v1683
    %v1716 = vadd.f32 %v1572, %v1684
    %v1717 = vadd.f32 %v1573, %v1685
    %v1718 = vadd.f32 %v1574, %v1686
    %v1719 = vadd.f32 %v1575, %v1687
    %v1720 = vadd.f32 %v1576, %v1688
    %v1721 = vadd.f32 %v1577, %v1689
    %v1722 = vadd.f32 %v1578, %v1690
    %v1723 = vadd.f32 %v1579, %v1691
    %v1724 = vadd.f32 %v1580, %v1692
    %v1725 = vadd.f32 %v1581, %v1693
    %v1726 = vadd.f32 %v1582, %v1694
    %v1727 = vadd.f32 %v1583, %v1695
    %v1728 = vadd.f32 %v1584, %v1696
    %v1729 = vadd.f32 %v1585, %v1697
    %v1730 = vrot.slane %v979, 5
    %v1731 = vrot.slane %v981, 5
    %v1732 = vrot.slane %v983, 5
    %v1733 = vrot.slane %v985, 5
    %v1734 = vrot.slane %v987, 5
    %v1735 = vrot.slane %v989, 5
    %v1736 = vrot.slane %v991, 5
    %v1737 = vrot.slane %v993, 5
    %v1738 = vrot.slane %v995, 5
    %v1739 = vrot.slane %v997, 5
    %v1740 = vrot.slane %v999, 5
    %v1741 = vrot.slane %v1001, 5
    %v1742 = vrot.slane %v1003, 5
    %v1743 = vrot.slane %v1005, 5
    %v1744 = vrot.slane %v1007, 5
    %v1745 = vrot.slane %v1009, 5
    %v1762 = vadd.f32 %v1618, %v1730
    %v1763 = vadd.f32 %v1619, %v1731
    %v1764 = vadd.f32 %v1620, %v1732
    %v1765 = vadd.f32 %v1621, %v1733
    %v1766 = vadd.f32 %v1622, %v1734
    %v1767 = vadd.f32 %v1623, %v1735
    %v1768 = vadd.f32 %v1624, %v1736
    %v1769 = vadd.f32 %v1625, %v1737
    %v1770 = vadd.f32 %v1626, %v1738
    %v1771 = vadd.f32 %v1627, %v1739
    %v1772 = vadd.f32 %v1628, %v1740
    %v1773 = vadd.f32 %v1629, %v1741
    %v1774 = vadd.f32 %v1630, %v1742
    %v1775 = vadd.f32 %v1631, %v1743
    %v1776 = vadd.f32 %v1632, %v1744
    %v1777 = vadd.f32 %v1633, %v1745
    %v1778 = vlaneseq
    %v1779 = vshrl.u32 %v1778, 7
    %v1780 = vsub.s32 6, %v1779
    %v1781 = vrot.slane %v552, %v1780
    %v1782 = vlaneseq
    %v1783 = vshrl.u32 %v1782, 7
    %v1784 = vsub.s32 6, %v1783
    %v1785 = vrot.slane %v555, %v1784
    %1788 = vrot.lane.b32.xlu0 %v1781, 64
    %v1789 = vpop.permute.xlu0 %1788
    %1790 = vrot.lane.b32.xlu0 %v1785, 64
    %v1791 = vpop.permute.xlu0 %1790
    %v1794 = vmul.f32 %v979, %v1789
    %v1795 = vmul.f32 %v981, %v1789
    %v1796 = vmul.f32 %v983, %v1789
    %v1797 = vmul.f32 %v985, %v1789
    %v1798 = vmul.f32 %v987, %v1789
    %v1799 = vmul.f32 %v989, %v1789
    %v1800 = vmul.f32 %v991, %v1789
    %v1801 = vmul.f32 %v993, %v1789
    %v1802 = vmul.f32 %v995, %v1791
    %v1803 = vmul.f32 %v997, %v1791
    %v1804 = vmul.f32 %v999, %v1791
    %v1805 = vmul.f32 %v1001, %v1791
    %v1806 = vmul.f32 %v1003, %v1791
    %v1807 = vmul.f32 %v1005, %v1791
    %v1808 = vmul.f32 %v1007, %v1791
    %v1809 = vmul.f32 %v1009, %v1791
    %v1826 = vrot.slane %v1794, 6
    %v1827 = vrot.slane %v1795, 6
    %v1828 = vrot.slane %v1796, 6
    %v1829 = vrot.slane %v1797, 6
    %v1830 = vrot.slane %v1798, 6
    %v1831 = vrot.slane %v1799, 6
    %v1832 = vrot.slane %v1800, 6
    %v1833 = vrot.slane %v1801, 6
    %v1834 = vrot.slane %v1802, 6
    %v1835 = vrot.slane %v1803, 6
    %v1836 = vrot.slane %v1804, 6
    %v1837 = vrot.slane %v1805, 6
    %v1838 = vrot.slane %v1806, 6
    %v1839 = vrot.slane %v1807, 6
    %v1840 = vrot.slane %v1808, 6
    %v1841 = vrot.slane %v1809, 6
    %v1858 = vadd.f32 %v1714, %v1826
    %v1859 = vadd.f32 %v1715, %v1827
    %v1860 = vadd.f32 %v1716, %v1828
    %v1861 = vadd.f32 %v1717, %v1829
    %v1862 = vadd.f32 %v1718, %v1830
    %v1863 = vadd.f32 %v1719, %v1831
    %v1864 = vadd.f32 %v1720, %v1832
    %v1865 = vadd.f32 %v1721, %v1833
    %v1866 = vadd.f32 %v1722, %v1834
    %v1867 = vadd.f32 %v1723, %v1835
    %v1868 = vadd.f32 %v1724, %v1836
    %v1869 = vadd.f32 %v1725, %v1837
    %v1870 = vadd.f32 %v1726, %v1838
    %v1871 = vadd.f32 %v1727, %v1839
    %v1872 = vadd.f32 %v1728, %v1840
    %v1873 = vadd.f32 %v1729, %v1841
    %v1874 = vrot.slane %v979, 6
    %v1875 = vrot.slane %v981, 6
    %v1876 = vrot.slane %v983, 6
    %v1877 = vrot.slane %v985, 6
    %v1878 = vrot.slane %v987, 6
    %v1879 = vrot.slane %v989, 6
    %v1880 = vrot.slane %v991, 6
    %v1881 = vrot.slane %v993, 6
    %v1882 = vrot.slane %v995, 6
    %v1883 = vrot.slane %v997, 6
    %v1884 = vrot.slane %v999, 6
    %v1885 = vrot.slane %v1001, 6
    %v1886 = vrot.slane %v1003, 6
    %v1887 = vrot.slane %v1005, 6
    %v1888 = vrot.slane %v1007, 6
    %v1889 = vrot.slane %v1009, 6
    %v1906 = vadd.f32 %v1762, %v1874
    %v1907 = vadd.f32 %v1763, %v1875
    %v1908 = vadd.f32 %v1764, %v1876
    %v1909 = vadd.f32 %v1765, %v1877
    %v1910 = vadd.f32 %v1766, %v1878
    %v1911 = vadd.f32 %v1767, %v1879
    %v1912 = vadd.f32 %v1768, %v1880
    %v1913 = vadd.f32 %v1769, %v1881
    %v1914 = vadd.f32 %v1770, %v1882
    %v1915 = vadd.f32 %v1771, %v1883
    %v1916 = vadd.f32 %v1772, %v1884
    %v1917 = vadd.f32 %v1773, %v1885
    %v1918 = vadd.f32 %v1774, %v1886
    %v1919 = vadd.f32 %v1775, %v1887
    %v1920 = vadd.f32 %v1776, %v1888
    %v1921 = vadd.f32 %v1777, %v1889
    %v1922 = vlaneseq
    %v1923 = vshrl.u32 %v1922, 7
    %v1924 = vsub.s32 7, %v1923
    %v1925 = vrot.slane %v552, %v1924
    %v1926 = vlaneseq
    %v1927 = vshrl.u32 %v1926, 7
    %v1928 = vsub.s32 7, %v1927
    %v1929 = vrot.slane %v555, %v1928
    %1932 = vrot.lane.b32.xlu0 %v1925, 64
    %v1933 = vpop.permute.xlu0 %1932
    %1934 = vrot.lane.b32.xlu0 %v1929, 64
    %v1935 = vpop.permute.xlu0 %1934
    %v1938 = vmul.f32 %v979, %v1933
    %v1939 = vmul.f32 %v981, %v1933
    %v1940 = vmul.f32 %v983, %v1933
    %v1941 = vmul.f32 %v985, %v1933
    %v1942 = vmul.f32 %v987, %v1933
    %v1943 = vmul.f32 %v989, %v1933
    %v1944 = vmul.f32 %v991, %v1933
    %v1945 = vmul.f32 %v993, %v1933
    %v1946 = vmul.f32 %v995, %v1935
    %v1947 = vmul.f32 %v997, %v1935
    %v1948 = vmul.f32 %v999, %v1935
    %v1949 = vmul.f32 %v1001, %v1935
    %v1950 = vmul.f32 %v1003, %v1935
    %v1951 = vmul.f32 %v1005, %v1935
    %v1952 = vmul.f32 %v1007, %v1935
    %v1953 = vmul.f32 %v1009, %v1935
    %v1970 = vrot.slane %v1938, 7
    %v1971 = vrot.slane %v1939, 7
    %v1972 = vrot.slane %v1940, 7
    %v1973 = vrot.slane %v1941, 7
    %v1974 = vrot.slane %v1942, 7
    %v1975 = vrot.slane %v1943, 7
    %v1976 = vrot.slane %v1944, 7
    %v1977 = vrot.slane %v1945, 7
    %v1978 = vrot.slane %v1946, 7
    %v1979 = vrot.slane %v1947, 7
    %v1980 = vrot.slane %v1948, 7
    %v1981 = vrot.slane %v1949, 7
    %v1982 = vrot.slane %v1950, 7
    %v1983 = vrot.slane %v1951, 7
    %v1984 = vrot.slane %v1952, 7
    %v1985 = vrot.slane %v1953, 7
    %v2002 = vadd.f32 %v1858, %v1970
    %v2003 = vadd.f32 %v1859, %v1971
    %v2004 = vadd.f32 %v1860, %v1972
    %v2005 = vadd.f32 %v1861, %v1973
    %v2006 = vadd.f32 %v1862, %v1974
    %v2007 = vadd.f32 %v1863, %v1975
    %v2008 = vadd.f32 %v1864, %v1976
    %v2009 = vadd.f32 %v1865, %v1977
    %v2010 = vadd.f32 %v1866, %v1978
    %v2011 = vadd.f32 %v1867, %v1979
    %v2012 = vadd.f32 %v1868, %v1980
    %v2013 = vadd.f32 %v1869, %v1981
    %v2014 = vadd.f32 %v1870, %v1982
    %v2015 = vadd.f32 %v1871, %v1983
    %v2016 = vadd.f32 %v1872, %v1984
    %v2017 = vadd.f32 %v1873, %v1985
    %v2018 = vrot.slane %v979, 7
    %v2019 = vrot.slane %v981, 7
    %v2020 = vrot.slane %v983, 7
    %v2021 = vrot.slane %v985, 7
    %v2022 = vrot.slane %v987, 7
    %v2023 = vrot.slane %v989, 7
    %v2024 = vrot.slane %v991, 7
    %v2025 = vrot.slane %v993, 7
    %v2026 = vrot.slane %v995, 7
    %v2027 = vrot.slane %v997, 7
    %v2028 = vrot.slane %v999, 7
    %v2029 = vrot.slane %v1001, 7
    %v2030 = vrot.slane %v1003, 7
    %v2031 = vrot.slane %v1005, 7
    %v2032 = vrot.slane %v1007, 7
    %v2033 = vrot.slane %v1009, 7
    %v2050 = vadd.f32 %v1906, %v2018
    %v2051 = vadd.f32 %v1907, %v2019
    %v2052 = vadd.f32 %v1908, %v2020
    %v2053 = vadd.f32 %v1909, %v2021
    %v2054 = vadd.f32 %v1910, %v2022
    %v2055 = vadd.f32 %v1911, %v2023
    %v2056 = vadd.f32 %v1912, %v2024
    %v2057 = vadd.f32 %v1913, %v2025
    %v2058 = vadd.f32 %v1914, %v2026
    %v2059 = vadd.f32 %v1915, %v2027
    %v2060 = vadd.f32 %v1916, %v2028
    %v2061 = vadd.f32 %v1917, %v2029
    %v2062 = vadd.f32 %v1918, %v2030
    %v2063 = vadd.f32 %v1919, %v2031
    %v2064 = vadd.f32 %v1920, %v2032
    %v2065 = vadd.f32 %v1921, %v2033
    %v2066 = vadd.f32 %v2050, 1e-20
    %v2067 = vadd.f32 %v2051, 1e-20
    %v2068 = vadd.f32 %v2052, 1e-20
    %v2069 = vadd.f32 %v2053, 1e-20
    %v2070 = vadd.f32 %v2054, 1e-20
    %v2071 = vadd.f32 %v2055, 1e-20
    %v2072 = vadd.f32 %v2056, 1e-20
    %v2073 = vadd.f32 %v2057, 1e-20
    %v2074 = vadd.f32 %v2058, 1e-20
    %v2075 = vadd.f32 %v2059, 1e-20
    %v2076 = vadd.f32 %v2060, 1e-20
    %v2077 = vadd.f32 %v2061, 1e-20
    %v2078 = vadd.f32 %v2062, 1e-20
    %v2079 = vadd.f32 %v2063, 1e-20
    %v2080 = vadd.f32 %v2064, 1e-20
    %v2081 = vadd.f32 %v2065, 1e-20
    %v2082 = vrcp.pop %v2066
    %v2083 = vmul.f32 %v2002, %v2082
    %v2084 = vrcp.pop %v2067
    %v2085 = vmul.f32 %v2003, %v2084
    %v2086 = vrcp.pop %v2068
    %v2087 = vmul.f32 %v2004, %v2086
    %v2088 = vrcp.pop %v2069
    %v2089 = vmul.f32 %v2005, %v2088
    %v2090 = vrcp.pop %v2070
    %v2091 = vmul.f32 %v2006, %v2090
    %v2092 = vrcp.pop %v2071
    %v2093 = vmul.f32 %v2007, %v2092
    %v2094 = vrcp.pop %v2072
    %v2095 = vmul.f32 %v2008, %v2094
    %v2096 = vrcp.pop %v2073
    %v2097 = vmul.f32 %v2009, %v2096
    %v2098 = vrcp.pop %v2074
    %v2099 = vmul.f32 %v2010, %v2098
    %v2100 = vrcp.pop %v2075
    %v2101 = vmul.f32 %v2011, %v2100
    %v2102 = vrcp.pop %v2076
    %v2103 = vmul.f32 %v2012, %v2102
    %v2104 = vrcp.pop %v2077
    %v2105 = vmul.f32 %v2013, %v2104
    %v2106 = vrcp.pop %v2078
    %v2107 = vmul.f32 %v2014, %v2106
    %v2108 = vrcp.pop %v2079
    %v2109 = vmul.f32 %v2015, %v2108
    %v2110 = vrcp.pop %v2080
    %v2111 = vmul.f32 %v2016, %v2110
    %v2112 = vrcp.pop %v2081
    %v2113 = vmul.f32 %v2017, %v2112
    %v2130 = vrot.slane %v2085, 7
    %vm2131 = vcmask 1041409
    %v2132 = vsel %vm2131, %v2130, %v2083
    %v2133 = vrot.slane %v2087, 6
    %vm2134 = vcmask 1042434
    %v2135 = vsel %vm2134, %v2133, %v2132
    %v2136 = vrot.slane %v2089, 5
    %vm2137 = vcmask 1043459
    %v2138 = vsel %vm2137, %v2136, %v2135
    %v2139 = vrot.slane %v2091, 4
    %vm2140 = vcmask 1044484
    %v2141 = vsel %vm2140, %v2139, %v2138
    %v2142 = vrot.slane %v2093, 3
    %vm2143 = vcmask 1045509
    %v2144 = vsel %vm2143, %v2142, %v2141
    %v2145 = vrot.slane %v2095, 2
    %vm2146 = vcmask 1046534
    %v2147 = vsel %vm2146, %v2145, %v2144
    %v2148 = vrot.slane %v2097, 1
    %vm2149 = vcmask 1047559
    %v2150 = vsel %vm2149, %v2148, %v2147
    %v2151 = vrot.slane %v2101, 7
    %v2152 = vsel %vm2131, %v2151, %v2099
    %v2153 = vrot.slane %v2103, 6
    %v2154 = vsel %vm2134, %v2153, %v2152
    %v2155 = vrot.slane %v2105, 5
    %v2156 = vsel %vm2137, %v2155, %v2154
    %v2157 = vrot.slane %v2107, 4
    %v2158 = vsel %vm2140, %v2157, %v2156
    %v2159 = vrot.slane %v2109, 3
    %v2160 = vsel %vm2143, %v2159, %v2158
    %v2161 = vrot.slane %v2111, 2
    %v2162 = vsel %vm2146, %v2161, %v2160
    %v2163 = vrot.slane %v2113, 1
    %v2164 = vsel %vm2149, %v2163, %v2162
    %2165 = vrot.lane.b32.xlu0 %v2150, 32
    %v2166 = vpop.permute.xlu0 %2165
    %2167 = vrot.lane.b32.xlu0 %v2164, 32
    %v2168 = vpop.permute.xlu0 %2167
    %v2171 = vadd.f32 %v552, %v2166
    %v2172 = vadd.f32 %v555, %v2168
    %v2173 = vsel %vm513, %v898, 0.0
    %v2174 = vsel %vm513, %v899, 0.0
    %v2175 = vadd.f32 %v2173, %v2174
    %v2176 = vsel %vm513, %v900, 0.0
    %v2177 = vadd.f32 %v2175, %v2176
    %v2178 = vsel %vm513, %v901, 0.0
    %v2179 = vadd.f32 %v2177, %v2178
    %v2180 = vsel %vm513, %v902, 0.0
    %v2181 = vadd.f32 %v2179, %v2180
    %v2182 = vsel %vm513, %v903, 0.0
    %v2183 = vadd.f32 %v2181, %v2182
    %v2184 = vsel %vm513, %v904, 0.0
    %v2185 = vadd.f32 %v2183, %v2184
    %v2186 = vsel %vm513, %v905, 0.0
    %v2187 = vadd.f32 %v2185, %v2186
    %v2188 = vsel %vm513, %v906, 0.0
    %v2189 = vadd.f32 %v2187, %v2188
    %v2190 = vsel %vm513, %v907, 0.0
    %v2191 = vadd.f32 %v2189, %v2190
    %v2192 = vsel %vm513, %v908, 0.0
    %v2193 = vadd.f32 %v2191, %v2192
    %v2194 = vsel %vm513, %v909, 0.0
    %v2195 = vadd.f32 %v2193, %v2194
    %v2196 = vsel %vm513, %v910, 0.0
    %v2197 = vadd.f32 %v2195, %v2196
    %v2198 = vsel %vm513, %v911, 0.0
    %v2199 = vadd.f32 %v2197, %v2198
    %v2200 = vsel %vm513, %v912, 0.0
    %v2201 = vadd.f32 %v2199, %v2200
    %v2202 = vsel %vm513, %v913, 0.0
    %v2203 = vadd.f32 %v2201, %v2202
    %v2204 = vrot.slane %v2203, 4
    %v2205 = vadd.f32 %v2203, %v2204
    %v2206 = vrot.slane %v2205, 2
    %v2207 = vadd.f32 %v2205, %v2206
    %v2208 = vrot.slane %v2207, 1
    %v2209 = vadd.f32 %v2207, %v2208
    %v2210 = vmul.f32 %v2209, 0.0078125
    %v2211 = vmul.f32 %v898, %v898
    %v2212 = vmul.f32 %v899, %v899
    %v2213 = vmul.f32 %v900, %v900
    %v2214 = vmul.f32 %v901, %v901
    %v2215 = vmul.f32 %v902, %v902
    %v2216 = vmul.f32 %v903, %v903
    %v2217 = vmul.f32 %v904, %v904
    %v2218 = vmul.f32 %v905, %v905
    %v2219 = vmul.f32 %v906, %v906
    %v2220 = vmul.f32 %v907, %v907
    %v2221 = vmul.f32 %v908, %v908
    %v2222 = vmul.f32 %v909, %v909
    %v2223 = vmul.f32 %v910, %v910
    %v2224 = vmul.f32 %v911, %v911
    %v2225 = vmul.f32 %v912, %v912
    %v2226 = vmul.f32 %v913, %v913
    %v2227 = vsel %vm513, %v2211, 0.0
    %v2228 = vsel %vm513, %v2212, 0.0
    %v2229 = vadd.f32 %v2227, %v2228
    %v2230 = vsel %vm513, %v2213, 0.0
    %v2231 = vadd.f32 %v2229, %v2230
    %v2232 = vsel %vm513, %v2214, 0.0
    %v2233 = vadd.f32 %v2231, %v2232
    %v2234 = vsel %vm513, %v2215, 0.0
    %v2235 = vadd.f32 %v2233, %v2234
    %v2236 = vsel %vm513, %v2216, 0.0
    %v2237 = vadd.f32 %v2235, %v2236
    %v2238 = vsel %vm513, %v2217, 0.0
    %v2239 = vadd.f32 %v2237, %v2238
    %v2240 = vsel %vm513, %v2218, 0.0
    %v2241 = vadd.f32 %v2239, %v2240
    %v2242 = vsel %vm513, %v2219, 0.0
    %v2243 = vadd.f32 %v2241, %v2242
    %v2244 = vsel %vm513, %v2220, 0.0
    %v2245 = vadd.f32 %v2243, %v2244
    %v2246 = vsel %vm513, %v2221, 0.0
    %v2247 = vadd.f32 %v2245, %v2246
    %v2248 = vsel %vm513, %v2222, 0.0
    %v2249 = vadd.f32 %v2247, %v2248
    %v2250 = vsel %vm513, %v2223, 0.0
    %v2251 = vadd.f32 %v2249, %v2250
    %v2252 = vsel %vm513, %v2224, 0.0
    %v2253 = vadd.f32 %v2251, %v2252
    %v2254 = vsel %vm513, %v2225, 0.0
    %v2255 = vadd.f32 %v2253, %v2254
    %v2256 = vsel %vm513, %v2226, 0.0
    %v2257 = vadd.f32 %v2255, %v2256
    %v2258 = vrot.slane %v2257, 4
    %v2259 = vadd.f32 %v2257, %v2258
    %v2260 = vrot.slane %v2259, 2
    %v2261 = vadd.f32 %v2259, %v2260
    %v2262 = vrot.slane %v2261, 1
    %v2263 = vadd.f32 %v2261, %v2262
    %v2264 = vmul.f32 %v2263, 0.0078125
    %v2265 = vmul.f32 %v2210, %v2210
    %v2266 = vsub.f32 %v2264, %v2265
    %v2267 = vmax.f32 %v2266, 0.0
    %v2268 = vsub.f32 %v898, %v2210
    %v2269 = vsub.f32 %v899, %v2210
    %v2270 = vsub.f32 %v900, %v2210
    %v2271 = vsub.f32 %v901, %v2210
    %v2272 = vsub.f32 %v902, %v2210
    %v2273 = vsub.f32 %v903, %v2210
    %v2274 = vsub.f32 %v904, %v2210
    %v2275 = vsub.f32 %v905, %v2210
    %v2276 = vsub.f32 %v906, %v2210
    %v2277 = vsub.f32 %v907, %v2210
    %v2278 = vsub.f32 %v908, %v2210
    %v2279 = vsub.f32 %v909, %v2210
    %v2280 = vsub.f32 %v910, %v2210
    %v2281 = vsub.f32 %v911, %v2210
    %v2282 = vsub.f32 %v912, %v2210
    %v2283 = vsub.f32 %v913, %v2210
    %v2284 = vadd.f32 %v2267, 1e-05
    %v2285 = vrsqrt.pop %v2284
    %v2286 = vmul.f32 %v2268, %v2285
    %v2287 = vmul.f32 %v2269, %v2285
    %v2288 = vmul.f32 %v2270, %v2285
    %v2289 = vmul.f32 %v2271, %v2285
    %v2290 = vmul.f32 %v2272, %v2285
    %v2291 = vmul.f32 %v2273, %v2285
    %v2292 = vmul.f32 %v2274, %v2285
    %v2293 = vmul.f32 %v2275, %v2285
    %v2294 = vmul.f32 %v2276, %v2285
    %v2295 = vmul.f32 %v2277, %v2285
    %v2296 = vmul.f32 %v2278, %v2285
    %v2297 = vmul.f32 %v2279, %v2285
    %v2298 = vmul.f32 %v2280, %v2285
    %v2299 = vmul.f32 %v2281, %v2285
    %v2300 = vmul.f32 %v2282, %v2285
    %v2301 = vmul.f32 %v2283, %v2285
    %v2302 = vmax.f32 %v2286, 0.0
    %v2303 = vmax.f32 %v2287, 0.0
    %v2304 = vmax.f32 %v2288, 0.0
    %v2305 = vmax.f32 %v2289, 0.0
    %v2306 = vmax.f32 %v2290, 0.0
    %v2307 = vmax.f32 %v2291, 0.0
    %v2308 = vmax.f32 %v2292, 0.0
    %v2309 = vmax.f32 %v2293, 0.0
    %v2310 = vmax.f32 %v2294, 0.0
    %v2311 = vmax.f32 %v2295, 0.0
    %v2312 = vmax.f32 %v2296, 0.0
    %v2313 = vmax.f32 %v2297, 0.0
    %v2314 = vmax.f32 %v2298, 0.0
    %v2315 = vmax.f32 %v2299, 0.0
    %v2316 = vmax.f32 %v2300, 0.0
    %v2317 = vmax.f32 %v2301, 0.0
    %v2318 = vadd.f32 %v403, %v2302
    %v2319 = vadd.f32 %v408, %v2303
    %v2320 = vadd.f32 %v413, %v2304
    %v2321 = vadd.f32 %v418, %v2305
    %v2322 = vadd.f32 %v423, %v2306
    %v2323 = vadd.f32 %v428, %v2307
    %v2324 = vadd.f32 %v433, %v2308
    %v2325 = vadd.f32 %v438, %v2309
    %v2326 = vadd.f32 %v443, %v2310
    %v2327 = vadd.f32 %v448, %v2311
    %v2328 = vadd.f32 %v453, %v2312
    %v2329 = vadd.f32 %v458, %v2313
    %v2330 = vadd.f32 %v463, %v2314
    %v2331 = vadd.f32 %v468, %v2315
    %v2332 = vadd.f32 %v473, %v2316
    %v2333 = vadd.f32 %v478, %v2317
    %vm2334 = vcmask 523520
    %v2335 = vsel %vm2334, %v2171, 0.0
    %v2336 = vsel %vm2334, %v2172, 0.0
    %v2337 = vadd.f32 %v2335, %v2336
    %v2338 = vrot.slane %v2337, 4
    %v2339 = vadd.f32 %v2337, %v2338
    %v2340 = vrot.slane %v2339, 2
    %v2341 = vadd.f32 %v2339, %v2340
    %v2342 = vrot.slane %v2341, 1
    %v2343 = vadd.f32 %v2341, %v2342
    %v2344 = vmul.f32 %v2343, 0.0625
    %v2345 = vmul.f32 %v2171, %v2171
    %v2346 = vmul.f32 %v2172, %v2172
    %v2347 = vsel %vm2334, %v2345, 0.0
    %v2348 = vsel %vm2334, %v2346, 0.0
    %v2349 = vadd.f32 %v2347, %v2348
    %v2350 = vrot.slane %v2349, 4
    %v2351 = vadd.f32 %v2349, %v2350
    %v2352 = vrot.slane %v2351, 2
    %v2353 = vadd.f32 %v2351, %v2352
    %v2354 = vrot.slane %v2353, 1
    %v2355 = vadd.f32 %v2353, %v2354
    %v2356 = vmul.f32 %v2355, 0.0625
    %v2357 = vmul.f32 %v2344, %v2344
    %v2358 = vsub.f32 %v2356, %v2357
    %v2359 = vmax.f32 %v2358, 0.0
    %v2360 = vsub.f32 %v2171, %v2344
    %v2361 = vsub.f32 %v2172, %v2344
    %v2362 = vadd.f32 %v2359, 1e-05
    %v2363 = vrsqrt.pop %v2362
    %v2364 = vmul.f32 %v2360, %v2363
    %v2365 = vmul.f32 %v2361, %v2363
    %v2366 = vmax.f32 %v2364, 0.0
    %v2367 = vmax.f32 %v2365, 0.0
    %2370 = vrot.lane.b32.xlu0 %v2366, 96
    %v2371 = vpop.permute.xlu0 %2370
    %2372 = vrot.lane.b32.xlu0 %v2367, 96
    %v2373 = vpop.permute.xlu0 %2372
    %v2376 = vadd.f32 %v263, %v2371
    %v2377 = vadd.f32 %v268, %v2373
    %v2378 = vpack.c.bf16 %v2377, %v2376
    %v2379 = vpack.c.bf16 %v2319, %v2318
    %v2380 = vpack.c.bf16 %v2321, %v2320
    %v2381 = vpack.c.bf16 %v2323, %v2322
    %v2382 = vpack.c.bf16 %v2325, %v2324
    %v2383 = vpack.c.bf16 %v2327, %v2326
    %v2384 = vpack.c.bf16 %v2329, %v2328
    %v2385 = vpack.c.bf16 %v2331, %v2330
    %v2386 = vpack.c.bf16 %v2333, %v2332
    %s2387 = scalar_lea.vmem [#allocation11], 16
    %v2388 = vld [vmem:[%s2387] sm:$0xf]
    %v2389 = vld [vmem:[%s2387 + $0x4] sm:$0xf]
    %v2390 = vld [vmem:[%s2387 + $0x8] sm:$0xf]
    %v2391 = vld [vmem:[%s2387 + $0xc] sm:$0xf]
    %s2392 = scalar_lea.vmem [#allocation12], 1
    %v2393 = vld [vmem:[%s2392] sm:$0x1]
    %v2395 = vlaneseq
    %v2396 = vshrl.u32 %v2395, 7
    %v2397 = vsub.s32 0, %v2396
    %v2398 = vrot.slane %v2393, %v2397
    %v2404 = vunpack.c.l.b16 %v2388
    %v2405 = vunpack.c.l.b16 %v2389
    %v2406 = vunpack.c.l.b16 %v2390
    %v2407 = vunpack.c.l.b16 %v2391
    %v2408 = vpack.c.b16 %v2405, %v2404
    %v2409 = vpack.c.b16 %v2407, %v2406
    %v2413 = vsel %vm513, %v2378, 0
    %2415 = vmatprep.subr.bf16.mxu0 0
    %2416 = vmatpush1.bf16.msra.mxu0 %v2408
    %2417 = vmatprep.subr.bf16.mxu0 0
    %2418 = vmatpush1.bf16.msra.mxu0 %v2409
    %2419 = vmatprep.subr.bf16.mxu0 0
    %2420 = vmatpush1.bf16.msra.mxu0 0
    %2421 = vmatprep.subr.bf16.mxu0 0
    %2422 = vmatpush1.bf16.msra.mxu0 0
    %2423 = vmatprep.subr.bf16.mxu0 0
    %2424 = vmatpush1.bf16.msra.mxu0 0
    %2425 = vmatprep.subr.bf16.mxu0 0
    %2426 = vmatpush1.bf16.msra.mxu0 0
    %2427 = vmatprep.subr.bf16.mxu0 0
    %2428 = vmatpush1.bf16.msra.mxu0 0
    %2429 = vmatprep.subr.bf16.mxu0 0
    %2430 = vmatpush1.bf16.msra.mxu0 0
    %2431 = vmatprep.subr.bf16.mxu0 0
    %2432 = vmatpush1.bf16.msra.mxu0 0
    %2433 = vmatprep.subr.bf16.mxu0 0
    %2434 = vmatpush1.bf16.msra.mxu0 0
    %2435 = vmatprep.subr.bf16.mxu0 0
    %2436 = vmatpush1.bf16.msra.mxu0 0
    %2437 = vmatprep.subr.bf16.mxu0 0
    %2438 = vmatpush1.bf16.msra.mxu0 0
    %2439 = vmatprep.subr.bf16.mxu0 0
    %2440 = vmatpush1.bf16.msra.mxu0 0
    %2441 = vmatprep.subr.bf16.mxu0 0
    %2442 = vmatpush1.bf16.msra.mxu0 0
    %2443 = vmatprep.subr.bf16.mxu0 0
    %2444 = vmatpush1.bf16.msra.mxu0 0
    %2445 = vmatprep.subr.bf16.mxu0 0
    %2446 = vmatpush1.bf16.msra.mxu0 0
    %2447 = vmatprep.mubr.bf16.mxu0 0
    %2448 = vmatmul.mubr.bf16.gmra.mrb[0].mxu0 %v2413
    %v2449 = vpop.f32.mrb[0].mxu0
    %v2450 = vadd.f32 %v2398, %v2449
    %v2451 = vpop.f32.mrb[0].mxu0
    %v2452 = vpop.f32.mrb[0].mxu0
    %v2453 = vadd.f32 %v2398, %v2452
    %v2454 = vpop.f32.mrb[0].mxu0
    %2455 = vdwg.mxu0
    %s2456 = scalar_lea.vmem [#allocation14], 16
    %v2457 = vld [vmem:[%s2456] sm:$0xf]
    %v2458 = vld [vmem:[%s2456 + $0x4] sm:$0xf]
    %v2459 = vld [vmem:[%s2456 + $0x8] sm:$0xf]
    %v2460 = vld [vmem:[%s2456 + $0xc] sm:$0xf]
    %s2461 = scalar_lea.vmem [#allocation15], 1
    %v2462 = vld [vmem:[%s2461] sm:$0x1]
    %v2464 = vlaneseq
    %v2465 = vshrl.u32 %v2464, 7
    %v2466 = vsub.s32 0, %v2465
    %v2467 = vrot.slane %v2462, %v2466
    %v2473 = vunpack.c.l.b16 %v2457
    %v2474 = vunpack.c.l.b16 %v2458
    %v2475 = vunpack.c.l.b16 %v2459
    %v2476 = vunpack.c.l.b16 %v2460
    %v2477 = vpack.c.b16 %v2474, %v2473
    %v2478 = vpack.c.b16 %v2476, %v2475
    %v2482 = vsel %vm513, %v2379, 0
    %v2485 = vsel %vm513, %v2380, 0
    %v2488 = vsel %vm513, %v2381, 0
    %v2491 = vsel %vm513, %v2382, 0
    %v2494 = vsel %vm513, %v2383, 0
    %v2497 = vsel %vm513, %v2384, 0
    %v2500 = vsel %vm513, %v2385, 0
    %v2503 = vsel %vm513, %v2386, 0
    %2505 = vmatprep.subr.bf16.mxu0 0
    %2506 = vmatpush1.bf16.msra.mxu0 %v2477
    %2507 = vmatprep.subr.bf16.mxu0 0
    %2508 = vmatpush1.bf16.msra.mxu0 %v2478
    %2509 = vmatprep.subr.bf16.mxu0 0
    %2510 = vmatpush1.bf16.msra.mxu0 0
    %2511 = vmatprep.subr.bf16.mxu0 0
    %2512 = vmatpush1.bf16.msra.mxu0 0
    %2513 = vmatprep.subr.bf16.mxu0 0
    %2514 = vmatpush1.bf16.msra.mxu0 0
    %2515 = vmatprep.subr.bf16.mxu0 0
    %2516 = vmatpush1.bf16.msra.mxu0 0
    %2517 = vmatprep.subr.bf16.mxu0 0
    %2518 = vmatpush1.bf16.msra.mxu0 0
    %2519 = vmatprep.subr.bf16.mxu0 0
    %2520 = vmatpush1.bf16.msra.mxu0 0
    %2521 = vmatprep.subr.bf16.mxu0 0
    %2522 = vmatpush1.bf16.msra.mxu0 0
    %2523 = vmatprep.subr.bf16.mxu0 0
    %2524 = vmatpush1.bf16.msra.mxu0 0
    %2525 = vmatprep.subr.bf16.mxu0 0
    %2526 = vmatpush1.bf16.msra.mxu0 0
    %2527 = vmatprep.subr.bf16.mxu0 0
    %2528 = vmatpush1.bf16.msra.mxu0 0
    %2529 = vmatprep.subr.bf16.mxu0 0
    %2530 = vmatpush1.bf16.msra.mxu0 0
    %2531 = vmatprep.subr.bf16.mxu0 0
    %2532 = vmatpush1.bf16.msra.mxu0 0
    %2533 = vmatprep.subr.bf16.mxu0 0
    %2534 = vmatpush1.bf16.msra.mxu0 0
    %2535 = vmatprep.subr.bf16.mxu0 0
    %2536 = vmatpush1.bf16.msra.mxu0 0
    %2537 = vmatprep.mubr.bf16.mxu0 0
    %2538 = vmatmul.mubr.bf16.gmra.mrb[0].mxu0 %v2482
    %v2539 = vpop.f32.mrb[0].mxu0
    %v2540 = vadd.f32 %v2467, %v2539
    %v2541 = vpop.f32.mrb[0].mxu0
    %v2542 = vpop.f32.mrb[0].mxu0
    %v2543 = vadd.f32 %v2467, %v2542
    %v2544 = vpop.f32.mrb[0].mxu0
    %2545 = vmatprep.mubr.bf16.mxu0 0
    %2546 = vmatmul.mubr.bf16.gmra.mrb[0].mxu0 %v2485
    %v2547 = vpop.f32.mrb[0].mxu0
    %v2548 = vadd.f32 %v2467, %v2547
    %v2549 = vpop.f32.mrb[0].mxu0
    %v2550 = vpop.f32.mrb[0].mxu0
    %v2551 = vadd.f32 %v2467, %v2550
    %v2552 = vpop.f32.mrb[0].mxu0
    %2553 = vmatprep.mubr.bf16.mxu0 0
    %2554 = vmatmul.mubr.bf16.gmra.mrb[0].mxu0 %v2488
    %v2555 = vpop.f32.mrb[0].mxu0
    %v2556 = vadd.f32 %v2467, %v2555
    %v2557 = vpop.f32.mrb[0].mxu0
    %v2558 = vpop.f32.mrb[0].mxu0
    %v2559 = vadd.f32 %v2467, %v2558
    %v2560 = vpop.f32.mrb[0].mxu0
    %2561 = vmatprep.mubr.bf16.mxu0 0
    %2562 = vmatmul.mubr.bf16.gmra.mrb[0].mxu0 %v2491
    %v2563 = vpop.f32.mrb[0].mxu0
    %v2564 = vadd.f32 %v2467, %v2563
    %v2565 = vpop.f32.mrb[0].mxu0
    %v2566 = vpop.f32.mrb[0].mxu0
    %v2567 = vadd.f32 %v2467, %v2566
    %v2568 = vpop.f32.mrb[0].mxu0
    %2569 = vmatprep.mubr.bf16.mxu0 0
    %2570 = vmatmul.mubr.bf16.gmra.mrb[0].mxu0 %v2494
    %v2571 = vpop.f32.mrb[0].mxu0
    %v2572 = vadd.f32 %v2467, %v2571
    %v2573 = vpop.f32.mrb[0].mxu0
    %v2574 = vpop.f32.mrb[0].mxu0
    %v2575 = vadd.f32 %v2467, %v2574
    %v2576 = vpop.f32.mrb[0].mxu0
    %2577 = vmatprep.mubr.bf16.mxu0 0
    %2578 = vmatmul.mubr.bf16.gmra.mrb[0].mxu0 %v2497
    %v2579 = vpop.f32.mrb[0].mxu0
    %v2580 = vadd.f32 %v2467, %v2579
    %v2581 = vpop.f32.mrb[0].mxu0
    %v2582 = vpop.f32.mrb[0].mxu0
    %v2583 = vadd.f32 %v2467, %v2582
    %v2584 = vpop.f32.mrb[0].mxu0
    %2585 = vmatprep.mubr.bf16.mxu0 0
    %2586 = vmatmul.mubr.bf16.gmra.mrb[0].mxu0 %v2500
    %v2587 = vpop.f32.mrb[0].mxu0
    %v2588 = vadd.f32 %v2467, %v2587
    %v2589 = vpop.f32.mrb[0].mxu0
    %v2590 = vpop.f32.mrb[0].mxu0
    %v2591 = vadd.f32 %v2467, %v2590
    %v2592 = vpop.f32.mrb[0].mxu0
    %2593 = vmatprep.mubr.bf16.mxu0 0
    %2594 = vmatmul.mubr.bf16.gmra.mrb[0].mxu0 %v2503
    %v2595 = vpop.f32.mrb[0].mxu0
    %v2596 = vadd.f32 %v2467, %v2595
    %v2597 = vpop.f32.mrb[0].mxu0
    %v2598 = vpop.f32.mrb[0].mxu0
    %v2599 = vadd.f32 %v2467, %v2598
    %v2600 = vpop.f32.mrb[0].mxu0
    %2601 = vdwg.mxu0
    %v2604 = vcombine.high %v2450, %v2450
    %v2606 = vunpack.c.l.s4 1966171168
    %v2607 = vunpack.c.0.s8 %v2606
    %v2608 = vlaneseq
    %v2609 = vshrl.u32 %v2608, 7
    %v2610 = vsub.s32 %v2607, %v2609
    %v2611 = vrot.slane %v2450, %v2610
    %v2613 = vunpack.c.l.s4 1966171168
    %v2614 = vunpack.c.0.s8 %v2613
    %v2615 = vlaneseq
    %v2616 = vshrl.u32 %v2615, 7
    %v2617 = vsub.s32 %v2614, %v2616
    %v2618 = vrot.slane %v2604, %v2617
    %v2619 = vcombine.high %v2611, %v2611
    %v2620 = vcombine.high %v2618, %v2618
    %v2622 = vunpack.c.l.s4 1966171168
    %v2623 = vunpack.c.0.s8 %v2622
    %v2624 = vlaneseq
    %v2625 = vshrl.u32 %v2624, 7
    %v2626 = vsub.s32 %v2623, %v2625
    %v2627 = vrot.slane %v2611, %v2626
    %v2629 = vunpack.c.l.s4 1966171168
    %v2630 = vunpack.c.0.s8 %v2629
    %v2631 = vlaneseq
    %v2632 = vshrl.u32 %v2631, 7
    %v2633 = vsub.s32 %v2630, %v2632
    %v2634 = vrot.slane %v2618, %v2633
    %v2636 = vunpack.c.l.s4 1966171168
    %v2637 = vunpack.c.0.s8 %v2636
    %v2638 = vlaneseq
    %v2639 = vshrl.u32 %v2638, 7
    %v2640 = vsub.s32 %v2637, %v2639
    %v2641 = vrot.slane %v2619, %v2640
    %v2643 = vunpack.c.l.s4 1966171168
    %v2644 = vunpack.c.0.s8 %v2643
    %v2645 = vlaneseq
    %v2646 = vshrl.u32 %v2645, 7
    %v2647 = vsub.s32 %v2644, %v2646
    %v2648 = vrot.slane %v2620, %v2647
    %v2649 = vcombine.high %v2627, %v2627
    %v2650 = vcombine.high %v2634, %v2634
    %v2651 = vcombine.high %v2641, %v2641
    %v2652 = vcombine.high %v2648, %v2648
    %v2653 = vcombine.high %v2453, %v2453
    %v2655 = vunpack.c.l.s4 1966171168
    %v2656 = vunpack.c.0.s8 %v2655
    %v2657 = vlaneseq
    %v2658 = vshrl.u32 %v2657, 7
    %v2659 = vsub.s32 %v2656, %v2658
    %v2660 = vrot.slane %v2453, %v2659
    %v2662 = vunpack.c.l.s4 1966171168
    %v2663 = vunpack.c.0.s8 %v2662
    %v2664 = vlaneseq
    %v2665 = vshrl.u32 %v2664, 7
    %v2666 = vsub.s32 %v2663, %v2665
    %v2667 = vrot.slane %v2653, %v2666
    %v2668 = vcombine.high %v2660, %v2660
    %v2669 = vcombine.high %v2667, %v2667
    %v2671 = vunpack.c.l.s4 1966171168
    %v2672 = vunpack.c.0.s8 %v2671
    %v2673 = vlaneseq
    %v2674 = vshrl.u32 %v2673, 7
    %v2675 = vsub.s32 %v2672, %v2674
    %v2676 = vrot.slane %v2660, %v2675
    %v2678 = vunpack.c.l.s4 1966171168
    %v2679 = vunpack.c.0.s8 %v2678
    %v2680 = vlaneseq
    %v2681 = vshrl.u32 %v2680, 7
    %v2682 = vsub.s32 %v2679, %v2681
    %v2683 = vrot.slane %v2667, %v2682
    %v2685 = vunpack.c.l.s4 1966171168
    %v2686 = vunpack.c.0.s8 %v2685
    %v2687 = vlaneseq
    %v2688 = vshrl.u32 %v2687, 7
    %v2689 = vsub.s32 %v2686, %v2688
    %v2690 = vrot.slane %v2668, %v2689
    %v2692 = vunpack.c.l.s4 1966171168
    %v2693 = vunpack.c.0.s8 %v2692
    %v2694 = vlaneseq
    %v2695 = vshrl.u32 %v2694, 7
    %v2696 = vsub.s32 %v2693, %v2695
    %v2697 = vrot.slane %v2669, %v2696
    %v2698 = vcombine.high %v2676, %v2676
    %v2699 = vcombine.high %v2683, %v2683
    %v2700 = vcombine.high %v2690, %v2690
    %v2701 = vcombine.high %v2697, %v2697
    %v2702 = vlaneseq
    %v2703 = vshrl.u32 %v2702, 7
    %v2704 = vsub.s32 0, %v2703
    %v2705 = vrot.slane %v2627, %v2704
    %v2706 = vlaneseq
    %v2707 = vshrl.u32 %v2706, 7
    %v2708 = vsub.s32 0, %v2707
    %v2709 = vrot.slane %v2641, %v2708
    %v2710 = vlaneseq
    %v2711 = vshrl.u32 %v2710, 7
    %v2712 = vsub.s32 0, %v2711
    %v2713 = vrot.slane %v2649, %v2712
    %v2714 = vlaneseq
    %v2715 = vshrl.u32 %v2714, 7
    %v2716 = vsub.s32 0, %v2715
    %v2717 = vrot.slane %v2651, %v2716
    %v2718 = vlaneseq
    %v2719 = vshrl.u32 %v2718, 7
    %v2720 = vsub.s32 0, %v2719
    %v2721 = vrot.slane %v2634, %v2720
    %v2722 = vlaneseq
    %v2723 = vshrl.u32 %v2722, 7
    %v2724 = vsub.s32 0, %v2723
    %v2725 = vrot.slane %v2648, %v2724
    %v2726 = vlaneseq
    %v2727 = vshrl.u32 %v2726, 7
    %v2728 = vsub.s32 0, %v2727
    %v2729 = vrot.slane %v2650, %v2728
    %v2730 = vlaneseq
    %v2731 = vshrl.u32 %v2730, 7
    %v2732 = vsub.s32 0, %v2731
    %v2733 = vrot.slane %v2652, %v2732
    %v2734 = vlaneseq
    %v2735 = vshrl.u32 %v2734, 7
    %v2736 = vsub.s32 0, %v2735
    %v2737 = vrot.slane %v2676, %v2736
    %v2738 = vlaneseq
    %v2739 = vshrl.u32 %v2738, 7
    %v2740 = vsub.s32 0, %v2739
    %v2741 = vrot.slane %v2690, %v2740
    %v2742 = vlaneseq
    %v2743 = vshrl.u32 %v2742, 7
    %v2744 = vsub.s32 0, %v2743
    %v2745 = vrot.slane %v2698, %v2744
    %v2746 = vlaneseq
    %v2747 = vshrl.u32 %v2746, 7
    %v2748 = vsub.s32 0, %v2747
    %v2749 = vrot.slane %v2700, %v2748
    %v2750 = vlaneseq
    %v2751 = vshrl.u32 %v2750, 7
    %v2752 = vsub.s32 0, %v2751
    %v2753 = vrot.slane %v2683, %v2752
    %v2754 = vlaneseq
    %v2755 = vshrl.u32 %v2754, 7
    %v2756 = vsub.s32 0, %v2755
    %v2757 = vrot.slane %v2697, %v2756
    %v2758 = vlaneseq
    %v2759 = vshrl.u32 %v2758, 7
    %v2760 = vsub.s32 0, %v2759
    %v2761 = vrot.slane %v2699, %v2760
    %v2762 = vlaneseq
    %v2763 = vshrl.u32 %v2762, 7
    %v2764 = vsub.s32 0, %v2763
    %v2765 = vrot.slane %v2701, %v2764
    %v2782 = vadd.f32 %v2540, %v2705
    %v2783 = vadd.f32 %v2543, %v2709
    %v2784 = vadd.f32 %v2548, %v2713
    %v2785 = vadd.f32 %v2551, %v2717
    %v2786 = vadd.f32 %v2556, %v2721
    %v2787 = vadd.f32 %v2559, %v2725
    %v2788 = vadd.f32 %v2564, %v2729
    %v2789 = vadd.f32 %v2567, %v2733
    %v2790 = vadd.f32 %v2572, %v2737
    %v2791 = vadd.f32 %v2575, %v2741
    %v2792 = vadd.f32 %v2580, %v2745
    %v2793 = vadd.f32 %v2583, %v2749
    %v2794 = vadd.f32 %v2588, %v2753
    %v2795 = vadd.f32 %v2591, %v2757
    %v2796 = vadd.f32 %v2596, %v2761
    %v2797 = vadd.f32 %v2599, %v2765
    %v2798 = vadd.f32 %v2782, %v2450
    %v2799 = vadd.f32 %v2783, %v2450
    %v2800 = vadd.f32 %v2784, %v2450
    %v2801 = vadd.f32 %v2785, %v2450
    %v2802 = vadd.f32 %v2786, %v2450
    %v2803 = vadd.f32 %v2787, %v2450
    %v2804 = vadd.f32 %v2788, %v2450
    %v2805 = vadd.f32 %v2789, %v2450
    %v2806 = vadd.f32 %v2790, %v2453
    %v2807 = vadd.f32 %v2791, %v2453
    %v2808 = vadd.f32 %v2792, %v2453
    %v2809 = vadd.f32 %v2793, %v2453
    %v2810 = vadd.f32 %v2794, %v2453
    %v2811 = vadd.f32 %v2795, %v2453
    %v2812 = vadd.f32 %v2796, %v2453
    %v2813 = vadd.f32 %v2797, %v2453
    %v2814 = vxor.u32 %v2798, 2147483648
    %v2815 = vxor.u32 %v2799, 2147483648
    %v2816 = vxor.u32 %v2800, 2147483648
    %v2817 = vxor.u32 %v2801, 2147483648
    %v2818 = vxor.u32 %v2802, 2147483648
    %v2819 = vxor.u32 %v2803, 2147483648
    %v2820 = vxor.u32 %v2804, 2147483648
    %v2821 = vxor.u32 %v2805, 2147483648
    %v2822 = vxor.u32 %v2806, 2147483648
    %v2823 = vxor.u32 %v2807, 2147483648
    %v2824 = vxor.u32 %v2808, 2147483648
    %v2825 = vxor.u32 %v2809, 2147483648
    %v2826 = vxor.u32 %v2810, 2147483648
    %v2827 = vxor.u32 %v2811, 2147483648
    %v2828 = vxor.u32 %v2812, 2147483648
    %v2829 = vxor.u32 %v2813, 2147483648
    %v2830 = vmul.f32 %v2814, 1.442695
    %v2831 = vpow.pop %v2830
    %v2832 = vmul.f32 %v2815, 1.442695
    %v2833 = vpow.pop %v2832
    %v2834 = vmul.f32 %v2816, 1.442695
    %v2835 = vpow.pop %v2834
    %v2836 = vmul.f32 %v2817, 1.442695
    %v2837 = vpow.pop %v2836
    %v2838 = vmul.f32 %v2818, 1.442695
    %v2839 = vpow.pop %v2838
    %v2840 = vmul.f32 %v2819, 1.442695
    %v2841 = vpow.pop %v2840
    %v2842 = vmul.f32 %v2820, 1.442695
    %v2843 = vpow.pop %v2842
    %v2844 = vmul.f32 %v2821, 1.442695
    %v2845 = vpow.pop %v2844
    %v2846 = vmul.f32 %v2822, 1.442695
    %v2847 = vpow.pop %v2846
    %v2848 = vmul.f32 %v2823, 1.442695
    %v2849 = vpow.pop %v2848
    %v2850 = vmul.f32 %v2824, 1.442695
    %v2851 = vpow.pop %v2850
    %v2852 = vmul.f32 %v2825, 1.442695
    %v2853 = vpow.pop %v2852
    %v2854 = vmul.f32 %v2826, 1.442695
    %v2855 = vpow.pop %v2854
    %v2856 = vmul.f32 %v2827, 1.442695
    %v2857 = vpow.pop %v2856
    %v2858 = vmul.f32 %v2828, 1.442695
    %v2859 = vpow.pop %v2858
    %v2860 = vmul.f32 %v2829, 1.442695
    %v2861 = vpow.pop %v2860
    %v2862 = vadd.f32 %v2831, 1.0
    %v2863 = vadd.f32 %v2833, 1.0
    %v2864 = vadd.f32 %v2835, 1.0
    %v2865 = vadd.f32 %v2837, 1.0
    %v2866 = vadd.f32 %v2839, 1.0
    %v2867 = vadd.f32 %v2841, 1.0
    %v2868 = vadd.f32 %v2843, 1.0
    %v2869 = vadd.f32 %v2845, 1.0
    %v2870 = vadd.f32 %v2847, 1.0
    %v2871 = vadd.f32 %v2849, 1.0
    %v2872 = vadd.f32 %v2851, 1.0
    %v2873 = vadd.f32 %v2853, 1.0
    %v2874 = vadd.f32 %v2855, 1.0
    %v2875 = vadd.f32 %v2857, 1.0
    %v2876 = vadd.f32 %v2859, 1.0
    %v2877 = vadd.f32 %v2861, 1.0
    %v2878 = vrcp.pop %v2862
    %v2879 = vmul.f32 1.0, %v2878
    %v2880 = vrcp.pop %v2863
    %v2881 = vmul.f32 1.0, %v2880
    %v2882 = vrcp.pop %v2864
    %v2883 = vmul.f32 1.0, %v2882
    %v2884 = vrcp.pop %v2865
    %v2885 = vmul.f32 1.0, %v2884
    %v2886 = vrcp.pop %v2866
    %v2887 = vmul.f32 1.0, %v2886
    %v2888 = vrcp.pop %v2867
    %v2889 = vmul.f32 1.0, %v2888
    %v2890 = vrcp.pop %v2868
    %v2891 = vmul.f32 1.0, %v2890
    %v2892 = vrcp.pop %v2869
    %v2893 = vmul.f32 1.0, %v2892
    %v2894 = vrcp.pop %v2870
    %v2895 = vmul.f32 1.0, %v2894
    %v2896 = vrcp.pop %v2871
    %v2897 = vmul.f32 1.0, %v2896
    %v2898 = vrcp.pop %v2872
    %v2899 = vmul.f32 1.0, %v2898
    %v2900 = vrcp.pop %v2873
    %v2901 = vmul.f32 1.0, %v2900
    %v2902 = vrcp.pop %v2874
    %v2903 = vmul.f32 1.0, %v2902
    %v2904 = vrcp.pop %v2875
    %v2905 = vmul.f32 1.0, %v2904
    %v2906 = vrcp.pop %v2876
    %v2907 = vmul.f32 1.0, %v2906
    %v2908 = vrcp.pop %v2877
    %v2909 = vmul.f32 1.0, %v2908
    %v2910 = vlaneseq
    %v2911 = vshrl.u32 %v2910, 7
    %v2912 = vsub.s32 0, %v2911
    %v2913 = vrot.slane %v2450, %v2912
    %v2914 = vlaneseq
    %v2915 = vshrl.u32 %v2914, 7
    %v2916 = vsub.s32 0, %v2915
    %v2917 = vrot.slane %v2453, %v2916
    %2920 = vrot.lane.b32.xlu0 %v2913, 64
    %v2921 = vpop.permute.xlu0 %2920
    %2922 = vrot.lane.b32.xlu0 %v2917, 64
    %v2923 = vpop.permute.xlu0 %2922
    %v2926 = vmul.f32 %v2879, %v2921
    %v2927 = vmul.f32 %v2881, %v2921
    %v2928 = vmul.f32 %v2883, %v2921
    %v2929 = vmul.f32 %v2885, %v2921
    %v2930 = vmul.f32 %v2887, %v2921
    %v2931 = vmul.f32 %v2889, %v2921
    %v2932 = vmul.f32 %v2891, %v2921
    %v2933 = vmul.f32 %v2893, %v2921
    %v2934 = vmul.f32 %v2895, %v2923
    %v2935 = vmul.f32 %v2897, %v2923
    %v2936 = vmul.f32 %v2899, %v2923
    %v2937 = vmul.f32 %v2901, %v2923
    %v2938 = vmul.f32 %v2903, %v2923
    %v2939 = vmul.f32 %v2905, %v2923
    %v2940 = vmul.f32 %v2907, %v2923
    %v2941 = vmul.f32 %v2909, %v2923
    %v2942 = vlaneseq
    %v2943 = vshrl.u32 %v2942, 7
    %v2944 = vsub.s32 1, %v2943
    %v2945 = vrot.slane %v2450, %v2944
    %v2946 = vlaneseq
    %v2947 = vshrl.u32 %v2946, 7
    %v2948 = vsub.s32 1, %v2947
    %v2949 = vrot.slane %v2453, %v2948
    %2952 = vrot.lane.b32.xlu0 %v2945, 64
    %v2953 = vpop.permute.xlu0 %2952
    %2954 = vrot.lane.b32.xlu0 %v2949, 64
    %v2955 = vpop.permute.xlu0 %2954
    %v2958 = vmul.f32 %v2879, %v2953
    %v2959 = vmul.f32 %v2881, %v2953
    %v2960 = vmul.f32 %v2883, %v2953
    %v2961 = vmul.f32 %v2885, %v2953
    %v2962 = vmul.f32 %v2887, %v2953
    %v2963 = vmul.f32 %v2889, %v2953
    %v2964 = vmul.f32 %v2891, %v2953
    %v2965 = vmul.f32 %v2893, %v2953
    %v2966 = vmul.f32 %v2895, %v2955
    %v2967 = vmul.f32 %v2897, %v2955
    %v2968 = vmul.f32 %v2899, %v2955
    %v2969 = vmul.f32 %v2901, %v2955
    %v2970 = vmul.f32 %v2903, %v2955
    %v2971 = vmul.f32 %v2905, %v2955
    %v2972 = vmul.f32 %v2907, %v2955
    %v2973 = vmul.f32 %v2909, %v2955
    %v2990 = vrot.slane %v2958, 1
    %v2991 = vrot.slane %v2959, 1
    %v2992 = vrot.slane %v2960, 1
    %v2993 = vrot.slane %v2961, 1
    %v2994 = vrot.slane %v2962, 1
    %v2995 = vrot.slane %v2963, 1
    %v2996 = vrot.slane %v2964, 1
    %v2997 = vrot.slane %v2965, 1
    %v2998 = vrot.slane %v2966, 1
    %v2999 = vrot.slane %v2967, 1
    %v3000 = vrot.slane %v2968, 1
    %v3001 = vrot.slane %v2969, 1
    %v3002 = vrot.slane %v2970, 1
    %v3003 = vrot.slane %v2971, 1
    %v3004 = vrot.slane %v2972, 1
    %v3005 = vrot.slane %v2973, 1
    %v3022 = vadd.f32 %v2926, %v2990
    %v3023 = vadd.f32 %v2927, %v2991
    %v3024 = vadd.f32 %v2928, %v2992
    %v3025 = vadd.f32 %v2929, %v2993
    %v3026 = vadd.f32 %v2930, %v2994
    %v3027 = vadd.f32 %v2931, %v2995
    %v3028 = vadd.f32 %v2932, %v2996
    %v3029 = vadd.f32 %v2933, %v2997
    %v3030 = vadd.f32 %v2934, %v2998
    %v3031 = vadd.f32 %v2935, %v2999
    %v3032 = vadd.f32 %v2936, %v3000
    %v3033 = vadd.f32 %v2937, %v3001
    %v3034 = vadd.f32 %v2938, %v3002
    %v3035 = vadd.f32 %v2939, %v3003
    %v3036 = vadd.f32 %v2940, %v3004
    %v3037 = vadd.f32 %v2941, %v3005
    %v3054 = vrot.slane %v2879, 1
    %v3055 = vrot.slane %v2881, 1
    %v3056 = vrot.slane %v2883, 1
    %v3057 = vrot.slane %v2885, 1
    %v3058 = vrot.slane %v2887, 1
    %v3059 = vrot.slane %v2889, 1
    %v3060 = vrot.slane %v2891, 1
    %v3061 = vrot.slane %v2893, 1
    %v3062 = vrot.slane %v2895, 1
    %v3063 = vrot.slane %v2897, 1
    %v3064 = vrot.slane %v2899, 1
    %v3065 = vrot.slane %v2901, 1
    %v3066 = vrot.slane %v2903, 1
    %v3067 = vrot.slane %v2905, 1
    %v3068 = vrot.slane %v2907, 1
    %v3069 = vrot.slane %v2909, 1
    %v3086 = vadd.f32 %v2879, %v3054
    %v3087 = vadd.f32 %v2881, %v3055
    %v3088 = vadd.f32 %v2883, %v3056
    %v3089 = vadd.f32 %v2885, %v3057
    %v3090 = vadd.f32 %v2887, %v3058
    %v3091 = vadd.f32 %v2889, %v3059
    %v3092 = vadd.f32 %v2891, %v3060
    %v3093 = vadd.f32 %v2893, %v3061
    %v3094 = vadd.f32 %v2895, %v3062
    %v3095 = vadd.f32 %v2897, %v3063
    %v3096 = vadd.f32 %v2899, %v3064
    %v3097 = vadd.f32 %v2901, %v3065
    %v3098 = vadd.f32 %v2903, %v3066
    %v3099 = vadd.f32 %v2905, %v3067
    %v3100 = vadd.f32 %v2907, %v3068
    %v3101 = vadd.f32 %v2909, %v3069
    %v3102 = vlaneseq
    %v3103 = vshrl.u32 %v3102, 7
    %v3104 = vsub.s32 2, %v3103
    %v3105 = vrot.slane %v2450, %v3104
    %v3106 = vlaneseq
    %v3107 = vshrl.u32 %v3106, 7
    %v3108 = vsub.s32 2, %v3107
    %v3109 = vrot.slane %v2453, %v3108
    %3112 = vrot.lane.b32.xlu0 %v3105, 64
    %v3113 = vpop.permute.xlu0 %3112
    %3114 = vrot.lane.b32.xlu0 %v3109, 64
    %v3115 = vpop.permute.xlu0 %3114
    %v3118 = vmul.f32 %v2879, %v3113
    %v3119 = vmul.f32 %v2881, %v3113
    %v3120 = vmul.f32 %v2883, %v3113
    %v3121 = vmul.f32 %v2885, %v3113
    %v3122 = vmul.f32 %v2887, %v3113
    %v3123 = vmul.f32 %v2889, %v3113
    %v3124 = vmul.f32 %v2891, %v3113
    %v3125 = vmul.f32 %v2893, %v3113
    %v3126 = vmul.f32 %v2895, %v3115
    %v3127 = vmul.f32 %v2897, %v3115
    %v3128 = vmul.f32 %v2899, %v3115
    %v3129 = vmul.f32 %v2901, %v3115
    %v3130 = vmul.f32 %v2903, %v3115
    %v3131 = vmul.f32 %v2905, %v3115
    %v3132 = vmul.f32 %v2907, %v3115
    %v3133 = vmul.f32 %v2909, %v3115
    %v3150 = vrot.slane %v3118, 2
    %v3151 = vrot.slane %v3119, 2
    %v3152 = vrot.slane %v3120, 2
    %v3153 = vrot.slane %v3121, 2
    %v3154 = vrot.slane %v3122, 2
    %v3155 = vrot.slane %v3123, 2
    %v3156 = vrot.slane %v3124, 2
    %v3157 = vrot.slane %v3125, 2
    %v3158 = vrot.slane %v3126, 2
    %v3159 = vrot.slane %v3127, 2
    %v3160 = vrot.slane %v3128, 2
    %v3161 = vrot.slane %v3129, 2
    %v3162 = vrot.slane %v3130, 2
    %v3163 = vrot.slane %v3131, 2
    %v3164 = vrot.slane %v3132, 2
    %v3165 = vrot.slane %v3133, 2
    %v3182 = vadd.f32 %v3022, %v3150
    %v3183 = vadd.f32 %v3023, %v3151
    %v3184 = vadd.f32 %v3024, %v3152
    %v3185 = vadd.f32 %v3025, %v3153
    %v3186 = vadd.f32 %v3026, %v3154
    %v3187 = vadd.f32 %v3027, %v3155
    %v3188 = vadd.f32 %v3028, %v3156
    %v3189 = vadd.f32 %v3029, %v3157
    %v3190 = vadd.f32 %v3030, %v3158
    %v3191 = vadd.f32 %v3031, %v3159
    %v3192 = vadd.f32 %v3032, %v3160
    %v3193 = vadd.f32 %v3033, %v3161
    %v3194 = vadd.f32 %v3034, %v3162
    %v3195 = vadd.f32 %v3035, %v3163
    %v3196 = vadd.f32 %v3036, %v3164
    %v3197 = vadd.f32 %v3037, %v3165
    %v3198 = vrot.slane %v2879, 2
    %v3199 = vrot.slane %v2881, 2
    %v3200 = vrot.slane %v2883, 2
    %v3201 = vrot.slane %v2885, 2
    %v3202 = vrot.slane %v2887, 2
    %v3203 = vrot.slane %v2889, 2
    %v3204 = vrot.slane %v2891, 2
    %v3205 = vrot.slane %v2893, 2
    %v3206 = vrot.slane %v2895, 2
    %v3207 = vrot.slane %v2897, 2
    %v3208 = vrot.slane %v2899, 2
    %v3209 = vrot.slane %v2901, 2
    %v3210 = vrot.slane %v2903, 2
    %v3211 = vrot.slane %v2905, 2
    %v3212 = vrot.slane %v2907, 2
    %v3213 = vrot.slane %v2909, 2
    %v3230 = vadd.f32 %v3086, %v3198
    %v3231 = vadd.f32 %v3087, %v3199
    %v3232 = vadd.f32 %v3088, %v3200
    %v3233 = vadd.f32 %v3089, %v3201
    %v3234 = vadd.f32 %v3090, %v3202
    %v3235 = vadd.f32 %v3091, %v3203
    %v3236 = vadd.f32 %v3092, %v3204
    %v3237 = vadd.f32 %v3093, %v3205
    %v3238 = vadd.f32 %v3094, %v3206
    %v3239 = vadd.f32 %v3095, %v3207
    %v3240 = vadd.f32 %v3096, %v3208
    %v3241 = vadd.f32 %v3097, %v3209
    %v3242 = vadd.f32 %v3098, %v3210
    %v3243 = vadd.f32 %v3099, %v3211
    %v3244 = vadd.f32 %v3100, %v3212
    %v3245 = vadd.f32 %v3101, %v3213
    %v3246 = vlaneseq
    %v3247 = vshrl.u32 %v3246, 7
    %v3248 = vsub.s32 3, %v3247
    %v3249 = vrot.slane %v2450, %v3248
    %v3250 = vlaneseq
    %v3251 = vshrl.u32 %v3250, 7
    %v3252 = vsub.s32 3, %v3251
    %v3253 = vrot.slane %v2453, %v3252
    %3256 = vrot.lane.b32.xlu0 %v3249, 64
    %v3257 = vpop.permute.xlu0 %3256
    %3258 = vrot.lane.b32.xlu0 %v3253, 64
    %v3259 = vpop.permute.xlu0 %3258
    %v3262 = vmul.f32 %v2879, %v3257
    %v3263 = vmul.f32 %v2881, %v3257
    %v3264 = vmul.f32 %v2883, %v3257
    %v3265 = vmul.f32 %v2885, %v3257
    %v3266 = vmul.f32 %v2887, %v3257
    %v3267 = vmul.f32 %v2889, %v3257
    %v3268 = vmul.f32 %v2891, %v3257
    %v3269 = vmul.f32 %v2893, %v3257
    %v3270 = vmul.f32 %v2895, %v3259
    %v3271 = vmul.f32 %v2897, %v3259
    %v3272 = vmul.f32 %v2899, %v3259
    %v3273 = vmul.f32 %v2901, %v3259
    %v3274 = vmul.f32 %v2903, %v3259
    %v3275 = vmul.f32 %v2905, %v3259
    %v3276 = vmul.f32 %v2907, %v3259
    %v3277 = vmul.f32 %v2909, %v3259
    %v3294 = vrot.slane %v3262, 3
    %v3295 = vrot.slane %v3263, 3
    %v3296 = vrot.slane %v3264, 3
    %v3297 = vrot.slane %v3265, 3
    %v3298 = vrot.slane %v3266, 3
    %v3299 = vrot.slane %v3267, 3
    %v3300 = vrot.slane %v3268, 3
    %v3301 = vrot.slane %v3269, 3
    %v3302 = vrot.slane %v3270, 3
    %v3303 = vrot.slane %v3271, 3
    %v3304 = vrot.slane %v3272, 3
    %v3305 = vrot.slane %v3273, 3
    %v3306 = vrot.slane %v3274, 3
    %v3307 = vrot.slane %v3275, 3
    %v3308 = vrot.slane %v3276, 3
    %v3309 = vrot.slane %v3277, 3
    %v3326 = vadd.f32 %v3182, %v3294
    %v3327 = vadd.f32 %v3183, %v3295
    %v3328 = vadd.f32 %v3184, %v3296
    %v3329 = vadd.f32 %v3185, %v3297
    %v3330 = vadd.f32 %v3186, %v3298
    %v3331 = vadd.f32 %v3187, %v3299
    %v3332 = vadd.f32 %v3188, %v3300
    %v3333 = vadd.f32 %v3189, %v3301
    %v3334 = vadd.f32 %v3190, %v3302
    %v3335 = vadd.f32 %v3191, %v3303
    %v3336 = vadd.f32 %v3192, %v3304
    %v3337 = vadd.f32 %v3193, %v3305
    %v3338 = vadd.f32 %v3194, %v3306
    %v3339 = vadd.f32 %v3195, %v3307
    %v3340 = vadd.f32 %v3196, %v3308
    %v3341 = vadd.f32 %v3197, %v3309
    %v3342 = vrot.slane %v2879, 3
    %v3343 = vrot.slane %v2881, 3
    %v3344 = vrot.slane %v2883, 3
    %v3345 = vrot.slane %v2885, 3
    %v3346 = vrot.slane %v2887, 3
    %v3347 = vrot.slane %v2889, 3
    %v3348 = vrot.slane %v2891, 3
    %v3349 = vrot.slane %v2893, 3
    %v3350 = vrot.slane %v2895, 3
    %v3351 = vrot.slane %v2897, 3
    %v3352 = vrot.slane %v2899, 3
    %v3353 = vrot.slane %v2901, 3
    %v3354 = vrot.slane %v2903, 3
    %v3355 = vrot.slane %v2905, 3
    %v3356 = vrot.slane %v2907, 3
    %v3357 = vrot.slane %v2909, 3
    %v3374 = vadd.f32 %v3230, %v3342
    %v3375 = vadd.f32 %v3231, %v3343
    %v3376 = vadd.f32 %v3232, %v3344
    %v3377 = vadd.f32 %v3233, %v3345
    %v3378 = vadd.f32 %v3234, %v3346
    %v3379 = vadd.f32 %v3235, %v3347
    %v3380 = vadd.f32 %v3236, %v3348
    %v3381 = vadd.f32 %v3237, %v3349
    %v3382 = vadd.f32 %v3238, %v3350
    %v3383 = vadd.f32 %v3239, %v3351
    %v3384 = vadd.f32 %v3240, %v3352
    %v3385 = vadd.f32 %v3241, %v3353
    %v3386 = vadd.f32 %v3242, %v3354
    %v3387 = vadd.f32 %v3243, %v3355
    %v3388 = vadd.f32 %v3244, %v3356
    %v3389 = vadd.f32 %v3245, %v3357
    %v3390 = vlaneseq
    %v3391 = vshrl.u32 %v3390, 7
    %v3392 = vsub.s32 4, %v3391
    %v3393 = vrot.slane %v2450, %v3392
    %v3394 = vlaneseq
    %v3395 = vshrl.u32 %v3394, 7
    %v3396 = vsub.s32 4, %v3395
    %v3397 = vrot.slane %v2453, %v3396
    %3400 = vrot.lane.b32.xlu0 %v3393, 64
    %v3401 = vpop.permute.xlu0 %3400
    %3402 = vrot.lane.b32.xlu0 %v3397, 64
    %v3403 = vpop.permute.xlu0 %3402
    %v3406 = vmul.f32 %v2879, %v3401
    %v3407 = vmul.f32 %v2881, %v3401
    %v3408 = vmul.f32 %v2883, %v3401
    %v3409 = vmul.f32 %v2885, %v3401
    %v3410 = vmul.f32 %v2887, %v3401
    %v3411 = vmul.f32 %v2889, %v3401
    %v3412 = vmul.f32 %v2891, %v3401
    %v3413 = vmul.f32 %v2893, %v3401
    %v3414 = vmul.f32 %v2895, %v3403
    %v3415 = vmul.f32 %v2897, %v3403
    %v3416 = vmul.f32 %v2899, %v3403
    %v3417 = vmul.f32 %v2901, %v3403
    %v3418 = vmul.f32 %v2903, %v3403
    %v3419 = vmul.f32 %v2905, %v3403
    %v3420 = vmul.f32 %v2907, %v3403
    %v3421 = vmul.f32 %v2909, %v3403
    %v3438 = vrot.slane %v3406, 4
    %v3439 = vrot.slane %v3407, 4
    %v3440 = vrot.slane %v3408, 4
    %v3441 = vrot.slane %v3409, 4
    %v3442 = vrot.slane %v3410, 4
    %v3443 = vrot.slane %v3411, 4
    %v3444 = vrot.slane %v3412, 4
    %v3445 = vrot.slane %v3413, 4
    %v3446 = vrot.slane %v3414, 4
    %v3447 = vrot.slane %v3415, 4
    %v3448 = vrot.slane %v3416, 4
    %v3449 = vrot.slane %v3417, 4
    %v3450 = vrot.slane %v3418, 4
    %v3451 = vrot.slane %v3419, 4
    %v3452 = vrot.slane %v3420, 4
    %v3453 = vrot.slane %v3421, 4
    %v3470 = vadd.f32 %v3326, %v3438
    %v3471 = vadd.f32 %v3327, %v3439
    %v3472 = vadd.f32 %v3328, %v3440
    %v3473 = vadd.f32 %v3329, %v3441
    %v3474 = vadd.f32 %v3330, %v3442
    %v3475 = vadd.f32 %v3331, %v3443
    %v3476 = vadd.f32 %v3332, %v3444
    %v3477 = vadd.f32 %v3333, %v3445
    %v3478 = vadd.f32 %v3334, %v3446
    %v3479 = vadd.f32 %v3335, %v3447
    %v3480 = vadd.f32 %v3336, %v3448
    %v3481 = vadd.f32 %v3337, %v3449
    %v3482 = vadd.f32 %v3338, %v3450
    %v3483 = vadd.f32 %v3339, %v3451
    %v3484 = vadd.f32 %v3340, %v3452
    %v3485 = vadd.f32 %v3341, %v3453
    %v3486 = vrot.slane %v2879, 4
    %v3487 = vrot.slane %v2881, 4
    %v3488 = vrot.slane %v2883, 4
    %v3489 = vrot.slane %v2885, 4
    %v3490 = vrot.slane %v2887, 4
    %v3491 = vrot.slane %v2889, 4
    %v3492 = vrot.slane %v2891, 4
    %v3493 = vrot.slane %v2893, 4
    %v3494 = vrot.slane %v2895, 4
    %v3495 = vrot.slane %v2897, 4
    %v3496 = vrot.slane %v2899, 4
    %v3497 = vrot.slane %v2901, 4
    %v3498 = vrot.slane %v2903, 4
    %v3499 = vrot.slane %v2905, 4
    %v3500 = vrot.slane %v2907, 4
    %v3501 = vrot.slane %v2909, 4
    %v3518 = vadd.f32 %v3374, %v3486
    %v3519 = vadd.f32 %v3375, %v3487
    %v3520 = vadd.f32 %v3376, %v3488
    %v3521 = vadd.f32 %v3377, %v3489
    %v3522 = vadd.f32 %v3378, %v3490
    %v3523 = vadd.f32 %v3379, %v3491
    %v3524 = vadd.f32 %v3380, %v3492
    %v3525 = vadd.f32 %v3381, %v3493
    %v3526 = vadd.f32 %v3382, %v3494
    %v3527 = vadd.f32 %v3383, %v3495
    %v3528 = vadd.f32 %v3384, %v3496
    %v3529 = vadd.f32 %v3385, %v3497
    %v3530 = vadd.f32 %v3386, %v3498
    %v3531 = vadd.f32 %v3387, %v3499
    %v3532 = vadd.f32 %v3388, %v3500
    %v3533 = vadd.f32 %v3389, %v3501
    %v3534 = vlaneseq
    %v3535 = vshrl.u32 %v3534, 7
    %v3536 = vsub.s32 5, %v3535
    %v3537 = vrot.slane %v2450, %v3536
    %v3538 = vlaneseq
    %v3539 = vshrl.u32 %v3538, 7
    %v3540 = vsub.s32 5, %v3539
    %v3541 = vrot.slane %v2453, %v3540
    %3544 = vrot.lane.b32.xlu0 %v3537, 64
    %v3545 = vpop.permute.xlu0 %3544
    %3546 = vrot.lane.b32.xlu0 %v3541, 64
    %v3547 = vpop.permute.xlu0 %3546
    %v3550 = vmul.f32 %v2879, %v3545
    %v3551 = vmul.f32 %v2881, %v3545
    %v3552 = vmul.f32 %v2883, %v3545
    %v3553 = vmul.f32 %v2885, %v3545
    %v3554 = vmul.f32 %v2887, %v3545
    %v3555 = vmul.f32 %v2889, %v3545
    %v3556 = vmul.f32 %v2891, %v3545
    %v3557 = vmul.f32 %v2893, %v3545
    %v3558 = vmul.f32 %v2895, %v3547
    %v3559 = vmul.f32 %v2897, %v3547
    %v3560 = vmul.f32 %v2899, %v3547
    %v3561 = vmul.f32 %v2901, %v3547
    %v3562 = vmul.f32 %v2903, %v3547
    %v3563 = vmul.f32 %v2905, %v3547
    %v3564 = vmul.f32 %v2907, %v3547
    %v3565 = vmul.f32 %v2909, %v3547
    %v3582 = vrot.slane %v3550, 5
    %v3583 = vrot.slane %v3551, 5
    %v3584 = vrot.slane %v3552, 5
    %v3585 = vrot.slane %v3553, 5
    %v3586 = vrot.slane %v3554, 5
    %v3587 = vrot.slane %v3555, 5
    %v3588 = vrot.slane %v3556, 5
    %v3589 = vrot.slane %v3557, 5
    %v3590 = vrot.slane %v3558, 5
    %v3591 = vrot.slane %v3559, 5
    %v3592 = vrot.slane %v3560, 5
    %v3593 = vrot.slane %v3561, 5
    %v3594 = vrot.slane %v3562, 5
    %v3595 = vrot.slane %v3563, 5
    %v3596 = vrot.slane %v3564, 5
    %v3597 = vrot.slane %v3565, 5
    %v3614 = vadd.f32 %v3470, %v3582
    %v3615 = vadd.f32 %v3471, %v3583
    %v3616 = vadd.f32 %v3472, %v3584
    %v3617 = vadd.f32 %v3473, %v3585
    %v3618 = vadd.f32 %v3474, %v3586
    %v3619 = vadd.f32 %v3475, %v3587
    %v3620 = vadd.f32 %v3476, %v3588
    %v3621 = vadd.f32 %v3477, %v3589
    %v3622 = vadd.f32 %v3478, %v3590
    %v3623 = vadd.f32 %v3479, %v3591
    %v3624 = vadd.f32 %v3480, %v3592
    %v3625 = vadd.f32 %v3481, %v3593
    %v3626 = vadd.f32 %v3482, %v3594
    %v3627 = vadd.f32 %v3483, %v3595
    %v3628 = vadd.f32 %v3484, %v3596
    %v3629 = vadd.f32 %v3485, %v3597
    %v3630 = vrot.slane %v2879, 5
    %v3631 = vrot.slane %v2881, 5
    %v3632 = vrot.slane %v2883, 5
    %v3633 = vrot.slane %v2885, 5
    %v3634 = vrot.slane %v2887, 5
    %v3635 = vrot.slane %v2889, 5
    %v3636 = vrot.slane %v2891, 5
    %v3637 = vrot.slane %v2893, 5
    %v3638 = vrot.slane %v2895, 5
    %v3639 = vrot.slane %v2897, 5
    %v3640 = vrot.slane %v2899, 5
    %v3641 = vrot.slane %v2901, 5
    %v3642 = vrot.slane %v2903, 5
    %v3643 = vrot.slane %v2905, 5
    %v3644 = vrot.slane %v2907, 5
    %v3645 = vrot.slane %v2909, 5
    %v3662 = vadd.f32 %v3518, %v3630
    %v3663 = vadd.f32 %v3519, %v3631
    %v3664 = vadd.f32 %v3520, %v3632
    %v3665 = vadd.f32 %v3521, %v3633
    %v3666 = vadd.f32 %v3522, %v3634
    %v3667 = vadd.f32 %v3523, %v3635
    %v3668 = vadd.f32 %v3524, %v3636
    %v3669 = vadd.f32 %v3525, %v3637
    %v3670 = vadd.f32 %v3526, %v3638
    %v3671 = vadd.f32 %v3527, %v3639
    %v3672 = vadd.f32 %v3528, %v3640
    %v3673 = vadd.f32 %v3529, %v3641
    %v3674 = vadd.f32 %v3530, %v3642
    %v3675 = vadd.f32 %v3531, %v3643
    %v3676 = vadd.f32 %v3532, %v3644
    %v3677 = vadd.f32 %v3533, %v3645
    %v3678 = vlaneseq
    %v3679 = vshrl.u32 %v3678, 7
    %v3680 = vsub.s32 6, %v3679
    %v3681 = vrot.slane %v2450, %v3680
    %v3682 = vlaneseq
    %v3683 = vshrl.u32 %v3682, 7
    %v3684 = vsub.s32 6, %v3683
    %v3685 = vrot.slane %v2453, %v3684
    %3688 = vrot.lane.b32.xlu0 %v3681, 64
    %v3689 = vpop.permute.xlu0 %3688
    %3690 = vrot.lane.b32.xlu0 %v3685, 64
    %v3691 = vpop.permute.xlu0 %3690
    %v3694 = vmul.f32 %v2879, %v3689
    %v3695 = vmul.f32 %v2881, %v3689
    %v3696 = vmul.f32 %v2883, %v3689
    %v3697 = vmul.f32 %v2885, %v3689
    %v3698 = vmul.f32 %v2887, %v3689
    %v3699 = vmul.f32 %v2889, %v3689
    %v3700 = vmul.f32 %v2891, %v3689
    %v3701 = vmul.f32 %v2893, %v3689
    %v3702 = vmul.f32 %v2895, %v3691
    %v3703 = vmul.f32 %v2897, %v3691
    %v3704 = vmul.f32 %v2899, %v3691
    %v3705 = vmul.f32 %v2901, %v3691
    %v3706 = vmul.f32 %v2903, %v3691
    %v3707 = vmul.f32 %v2905, %v3691
    %v3708 = vmul.f32 %v2907, %v3691
    %v3709 = vmul.f32 %v2909, %v3691
    %v3726 = vrot.slane %v3694, 6
    %v3727 = vrot.slane %v3695, 6
    %v3728 = vrot.slane %v3696, 6
    %v3729 = vrot.slane %v3697, 6
    %v3730 = vrot.slane %v3698, 6
    %v3731 = vrot.slane %v3699, 6
    %v3732 = vrot.slane %v3700, 6
    %v3733 = vrot.slane %v3701, 6
    %v3734 = vrot.slane %v3702, 6
    %v3735 = vrot.slane %v3703, 6
    %v3736 = vrot.slane %v3704, 6
    %v3737 = vrot.slane %v3705, 6
    %v3738 = vrot.slane %v3706, 6
    %v3739 = vrot.slane %v3707, 6
    %v3740 = vrot.slane %v3708, 6
    %v3741 = vrot.slane %v3709, 6
    %v3758 = vadd.f32 %v3614, %v3726
    %v3759 = vadd.f32 %v3615, %v3727
    %v3760 = vadd.f32 %v3616, %v3728
    %v3761 = vadd.f32 %v3617, %v3729
    %v3762 = vadd.f32 %v3618, %v3730
    %v3763 = vadd.f32 %v3619, %v3731
    %v3764 = vadd.f32 %v3620, %v3732
    %v3765 = vadd.f32 %v3621, %v3733
    %v3766 = vadd.f32 %v3622, %v3734
    %v3767 = vadd.f32 %v3623, %v3735
    %v3768 = vadd.f32 %v3624, %v3736
    %v3769 = vadd.f32 %v3625, %v3737
    %v3770 = vadd.f32 %v3626, %v3738
    %v3771 = vadd.f32 %v3627, %v3739
    %v3772 = vadd.f32 %v3628, %v3740
    %v3773 = vadd.f32 %v3629, %v3741
    %v3774 = vrot.slane %v2879, 6
    %v3775 = vrot.slane %v2881, 6
    %v3776 = vrot.slane %v2883, 6
    %v3777 = vrot.slane %v2885, 6
    %v3778 = vrot.slane %v2887, 6
    %v3779 = vrot.slane %v2889, 6
    %v3780 = vrot.slane %v2891, 6
    %v3781 = vrot.slane %v2893, 6
    %v3782 = vrot.slane %v2895, 6
    %v3783 = vrot.slane %v2897, 6
    %v3784 = vrot.slane %v2899, 6
    %v3785 = vrot.slane %v2901, 6
    %v3786 = vrot.slane %v2903, 6
    %v3787 = vrot.slane %v2905, 6
    %v3788 = vrot.slane %v2907, 6
    %v3789 = vrot.slane %v2909, 6
    %v3806 = vadd.f32 %v3662, %v3774
    %v3807 = vadd.f32 %v3663, %v3775
    %v3808 = vadd.f32 %v3664, %v3776
    %v3809 = vadd.f32 %v3665, %v3777
    %v3810 = vadd.f32 %v3666, %v3778
    %v3811 = vadd.f32 %v3667, %v3779
    %v3812 = vadd.f32 %v3668, %v3780
    %v3813 = vadd.f32 %v3669, %v3781
    %v3814 = vadd.f32 %v3670, %v3782
    %v3815 = vadd.f32 %v3671, %v3783
    %v3816 = vadd.f32 %v3672, %v3784
    %v3817 = vadd.f32 %v3673, %v3785
    %v3818 = vadd.f32 %v3674, %v3786
    %v3819 = vadd.f32 %v3675, %v3787
    %v3820 = vadd.f32 %v3676, %v3788
    %v3821 = vadd.f32 %v3677, %v3789
    %v3822 = vlaneseq
    %v3823 = vshrl.u32 %v3822, 7
    %v3824 = vsub.s32 7, %v3823
    %v3825 = vrot.slane %v2450, %v3824
    %v3826 = vlaneseq
    %v3827 = vshrl.u32 %v3826, 7
    %v3828 = vsub.s32 7, %v3827
    %v3829 = vrot.slane %v2453, %v3828
    %3832 = vrot.lane.b32.xlu0 %v3825, 64
    %v3833 = vpop.permute.xlu0 %3832
    %3834 = vrot.lane.b32.xlu0 %v3829, 64
    %v3835 = vpop.permute.xlu0 %3834
    %v3838 = vmul.f32 %v2879, %v3833
    %v3839 = vmul.f32 %v2881, %v3833
    %v3840 = vmul.f32 %v2883, %v3833
    %v3841 = vmul.f32 %v2885, %v3833
    %v3842 = vmul.f32 %v2887, %v3833
    %v3843 = vmul.f32 %v2889, %v3833
    %v3844 = vmul.f32 %v2891, %v3833
    %v3845 = vmul.f32 %v2893, %v3833
    %v3846 = vmul.f32 %v2895, %v3835
    %v3847 = vmul.f32 %v2897, %v3835
    %v3848 = vmul.f32 %v2899, %v3835
    %v3849 = vmul.f32 %v2901, %v3835
    %v3850 = vmul.f32 %v2903, %v3835
    %v3851 = vmul.f32 %v2905, %v3835
    %v3852 = vmul.f32 %v2907, %v3835
    %v3853 = vmul.f32 %v2909, %v3835
    %v3870 = vrot.slane %v3838, 7
    %v3871 = vrot.slane %v3839, 7
    %v3872 = vrot.slane %v3840, 7
    %v3873 = vrot.slane %v3841, 7
    %v3874 = vrot.slane %v3842, 7
    %v3875 = vrot.slane %v3843, 7
    %v3876 = vrot.slane %v3844, 7
    %v3877 = vrot.slane %v3845, 7
    %v3878 = vrot.slane %v3846, 7
    %v3879 = vrot.slane %v3847, 7
    %v3880 = vrot.slane %v3848, 7
    %v3881 = vrot.slane %v3849, 7
    %v3882 = vrot.slane %v3850, 7
    %v3883 = vrot.slane %v3851, 7
    %v3884 = vrot.slane %v3852, 7
    %v3885 = vrot.slane %v3853, 7
    %v3902 = vadd.f32 %v3758, %v3870
    %v3903 = vadd.f32 %v3759, %v3871
    %v3904 = vadd.f32 %v3760, %v3872
    %v3905 = vadd.f32 %v3761, %v3873
    %v3906 = vadd.f32 %v3762, %v3874
    %v3907 = vadd.f32 %v3763, %v3875
    %v3908 = vadd.f32 %v3764, %v3876
    %v3909 = vadd.f32 %v3765, %v3877
    %v3910 = vadd.f32 %v3766, %v3878
    %v3911 = vadd.f32 %v3767, %v3879
    %v3912 = vadd.f32 %v3768, %v3880
    %v3913 = vadd.f32 %v3769, %v3881
    %v3914 = vadd.f32 %v3770, %v3882
    %v3915 = vadd.f32 %v3771, %v3883
    %v3916 = vadd.f32 %v3772, %v3884
    %v3917 = vadd.f32 %v3773, %v3885
    %v3918 = vrot.slane %v2879, 7
    %v3919 = vrot.slane %v2881, 7
    %v3920 = vrot.slane %v2883, 7
    %v3921 = vrot.slane %v2885, 7
    %v3922 = vrot.slane %v2887, 7
    %v3923 = vrot.slane %v2889, 7
    %v3924 = vrot.slane %v2891, 7
    %v3925 = vrot.slane %v2893, 7
    %v3926 = vrot.slane %v2895, 7
    %v3927 = vrot.slane %v2897, 7
    %v3928 = vrot.slane %v2899, 7
    %v3929 = vrot.slane %v2901, 7
    %v3930 = vrot.slane %v2903, 7
    %v3931 = vrot.slane %v2905, 7
    %v3932 = vrot.slane %v2907, 7
    %v3933 = vrot.slane %v2909, 7
    %v3950 = vadd.f32 %v3806, %v3918
    %v3951 = vadd.f32 %v3807, %v3919
    %v3952 = vadd.f32 %v3808, %v3920
    %v3953 = vadd.f32 %v3809, %v3921
    %v3954 = vadd.f32 %v3810, %v3922
    %v3955 = vadd.f32 %v3811, %v3923
    %v3956 = vadd.f32 %v3812, %v3924
    %v3957 = vadd.f32 %v3813, %v3925
    %v3958 = vadd.f32 %v3814, %v3926
    %v3959 = vadd.f32 %v3815, %v3927
    %v3960 = vadd.f32 %v3816, %v3928
    %v3961 = vadd.f32 %v3817, %v3929
    %v3962 = vadd.f32 %v3818, %v3930
    %v3963 = vadd.f32 %v3819, %v3931
    %v3964 = vadd.f32 %v3820, %v3932
    %v3965 = vadd.f32 %v3821, %v3933
    %v3966 = vadd.f32 %v3950, 1e-20
    %v3967 = vadd.f32 %v3951, 1e-20
    %v3968 = vadd.f32 %v3952, 1e-20
    %v3969 = vadd.f32 %v3953, 1e-20
    %v3970 = vadd.f32 %v3954, 1e-20
    %v3971 = vadd.f32 %v3955, 1e-20
    %v3972 = vadd.f32 %v3956, 1e-20
    %v3973 = vadd.f32 %v3957, 1e-20
    %v3974 = vadd.f32 %v3958, 1e-20
    %v3975 = vadd.f32 %v3959, 1e-20
    %v3976 = vadd.f32 %v3960, 1e-20
    %v3977 = vadd.f32 %v3961, 1e-20
    %v3978 = vadd.f32 %v3962, 1e-20
    %v3979 = vadd.f32 %v3963, 1e-20
    %v3980 = vadd.f32 %v3964, 1e-20
    %v3981 = vadd.f32 %v3965, 1e-20
    %v3982 = vrcp.pop %v3966
    %v3983 = vmul.f32 %v3902, %v3982
    %v3984 = vrcp.pop %v3967
    %v3985 = vmul.f32 %v3903, %v3984
    %v3986 = vrcp.pop %v3968
    %v3987 = vmul.f32 %v3904, %v3986
    %v3988 = vrcp.pop %v3969
    %v3989 = vmul.f32 %v3905, %v3988
    %v3990 = vrcp.pop %v3970
    %v3991 = vmul.f32 %v3906, %v3990
    %v3992 = vrcp.pop %v3971
    %v3993 = vmul.f32 %v3907, %v3992
    %v3994 = vrcp.pop %v3972
    %v3995 = vmul.f32 %v3908, %v3994
    %v3996 = vrcp.pop %v3973
    %v3997 = vmul.f32 %v3909, %v3996
    %v3998 = vrcp.pop %v3974
    %v3999 = vmul.f32 %v3910, %v3998
    %v4000 = vrcp.pop %v3975
    %v4001 = vmul.f32 %v3911, %v4000
    %v4002 = vrcp.pop %v3976
    %v4003 = vmul.f32 %v3912, %v4002
    %v4004 = vrcp.pop %v3977
    %v4005 = vmul.f32 %v3913, %v4004
    %v4006 = vrcp.pop %v3978
    %v4007 = vmul.f32 %v3914, %v4006
    %v4008 = vrcp.pop %v3979
    %v4009 = vmul.f32 %v3915, %v4008
    %v4010 = vrcp.pop %v3980
    %v4011 = vmul.f32 %v3916, %v4010
    %v4012 = vrcp.pop %v3981
    %v4013 = vmul.f32 %v3917, %v4012
    %v4030 = vrot.slane %v3985, 7
    %v4031 = vsel %vm2131, %v4030, %v3983
    %v4032 = vrot.slane %v3987, 6
    %v4033 = vsel %vm2134, %v4032, %v4031
    %v4034 = vrot.slane %v3989, 5
    %v4035 = vsel %vm2137, %v4034, %v4033
    %v4036 = vrot.slane %v3991, 4
    %v4037 = vsel %vm2140, %v4036, %v4035
    %v4038 = vrot.slane %v3993, 3
    %v4039 = vsel %vm2143, %v4038, %v4037
    %v4040 = vrot.slane %v3995, 2
    %v4041 = vsel %vm2146, %v4040, %v4039
    %v4042 = vrot.slane %v3997, 1
    %v4043 = vsel %vm2149, %v4042, %v4041
    %v4044 = vrot.slane %v4001, 7
    %v4045 = vsel %vm2131, %v4044, %v3999
    %v4046 = vrot.slane %v4003, 6
    %v4047 = vsel %vm2134, %v4046, %v4045
    %v4048 = vrot.slane %v4005, 5
    %v4049 = vsel %vm2137, %v4048, %v4047
    %v4050 = vrot.slane %v4007, 4
    %v4051 = vsel %vm2140, %v4050, %v4049
    %v4052 = vrot.slane %v4009, 3
    %v4053 = vsel %vm2143, %v4052, %v4051
    %v4054 = vrot.slane %v4011, 2
    %v4055 = vsel %vm2146, %v4054, %v4053
    %v4056 = vrot.slane %v4013, 1
    %v4057 = vsel %vm2149, %v4056, %v4055
    %4058 = vrot.lane.b32.xlu0 %v4043, 32
    %v4059 = vpop.permute.xlu0 %4058
    %4060 = vrot.lane.b32.xlu0 %v4057, 32
    %v4061 = vpop.permute.xlu0 %4060
    %v4064 = vadd.f32 %v2450, %v4059
    %v4065 = vadd.f32 %v2453, %v4061
    %v4066 = vsel %vm2334, %v4064, 0.0
    %v4067 = vsel %vm2334, %v4065, 0.0
    %v4068 = vadd.f32 %v4066, %v4067
    %v4069 = vrot.slane %v4068, 4
    %v4070 = vadd.f32 %v4068, %v4069
    %v4071 = vrot.slane %v4070, 2
    %v4072 = vadd.f32 %v4070, %v4071
    %v4073 = vrot.slane %v4072, 1
    %v4074 = vadd.f32 %v4072, %v4073
    %v4075 = vmul.f32 %v4074, 0.0625
    %v4076 = vmul.f32 %v4064, %v4064
    %v4077 = vmul.f32 %v4065, %v4065
    %v4078 = vsel %vm2334, %v4076, 0.0
    %v4079 = vsel %vm2334, %v4077, 0.0
    %v4080 = vadd.f32 %v4078, %v4079
    %v4081 = vrot.slane %v4080, 4
    %v4082 = vadd.f32 %v4080, %v4081
    %v4083 = vrot.slane %v4082, 2
    %v4084 = vadd.f32 %v4082, %v4083
    %v4085 = vrot.slane %v4084, 1
    %v4086 = vadd.f32 %v4084, %v4085
    %v4087 = vmul.f32 %v4086, 0.0625
    %v4088 = vmul.f32 %v4075, %v4075
    %v4089 = vsub.f32 %v4087, %v4088
    %v4090 = vmax.f32 %v4089, 0.0
    %v4091 = vsub.f32 %v4064, %v4075
    %v4092 = vsub.f32 %v4065, %v4075
    %v4093 = vadd.f32 %v4090, 1e-05
    %v4094 = vrsqrt.pop %v4093
    %v4095 = vmul.f32 %v4091, %v4094
    %v4096 = vmul.f32 %v4092, %v4094
    %v4097 = vmax.f32 %v4095, 0.0
    %v4098 = vmax.f32 %v4096, 0.0
    %4101 = vrot.lane.b32.xlu0 %v4097, 96
    %v4102 = vpop.permute.xlu0 %4101
    %4103 = vrot.lane.b32.xlu0 %v4098, 96
    %v4104 = vpop.permute.xlu0 %4103
    %v4107 = vadd.f32 %v2376, %v4102
    %v4108 = vadd.f32 %v2377, %v4104
    %v4109 = vpack.c.bf16 %v4108, %v4107
    %v4110 = vld [vmem:[#allocation17] sm:$0xf]
    %v4111 = vld [vmem:[#allocation17 + $0x4] sm:$0xf]
    %v4112 = vld [vmem:[#allocation17 + $0x8] sm:$0xf]
    %v4113 = vld [vmem:[#allocation17 + $0xc] sm:$0xf]
    %v4114 = vld [vmem:[#allocation18] sm:$0x1]
    %v4116 = vlaneseq
    %v4117 = vshrl.u32 %v4116, 7
    %v4118 = vsub.s32 0, %v4117
    %v4119 = vrot.slane %v4114, %v4118
    %v4125 = vunpack.c.l.b16 %v4110
    %v4126 = vunpack.c.l.b16 %v4111
    %v4127 = vunpack.c.l.b16 %v4112
    %v4128 = vunpack.c.l.b16 %v4113
    %v4129 = vpack.c.b16 %v4126, %v4125
    %v4130 = vpack.c.b16 %v4128, %v4127
    %v4134 = vsel %vm513, %v4109, 0
    %4136 = vmatprep.subr.bf16.mxu0 0
    %4137 = vmatpush1.bf16.msra.mxu0 %v4129
    %4138 = vmatprep.subr.bf16.mxu0 0
    %4139 = vmatpush1.bf16.msra.mxu0 %v4130
    %4140 = vmatprep.subr.bf16.mxu0 0
    %4141 = vmatpush1.bf16.msra.mxu0 0
    %4142 = vmatprep.subr.bf16.mxu0 0
    %4143 = vmatpush1.bf16.msra.mxu0 0
    %4144 = vmatprep.subr.bf16.mxu0 0
    %4145 = vmatpush1.bf16.msra.mxu0 0
    %4146 = vmatprep.subr.bf16.mxu0 0
    %4147 = vmatpush1.bf16.msra.mxu0 0
    %4148 = vmatprep.subr.bf16.mxu0 0
    %4149 = vmatpush1.bf16.msra.mxu0 0
    %4150 = vmatprep.subr.bf16.mxu0 0
    %4151 = vmatpush1.bf16.msra.mxu0 0
    %4152 = vmatprep.subr.bf16.mxu0 0
    %4153 = vmatpush1.bf16.msra.mxu0 0
    %4154 = vmatprep.subr.bf16.mxu0 0
    %4155 = vmatpush1.bf16.msra.mxu0 0
    %4156 = vmatprep.subr.bf16.mxu0 0
    %4157 = vmatpush1.bf16.msra.mxu0 0
    %4158 = vmatprep.subr.bf16.mxu0 0
    %4159 = vmatpush1.bf16.msra.mxu0 0
    %4160 = vmatprep.subr.bf16.mxu0 0
    %4161 = vmatpush1.bf16.msra.mxu0 0
    %4162 = vmatprep.subr.bf16.mxu0 0
    %4163 = vmatpush1.bf16.msra.mxu0 0
    %4164 = vmatprep.subr.bf16.mxu0 0
    %4165 = vmatpush1.bf16.msra.mxu0 0
    %4166 = vmatprep.subr.bf16.mxu0 0
    %4167 = vmatpush1.bf16.msra.mxu0 0
    %4168 = vmatprep.mubr.bf16.mxu0 0
    %4169 = vmatmul.mubr.bf16.gmra.mrb[0].mxu0 %v4134
    %v4170 = vpop.f32.mrb[0].mxu0
    %v4171 = vadd.f32 %v4119, %v4170
    %v4172 = vpop.f32.mrb[0].mxu0
    %v4173 = vpop.f32.mrb[0].mxu0
    %v4174 = vadd.f32 %v4119, %v4173
    %v4175 = vpop.f32.mrb[0].mxu0
    %4176 = vdwg.mxu0
    %v4177 = vmax.f32 %v4171, 0.0
    %v4178 = vmax.f32 %v4174, 0.0
    %v4179 = vld [vmem:[#allocation20] sm:$0x1]
    %v4181 = vlaneseq
    %v4182 = vshrl.u32 %v4181, 7
    %v4183 = vsub.s32 0, %v4182
    %v4184 = vrot.slane %v4179, %v4183
    %v4186 = vmul.f32 %v4177, %v4184
    %v4187 = vmul.f32 %v4178, %v4184
    %v4188 = vrot.slane %v4186, 4
    %v4189 = vadd.f32 %v4186, %v4188
    %v4190 = vrot.slane %v4189, 2
    %v4191 = vadd.f32 %v4189, %v4190
    %v4192 = vrot.slane %v4191, 1
    %v4193 = vadd.f32 %v4191, %v4192
    %v4194 = vrot.slane %v4187, 4
    %v4195 = vadd.f32 %v4187, %v4194
    %v4196 = vrot.slane %v4195, 2
    %v4197 = vadd.f32 %v4195, %v4196
    %v4198 = vrot.slane %v4197, 1
    %v4199 = vadd.f32 %v4197, %v4198
    %v4202 = vsel %vm2131, %v4199, %v4193
    %vm4204 = vcmask 1041408
    %v4205 = vsel %vm4204, %v4202, 0.0
    %4206 = vadd.xlane.f32.xlu0 %v4205
    %v4207 = vpop.xlane.xlu0 %4206
    %v4208 = vmul.f32 %v4207, 0.125
    %v4209 = vld [vmem:[#allocation2] sm:$0x1]
    %v4211 = vlaneseq
    %v4212 = vshrl.u32 %v4211, 7
    %v4213 = vsub.s32 0, %v4212
    %v4214 = vrot.slane %v4209, %v4213
    %v4216 = vadd.f32 %v4208, %v4214
    %4218 = vset.pattern.permute.xlu0 0
    %4219 = vperm.xlu0 %4218, %v4216
    %v4220 = vpop.permute.xlu0 %4219
    %4222 = vst [vmem:[#allocation21] sm:$0x3] %v4220
    // Predicated region
    $region94: #{tsp_rgcn_value_net.1} parent=1 // pred_check
      _
    $region95: #{tsp_rgcn_value_net.1} parent=1 // pred_check_branch
      %4224 = sbr.rel (0) target = $region97
    $region96: #{tsp_rgcn_value_net.1} parent=1 // pred_region
      %s4226 = ssub.s32 32, 32
      %4227 = vsyncadd [#allocation5], %s4226
      %s4229 = sshll.u32 [#allocation21], 4
      %s4230 = int_to_ptr.vmem [resolvable:$true] %s4229
      %4232 = dma.vmem_to_hbm [thread:$0]  %s4230, 32, %s12, [#allocation5]
    $region97: #{tsp_rgcn_value_net.1} parent=1 // pred_fallthru
      _
    // Predicated region
    $region98: #{tsp_rgcn_value_net.1} parent=1 // pred_check
      _
    $region99: #{tsp_rgcn_value_net.1} parent=1 // pred_check_branch
      %4234 = sbr.rel (0) target = $region101
    $region100: #{tsp_rgcn_value_net.1} parent=1 // pred_region
      %4235 = dma.done [#allocation5], 32
    $region101: #{tsp_rgcn_value_net.1} parent=1 // pred_fallthru
      _
    %4236 = vsyncpa [#allocation4], 1
    %4237 = vsyncpa [#allocation7], 1
    %4238 = vsyncpa [#allocation10], 1
    %4239 = vsyncpa [#allocation13], 1
    %4240 = vsyncpa [#allocation16], 1
    %4241 = vsyncpa [#allocation19], 1
    %4242 = vsyncpa [#allocation5], 1

</llo_original>
